<compile_context>
chip_gen: v7x
topology: tpu7x:2x2x1
jax: 0.10.0
libtpu: 0.0.40
codegen_flags: <defaults>
</compile_context>

<pallas_src>
import math
import functools
import numpy as np
import jax
import jax.numpy as jnp
from jax.experimental import pallas as pl
from jax.experimental.pallas import tpu as pltpu

K = 5            # number of spline bins
B = 3.0          # tail bound
MIN_BIN_WIDTH = 1e-3
MIN_BIN_HEIGHT = 1e-3
MIN_DERIVATIVE = 1e-3
HIDDEN = 64      # ResidualMLP hidden width
# TODO(synk): exact icenet ResidualMLP hyperparameters (hidden width, #blocks,
# activation, norm) are not given in the snippet; approximated as
# in->hidden, two residual ReLU blocks, hidden->out.
# TODO(synk): optional `cond` conditioning input is not implemented (cond=None path).


def _round_up(n, m):
    return ((n + m - 1) // m) * m


def _cdiv(a, b):
    return (a + b - 1) // b


def _softplus(x):
    # numerically-stable softplus (matches F.softplus to fp32 precision)
    return jnp.maximum(x, 0.0) + jnp.log(1.0 + jnp.exp(-jnp.abs(x)))


# ----------------------------------------------------------------------------
# Pallas kernel.  Everything is (folded features, batch-columns):
#   row g*d + j of a folded slab holds feature j of batch half g.
# ----------------------------------------------------------------------------
def _spline_coupling_kernel(
        xl_ref, xu_ref,
        w1i, b1i, w1a, b1a, w1b, b1b, w1o, b1o,
        w2i, b2i, w2a, b2a, w2b, b2b, w2o, b2o,
        out_ref, p_ref, *, du, dl, G, dug_pad, dlg_pad):
    P = 3 * K - 1
    duG, dlG = du * G, dl * G

    def bdot(a, b):
        # bf16 operands on the MXU, f32 accumulation.
        return jnp.dot(a.astype(jnp.bfloat16), b.astype(jnp.bfloat16),
                       preferred_element_type=jnp.float32)

    def mlp_to_scratch(xT, wi, bi, wa, ba, wb, bb, wo, bo, n_rows):
        # Block-diagonal (folded) ResidualMLP; result parked in the VMEM
        # scratch so the spline streams coefficient groups from it.
        h = jnp.maximum(bdot(wi[...], xT) + bi[...], 0.0)
        h = h + jnp.maximum(bdot(wa[...], h) + ba[...], 0.0)
        h = h + jnp.maximum(bdot(wb[...], h) + bb[...], 0.0)
        p_ref[0:n_rows, :] = bdot(wo[...], h) + bo[...]

    def spline_T(xT, dG, dg_pad):
        # xT: (dG, BN) folded inputs for this spline.
        xc = jnp.clip(xT, -B, B)

        def grp(c):
            # coefficient group c: rows [c*dg_pad, c*dg_pad + dG) of the scratch
            return p_ref[c * dg_pad:c * dg_pad + dG, :]

        def norm_bins(base, min_v):
            # coupling-layer 2B*softmax followed by the RQS re-softmax,
            # streamed from p_ref to keep few temporaries live.
            m = grp(base)
            for k in range(1, K):
                m = jnp.maximum(m, grp(base + k))
            e1 = [jnp.exp(grp(base + k) - m) for k in range(K)]
            s1 = e1[0]
            for k in range(1, K):
                s1 = s1 + e1[k]
            inv1 = (2.0 * B) / s1          # exact divide (feeds knot positions)
            # Second-softmax inputs are 2B*softmax values in [0, 2B] = [0, 6],
            # so exp never overflows and the max-subtraction is safely skipped.
            # (Only valid while B stays small; revisit if B changes.)
            e2 = [jnp.exp(v * inv1) for v in e1]
            s2 = e2[0]
            for k in range(1, K):
                s2 = s2 + e2[k]
            scale = (1.0 - min_v * K) / s2
            return [min_v + v * scale for v in e2]

        widths = norm_bins(0, MIN_BIN_WIDTH)        # normalized, sum ~ 1
        heights = norm_bins(K, MIN_BIN_HEIGHT)
        ones = jnp.ones_like(xc)

        # Fused knot-cumsum + searchsorted + gather: a single streaming pass
        # over the K bins; one comparison mask per bin reused by all six
        # gathered quantities (hoisted masks, minimal live temporaries).
        cw = jnp.full_like(xc, -B)
        ch = jnp.full_like(xc, -B)
        d_left = ones                                # boundary derivative == 1
        in_cw = in_ch = in_w = in_h = in_d = in_dp1 = None
        for k in range(K):
            last = (k == K - 1)
            if last:
                wk, hk = B - cw, B - ch              # forced right endpoint == B
                d_right = ones                       # boundary derivative == 1
            else:
                wk = (2.0 * B) * widths[k]
                hk = (2.0 * B) * heights[k]
                # coupling softplus followed by the RQS softplus
                d_right = MIN_DERIVATIVE + _softplus(_softplus(grp(2 * K + k)))
            if k == 0:
                in_cw, in_ch, in_w, in_h = cw, ch, wk, hk
                in_d, in_dp1 = d_left, d_right
            else:
                sel = xc >= cw                       # hoisted bin-membership mask
                in_cw = jnp.where(sel, cw, in_cw)
                in_ch = jnp.where(sel, ch, in_ch)
                in_w = jnp.where(sel, wk, in_w)
                in_h = jnp.where(sel, hk, in_h)
                in_d = jnp.where(sel, d_left, in_d)
                in_dp1 = jnp.where(sel, d_right, in_dp1)
            if not last:
                cw, ch, d_left = cw + wk, ch + hk, d_right

        theta = jnp.clip((xc - in_cw) / in_w, 0.0, 1.0)   # exact divide
        in_delta = in_h / in_w
        tt = theta * (1.0 - theta)
        th2 = theta * theta
        num = in_h * (in_delta * th2 + in_d * tt)
        den = in_delta + (in_d + in_dp1 - 2.0 * in_delta) * tt
        y = in_ch + num / den
        dnum = (in_delta * in_delta) * (in_dp1 * th2 + 2.0 * in_delta * tt
                                        + in_d * (1.0 - theta) * (1.0 - theta))
        # exact log-det path (no approximate reciprocal on the likelihood path)
        lad = jnp.log(dnum) - 2.0 * jnp.log(den)

        inside = jnp.logical_and(xT >= -B, xT <= B)
        return jnp.where(inside, y, xT), jnp.where(inside, lad, 0.0)

    x_lo = xl_ref[0:dlG, :]
    x_up = xu_ref[0:duG, :]

    # --- f1(lower) -> spline on upper ---
    mlp_to_scratch(xl_ref[...], w1i, b1i, w1a, b1a, w1b, b1b, w1o, b1o,
                   P * dug_pad)
    z_up, ld1 = spline_T(x_up, duG, dug_pad)

    # --- f2(transformed upper) -> spline on lower ---
    z_in = z_up
    if dug_pad > duG:
        z_in = jnp.concatenate(
            [z_up, jnp.zeros((dug_pad - duG, z_up.shape[1]), z_up.dtype)], axis=0)
    mlp_to_scratch(z_in, w2i, b2i, w2a, b2a, w2b, b2b, w2o, b2o,
                   P * dlg_pad)
    z_lo, ld2 = spline_T(x_lo, dlG, dlg_pad)

    # --- packed output: rows [0:duG]=z_up, [duG:duG+dlG]=z_lo, then G logdet
    # rows (one per folded batch half).  No zero-init, no padded rows. ---
    out_ref[0:duG, :] = z_up
    out_ref[duG:duG + dlG, :] = z_lo
    base = duG + dlG
    for g in range(G):
        row = (jnp.sum(ld1[g * du:(g + 1) * du, :], axis=0, keepdims=True)
               + jnp.sum(ld2[g * dl:(g + 1) * dl, :], axis=0, keepdims=True))
        out_ref[base + g:base + g + 1, :] = row


# ----------------------------------------------------------------------------
# Wrapper: folding / block-diagonal weight layout / grid plumbing.
# ----------------------------------------------------------------------------
def _prep_mlp_T(p, d_out, d_in, G):
    """Fold an MLP (x[d_in] -> params[(3K-1)*d_out]) for the sublane-folded,
    transposed layout: block-diagonal weights (one block per batch half) and a
    row permutation of the output layer so that coefficient c of folded
    feature row g*d_out + j lands at row c*dog_pad + g*d_out + j."""
    P = 3 * K - 1
    H = int(np.asarray(p['w_in']).shape[1])
    din_pad = _round_up(d_in * G, 8)
    dog_pad = _round_up(d_out * G, 8)

    w_in = np.asarray(p['w_in'], np.float32)          # (d_in, H)
    b_in = np.asarray(p['b_in'], np.float32).reshape(-1)
    w_r1 = np.asarray(p['w_r1'], np.float32)
    b_r1 = np.asarray(p['b_r1'], np.float32).reshape(-1)
    w_r2 = np.asarray(p['w_r2'], np.float32)
    b_r2 = np.asarray(p['b_r2'], np.float32).reshape(-1)
    w_out = np.asarray(p['w_out'], np.float32)        # (H, P*d_out)
    b_out = np.asarray(p['b_out'], np.float32).reshape(-1)

    wi = np.zeros((G * H, din_pad), np.float32)
    wa = np.zeros((G * H, G * H), np.float32)
    wb = np.zeros((G * H, G * H), np.float32)
    wo = np.zeros((P * dog_pad, G * H), np.float32)
    bo = np.zeros((P * dog_pad, 1), np.float32)
    for g in range(G):
        wi[g * H:(g + 1) * H, g * d_in:(g + 1) * d_in] = w_in.T
        wa[g * H:(g + 1) * H, g * H:(g + 1) * H] = w_r1.T
        wb[g * H:(g + 1) * H, g * H:(g + 1) * H] = w_r2.T
        for c in range(P):
            for j in range(d_out):
                r = c * dog_pad + g * d_out + j
                wo[r, g * H:(g + 1) * H] = w_out[:, j * P + c]
                bo[r, 0] = b_out[j * P + c]
    bi = np.tile(b_in, G).reshape(G * H, 1)
    ba = np.tile(b_r1, G).reshape(G * H, 1)
    bb = np.tile(b_r2, G).reshape(G * H, 1)

    bf = jnp.bfloat16
    return [jnp.asarray(wi, bf), jnp.asarray(bi),
            jnp.asarray(wa, bf), jnp.asarray(ba),
            jnp.asarray(wb, bf), jnp.asarray(bb),
            jnp.asarray(wo, bf), jnp.asarray(bo)]


def _fold_T(xi, N, Np, NpF, G, d, d_pad):
    """(N, d) -> folded transposed slab (d_pad, NpF):
    row g*d + j, column b holds x[g*NpF + b, j] (zero padded)."""
    xp = jnp.zeros((Np, d), jnp.float32).at[:N].set(xi.astype(jnp.float32))
    xf = xp.reshape(G, NpF, d).transpose(0, 2, 1).reshape(G * d, NpF)
    if d_pad > G * d:
        xf = jnp.concatenate(
            [xf, jnp.zeros((d_pad - G * d, NpF), jnp.float32)], axis=0)
    return xf


def spline_coupling_forward(x, mask_np, p1, p2, *, block_n=None):
    N, D = x.shape
    mask_np = np.asarray(mask_np, dtype=bool)
    up_idx = np.where(mask_np)[0]
    lo_idx = np.where(~mask_np)[0]
    du, dl = len(up_idx), len(lo_idx)

    # Sublane folding factor: fold G batch halves onto the free sublanes so
    # the spline's elementwise chain runs at full (8,128)-vreg density.
    G = max(1, 8 // max(du, dl))
    duG, dlG = du * G, dl * G
    dug_pad, dlg_pad = _round_up(duG, 8), _round_up(dlG, 8)

    nF = _cdiv(N, G)                      # folded batch columns needed
    if block_n is None:
        # Big lane-dense blocks, but >= 2 grid steps so both of a v7x chip's
        # TensorCores get work (no effect on single-TC v5e/v6e).  VMEM is not
        # the binding resource here, so don't shrink the block for capacity.
        block_n = min(1024, _round_up(max(_cdiv(nF, 2), 1), 128))
    BN = min(_round_up(block_n, 128), _round_up(nF, 128))
    NpF = _round_up(nF, BN)
    Np = G * NpF
    grid = (NpF // BN,)

    xl_T = _fold_T(x[:, lo_idx], N, Np, NpF, G, dl, dlg_pad)
    xu_T = _fold_T(x[:, up_idx], N, Np, NpF, G, du, dug_pad)

    weights = _prep_mlp_T(p1, du, dl, G) + _prep_mlp_T(p2, dl, du, G)

    P = 3 * K - 1
    OUT_ROWS = duG + dlG + G              # exact rows: z_up, z_lo, per-half logdet
    kernel = functools.partial(_spline_coupling_kernel, du=du, dl=dl, G=G,
                               dug_pad=dug_pad, dlg_pad=dlg_pad)

    in_specs = ([pl.BlockSpec((dlg_pad, BN), lambda i: (0, i)),
                 pl.BlockSpec((dug_pad, BN), lambda i: (0, i))]
                + [pl.BlockSpec(w.shape, lambda i: (0, 0)) for w in weights])
    out_spec = pl.BlockSpec((OUT_ROWS, BN), lambda i: (0, i))
    scratch = [pltpu.VMEM((P * max(dug_pad, dlg_pad), BN), jnp.float32)]

    # advisory cost estimate for XLA's scheduler
    Gh = weights[0].shape[0]
    rows1, rows2 = weights[6].shape[0], weights[14].shape[0]
    mlp_flops = 2 * NpF * (Gh * dlg_pad + 2 * Gh * Gh + Gh * rows1
                           + Gh * dug_pad + 2 * Gh * Gh + Gh * rows2)
    spline_flops = NpF * (duG + dlG) * 300
    transcend = NpF * (duG + dlG) * 60
    bytes_acc = (sum(int(np.prod(w.shape)) * w.dtype.itemsize for w in weights)
                 + 4 * NpF * (dlg_pad + dug_pad + OUT_ROWS))
    cost = pl.CostEstimate(flops=int(mlp_flops + spline_flops),
                           transcendentals=int(transcend),
                           bytes_accessed=int(bytes_acc))

    out = pl.pallas_call(
        kernel,
        out_shape=jax.ShapeDtypeStruct((OUT_ROWS, NpF), jnp.float32),
        grid=grid,
        in_specs=in_specs,
        out_specs=out_spec,
        scratch_shapes=scratch,
        compiler_params=pltpu.CompilerParams(
            dimension_semantics=("parallel",),
            vmem_limit_bytes=32 * 1024 * 1024),
        cost_estimate=cost,
    )(xl_T, xu_T, *weights)

    # un-fold the packed output slab
    z_up = out[0:duG].reshape(G, du, NpF).transpose(0, 2, 1).reshape(G * NpF, du)[:N]
    z_lo = out[duG:duG + dlG].reshape(G, dl, NpF).transpose(0, 2, 1).reshape(G * NpF, dl)[:N]
    logdet = out[duG + dlG:OUT_ROWS].reshape(G * NpF)[:N]

    z = x.at[:, up_idx].set(z_up)
    z = z.at[:, lo_idx].set(z_lo)
    return z, logdet


# ----------------------------------------------------------------------------
# Pure-JAX reference (mirrors the PyTorch module semantics).  MLP matmuls use
# bf16 operands with f32 accumulation (the MXU precision the kernel uses) so
# the check isolates kernel correctness; spline math stays exact f32.
# ----------------------------------------------------------------------------
def _bf16_dot(a, b):
    return jnp.dot(a.astype(jnp.bfloat16), b.astype(jnp.bfloat16),
                   preferred_element_type=jnp.float32)


def _mlp_ref(x, p):
    h = jax.nn.relu(_bf16_dot(x, p['w_in']) + p['b_in'])
    h = h + jax.nn.relu(_bf16_dot(h, p['w_r1']) + p['b_r1'])
    h = h + jax.nn.relu(_bf16_dot(h, p['w_r2']) + p['b_r2'])
    return _bf16_dot(h, p['w_out']) + p['b_out']


def _unconstrained_rqs_ref(x, Wn, Hn, Dn, tail):
    nb = Wn.shape[-1]
    inside = (x >= -tail) & (x <= tail)
    const = math.log(math.exp(1.0 - MIN_DERIVATIVE) - 1.0)
    pad = jnp.full(x.shape + (1,), const, x.dtype)
    Dpad = jnp.concatenate([pad, Dn, pad], axis=-1)

    widths = jax.nn.softmax(Wn, axis=-1)
    widths = MIN_BIN_WIDTH + (1 - MIN_BIN_WIDTH * nb) * widths
    cumw = jnp.cumsum(widths, axis=-1)
    cumw = jnp.concatenate([jnp.zeros(x.shape + (1,), x.dtype), cumw], axis=-1)
    cumw = 2 * tail * cumw - tail
    cumw = cumw.at[..., 0].set(-tail).at[..., -1].set(tail)
    widths = cumw[..., 1:] - cumw[..., :-1]

    deriv = MIN_DERIVATIVE + _softplus(Dpad)

    heights = jax.nn.softmax(Hn, axis=-1)
    heights = MIN_BIN_HEIGHT + (1 - MIN_BIN_HEIGHT * nb) * heights
    cumh = jnp.cumsum(heights, axis=-1)
    cumh = jnp.concatenate([jnp.zeros(x.shape + (1,), x.dtype), cumh], axis=-1)
    cumh = 2 * tail * cumh - tail
    cumh = cumh.at[..., 0].set(-tail).at[..., -1].set(tail)
    heights = cumh[..., 1:] - cumh[..., :-1]

    xc = jnp.clip(x, -tail, tail)
    locs = cumw.at[..., -1].add(1e-6)
    bin_idx = jnp.sum((xc[..., None] >= locs).astype(jnp.int32), axis=-1) - 1
    bin_idx = jnp.clip(bin_idx, 0, nb - 1)

    def g(a):
        return jnp.take_along_axis(a, bin_idx[..., None], axis=-1)[..., 0]

    in_cw, in_w, in_ch = g(cumw), g(widths), g(cumh)
    in_delta = g(heights / widths)
    in_d, in_dp1, in_h = g(deriv[..., :-1]), g(deriv[..., 1:]), g(heights)

    theta = (xc - in_cw) / in_w
    tt = theta * (1 - theta)
    num = in_h * (in_delta * theta ** 2 + in_d * tt)
    den = in_delta + (in_d + in_dp1 - 2 * in_delta) * tt
    y = in_ch + num / den
    dnum = in_delta ** 2 * (in_dp1 * theta ** 2 + 2 * in_delta * tt + in_d * (1 - theta) ** 2)
    lad = jnp.log(dnum) - 2 * jnp.log(den)
    return jnp.where(inside, y, x), jnp.where(inside, lad, 0.0)


def reference_forward(x, mask_np, p1, p2):
    mask_np = np.asarray(mask_np, dtype=bool)
    up_idx = np.where(mask_np)[0]
    lo_idx = np.where(~mask_np)[0]
    du, dl = len(up_idx), len(lo_idx)
    x_lower, x_upper = x[:, lo_idx], x[:, up_idx]

    params1 = _mlp_ref(x_lower, p1).reshape(-1, du, 3 * K - 1)
    W1, H1, D1 = params1[..., :K], params1[..., K:2 * K], params1[..., 2 * K:]
    W1 = 2 * B * jax.nn.softmax(W1, -1)
    H1 = 2 * B * jax.nn.softmax(H1, -1)
    D1 = _softplus(D1)
    xu, ld1 = _unconstrained_rqs_ref(x_upper, W1, H1, D1, B)
    logdet = ld1.sum(1)

    params2 = _mlp_ref(xu, p2).reshape(-1, dl, 3 * K - 1)
    W2, H2, D2 = params2[..., :K], params2[..., K:2 * K], params2[..., 2 * K:]
    W2 = 2 * B * jax.nn.softmax(W2, -1)
    H2 = 2 * B * jax.nn.softmax(H2, -1)
    D2 = _softplus(D2)
    xl, ld2 = _unconstrained_rqs_ref(x_lower, W2, H2, D2, B)
    logdet = logdet + ld2.sum(1)

    z = x.at[:, up_idx].set(xu)
    z = z.at[:, lo_idx].set(xl)
    return z, logdet


# ----------------------------------------------------------------------------
# Deterministic parameter construction + demo
# ----------------------------------------------------------------------------
def make_mlp_params(key, in_dim, out_dim, hidden=HIDDEN):
    ks = jax.random.split(key, 8)

    def lin(kw, kb, fi, fo):
        bound = 1.0 / np.sqrt(fi)
        w = jax.random.uniform(kw, (fi, fo), jnp.float32, -bound, bound)
        b = jax.random.uniform(kb, (1, fo), jnp.float32, -bound, bound)
        return w, b

    w_in, b_in = lin(ks[0], ks[1], in_dim, hidden)
    w_r1, b_r1 = lin(ks[2], ks[3], hidden, hidden)
    w_r2, b_r2 = lin(ks[4], ks[5], hidden, hidden)
    w_out, b_out = lin(ks[6], ks[7], hidden, out_dim)
    return dict(w_in=w_in, b_in=b_in, w_r1=w_r1, b_r1=b_r1,
                w_r2=w_r2, b_r2=b_r2, w_out=w_out, b_out=b_out)


if __name__ == "__main__":
    key = jax.random.PRNGKey(0)
    N, D = 512, 8
    mask_np = np.array([1, 0, 1, 0, 1, 0, 1, 0], dtype=bool)  # upper/lower split
    du = int(mask_np.sum())
    dl = D - du

    kx, k1, k2 = jax.random.split(key, 3)
    x = 2.0 * jax.random.normal(kx, (N, D), jnp.float32)  # some values beyond |B|=3
    p1 = make_mlp_params(k1, dl, (3 * K - 1) * du)  # f1: lower -> upper params
    p2 = make_mlp_params(k2, du, (3 * K - 1) * dl)  # f2: upper -> lower params

    # block_n=128 with fold factor G=2 -> folded columns 256 -> 2-step grid
    z, logdet = spline_coupling_forward(x, mask_np, p1, p2, block_n=128)
    z = jax.block_until_ready(z)
    logdet = jax.block_until_ready(logdet)

    z_ref, ld_ref = reference_forward(x, mask_np, p1, p2)
    assert np.allclose(np.asarray(z), np.asarray(z_ref), atol=5e-2, rtol=5e-2), "z mismatch"
    assert np.allclose(np.asarray(logdet), np.asarray(ld_ref), atol=5e-2, rtol=5e-2), "logdet mismatch"

    print("KERNEL_OK")
</pallas_src>

<mosaic_0001>
module attributes {stable_mosaic.version = 11 : i64} {
  func.func @_spline_coupling_kernel(%arg0: i32, %arg1: memref<8x128xf32, #tpu.memory_space<vmem>>, %arg2: memref<8x128xf32, #tpu.memory_space<vmem>>, %arg3: memref<128x8xbf16, #tpu.memory_space<vmem>>, %arg4: memref<128x1xf32, #tpu.memory_space<vmem>>, %arg5: memref<128x128xbf16, #tpu.memory_space<vmem>>, %arg6: memref<128x1xf32, #tpu.memory_space<vmem>>, %arg7: memref<128x128xbf16, #tpu.memory_space<vmem>>, %arg8: memref<128x1xf32, #tpu.memory_space<vmem>>, %arg9: memref<112x128xbf16, #tpu.memory_space<vmem>>, %arg10: memref<112x1xf32, #tpu.memory_space<vmem>>, %arg11: memref<128x8xbf16, #tpu.memory_space<vmem>>, %arg12: memref<128x1xf32, #tpu.memory_space<vmem>>, %arg13: memref<128x128xbf16, #tpu.memory_space<vmem>>, %arg14: memref<128x1xf32, #tpu.memory_space<vmem>>, %arg15: memref<128x128xbf16, #tpu.memory_space<vmem>>, %arg16: memref<128x1xf32, #tpu.memory_space<vmem>>, %arg17: memref<112x128xbf16, #tpu.memory_space<vmem>>, %arg18: memref<112x1xf32, #tpu.memory_space<vmem>>, %arg19: memref<18x128xf32, #tpu.memory_space<vmem>>, %arg20: memref<112x128xf32, #tpu.memory_space<vmem>>) attributes {dimension_semantics = [#tpu.dimension_semantics<parallel>], iteration_bounds = array<i64: 2>, scalar_prefetch = 0 : i64, scratch_operands = 1 : i64, tpu.core_type = #tpu.core_type<tc>, window_params = [{transform_indices = @transform_0, window_bounds = array<i64: 8, 128>}, {transform_indices = @transform_1, window_bounds = array<i64: 8, 128>}, {pipeline_mode = #tpu.pipeline_mode<synchronous>, transform_indices = @transform_2, window_bounds = array<i64: 128, 8>}, {pipeline_mode = #tpu.pipeline_mode<synchronous>, transform_indices = @transform_3, window_bounds = array<i64: 128, 1>}, {pipeline_mode = #tpu.pipeline_mode<synchronous>, transform_indices = @transform_4, window_bounds = array<i64: 128, 128>}, {pipeline_mode = #tpu.pipeline_mode<synchronous>, transform_indices = @transform_5, window_bounds = array<i64: 128, 1>}, {pipeline_mode = #tpu.pipeline_mode<synchronous>, transform_indices = @transform_6, window_bounds = array<i64: 128, 128>}, {pipeline_mode = #tpu.pipeline_mode<synchronous>, transform_indices = @transform_7, window_bounds = array<i64: 128, 1>}, {pipeline_mode = #tpu.pipeline_mode<synchronous>, transform_indices = @transform_8, window_bounds = array<i64: 112, 128>}, {pipeline_mode = #tpu.pipeline_mode<synchronous>, transform_indices = @transform_9, window_bounds = array<i64: 112, 1>}, {pipeline_mode = #tpu.pipeline_mode<synchronous>, transform_indices = @transform_10, window_bounds = array<i64: 128, 8>}, {pipeline_mode = #tpu.pipeline_mode<synchronous>, transform_indices = @transform_11, window_bounds = array<i64: 128, 1>}, {pipeline_mode = #tpu.pipeline_mode<synchronous>, transform_indices = @transform_12, window_bounds = array<i64: 128, 128>}, {pipeline_mode = #tpu.pipeline_mode<synchronous>, transform_indices = @transform_13, window_bounds = array<i64: 128, 1>}, {pipeline_mode = #tpu.pipeline_mode<synchronous>, transform_indices = @transform_14, window_bounds = array<i64: 128, 128>}, {pipeline_mode = #tpu.pipeline_mode<synchronous>, transform_indices = @transform_15, window_bounds = array<i64: 128, 1>}, {pipeline_mode = #tpu.pipeline_mode<synchronous>, transform_indices = @transform_16, window_bounds = array<i64: 112, 128>}, {pipeline_mode = #tpu.pipeline_mode<synchronous>, transform_indices = @transform_17, window_bounds = array<i64: 112, 1>}, {transform_indices = @transform_18, window_bounds = array<i64: 18, 128>}]} {
    %c0 = arith.constant 0 : index
    %c0_0 = arith.constant 0 : index
    %0 = vector.load %arg1[%c0, %c0_0] : memref<8x128xf32, #tpu.memory_space<vmem>>, vector<8x128xf32>
    %c0_1 = arith.constant 0 : index
    %c0_2 = arith.constant 0 : index
    %1 = vector.load %arg2[%c0_1, %c0_2] : memref<8x128xf32, #tpu.memory_space<vmem>>, vector<8x128xf32>
    %c0_3 = arith.constant 0 : index
    %c0_4 = arith.constant 0 : index
    %2 = vector.load %arg1[%c0_3, %c0_4] : memref<8x128xf32, #tpu.memory_space<vmem>>, vector<8x128xf32>
    %c0_5 = arith.constant 0 : index
    %c0_6 = arith.constant 0 : index
    %3 = vector.load %arg3[%c0_5, %c0_6] : memref<128x8xbf16, #tpu.memory_space<vmem>>, vector<128x8xbf16>
    %4 = arith.truncf %2 : vector<8x128xf32> to vector<8x128xbf16>
    %cst = arith.constant dense<0.000000e+00> : vector<128x128xf32>
    %5 = tpu.matmul %3, %4, %cst {dimension_numbers = #tpu.dot_dimension_numbers<[1], [0], [0], [1], [0, 0, 1, 1], [], []>} : vector<128x8xbf16>, vector<8x128xbf16>, vector<128x128xf32> -> vector<128x128xf32>
    %c0_7 = arith.constant 0 : index
    %c0_8 = arith.constant 0 : index
    %6 = vector.load %arg4[%c0_7, %c0_8] : memref<128x1xf32, #tpu.memory_space<vmem>>, vector<128x1xf32>
    %7 = vector.broadcast %6 : vector<128x1xf32> to vector<128x128xf32>
    %8 = arith.addf %5, %7 : vector<128x128xf32>
    %cst_9 = arith.constant 0.000000e+00 : f32
    %9 = vector.broadcast %cst_9 : f32 to vector<128x128xf32>
    %10 = arith.maximumf %8, %9 : vector<128x128xf32>
    %c0_10 = arith.constant 0 : index
    %c0_11 = arith.constant 0 : index
    %11 = vector.load %arg5[%c0_10, %c0_11] : memref<128x128xbf16, #tpu.memory_space<vmem>>, vector<128x128xbf16>
    %12 = arith.truncf %10 : vector<128x128xf32> to vector<128x128xbf16>
    %cst_12 = arith.constant dense<0.000000e+00> : vector<128x128xf32>
    %13 = tpu.matmul %11, %12, %cst_12 {dimension_numbers = #tpu.dot_dimension_numbers<[1], [0], [0], [1], [0, 0, 1, 1], [], []>} : vector<128x128xbf16>, vector<128x128xbf16>, vector<128x128xf32> -> vector<128x128xf32>
    %c0_13 = arith.constant 0 : index
    %c0_14 = arith.constant 0 : index
    %14 = vector.load %arg6[%c0_13, %c0_14] : memref<128x1xf32, #tpu.memory_space<vmem>>, vector<128x1xf32>
    %15 = vector.broadcast %14 : vector<128x1xf32> to vector<128x128xf32>
    %16 = arith.addf %13, %15 : vector<128x128xf32>
    %cst_15 = arith.constant 0.000000e+00 : f32
    %17 = vector.broadcast %cst_15 : f32 to vector<128x128xf32>
    %18 = arith.maximumf %16, %17 : vector<128x128xf32>
    %19 = arith.addf %10, %18 : vector<128x128xf32>
    %c0_16 = arith.constant 0 : index
    %c0_17 = arith.constant 0 : index
    %20 = vector.load %arg7[%c0_16, %c0_17] : memref<128x128xbf16, #tpu.memory_space<vmem>>, vector<128x128xbf16>
    %21 = arith.truncf %19 : vector<128x128xf32> to vector<128x128xbf16>
    %cst_18 = arith.constant dense<0.000000e+00> : vector<128x128xf32>
    %22 = tpu.matmul %20, %21, %cst_18 {dimension_numbers = #tpu.dot_dimension_numbers<[1], [0], [0], [1], [0, 0, 1, 1], [], []>} : vector<128x128xbf16>, vector<128x128xbf16>, vector<128x128xf32> -> vector<128x128xf32>
    %c0_19 = arith.constant 0 : index
    %c0_20 = arith.constant 0 : index
    %23 = vector.load %arg8[%c0_19, %c0_20] : memref<128x1xf32, #tpu.memory_space<vmem>>, vector<128x1xf32>
    %24 = vector.broadcast %23 : vector<128x1xf32> to vector<128x128xf32>
    %25 = arith.addf %22, %24 : vector<128x128xf32>
    %cst_21 = arith.constant 0.000000e+00 : f32
    %26 = vector.broadcast %cst_21 : f32 to vector<128x128xf32>
    %27 = arith.maximumf %25, %26 : vector<128x128xf32>
    %28 = arith.addf %19, %27 : vector<128x128xf32>
    %c0_22 = arith.constant 0 : index
    %c0_23 = arith.constant 0 : index
    %29 = vector.load %arg9[%c0_22, %c0_23] : memref<112x128xbf16, #tpu.memory_space<vmem>>, vector<112x128xbf16>
    %30 = arith.truncf %28 : vector<128x128xf32> to vector<128x128xbf16>
    %cst_24 = arith.constant dense<0.000000e+00> : vector<112x128xf32>
    %31 = tpu.matmul %29, %30, %cst_24 {dimension_numbers = #tpu.dot_dimension_numbers<[1], [0], [0], [1], [0, 0, 1, 1], [], []>} : vector<112x128xbf16>, vector<128x128xbf16>, vector<112x128xf32> -> vector<112x128xf32>
    %c0_25 = arith.constant 0 : index
    %c0_26 = arith.constant 0 : index
    %32 = vector.load %arg10[%c0_25, %c0_26] : memref<112x1xf32, #tpu.memory_space<vmem>>, vector<112x1xf32>
    %33 = vector.broadcast %32 : vector<112x1xf32> to vector<112x128xf32>
    %34 = arith.addf %31, %33 : vector<112x128xf32>
    %c0_27 = arith.constant 0 : index
    %c0_28 = arith.constant 0 : index
    %35 = vector.load %arg20[%c0_27, %c0_28] : memref<112x128xf32, #tpu.memory_space<vmem>>, vector<112x128xf32>
    tpu.vector_store %arg20[%c0_27, %c0_28], %34 {strides = array<i32>} : memref<112x128xf32, #tpu.memory_space<vmem>>, vector<112x128xf32>,
    %cst_29 = arith.constant -3.000000e+00 : f32
    %cst_30 = arith.constant 3.000000e+00 : f32
    %36 = vector.broadcast %cst_29 : f32 to vector<8x128xf32>
    %37 = arith.maximumf %36, %1 : vector<8x128xf32>
    %38 = vector.broadcast %cst_30 : f32 to vector<8x128xf32>
    %39 = arith.minimumf %38, %37 : vector<8x128xf32>
    %c0_31 = arith.constant 0 : index
    %c0_32 = arith.constant 0 : index
    %40 = vector.load %arg20[%c0_31, %c0_32] : memref<112x128xf32, #tpu.memory_space<vmem>>, vector<8x128xf32>
    %c8 = arith.constant 8 : index
    %c0_33 = arith.constant 0 : index
    %41 = vector.load %arg20[%c8, %c0_33] : memref<112x128xf32, #tpu.memory_space<vmem>>, vector<8x128xf32>
    %42 = arith.maximumf %40, %41 : vector<8x128xf32>
    %c16 = arith.constant 16 : index
    %c0_34 = arith.constant 0 : index
    %43 = vector.load %arg20[%c16, %c0_34] : memref<112x128xf32, #tpu.memory_space<vmem>>, vector<8x128xf32>
    %44 = arith.maximumf %42, %43 : vector<8x128xf32>
    %c24 = arith.constant 24 : index
    %c0_35 = arith.constant 0 : index
    %45 = vector.load %arg20[%c24, %c0_35] : memref<112x128xf32, #tpu.memory_space<vmem>>, vector<8x128xf32>
    %46 = arith.maximumf %44, %45 : vector<8x128xf32>
    %c32 = arith.constant 32 : index
    %c0_36 = arith.constant 0 : index
    %47 = vector.load %arg20[%c32, %c0_36] : memref<112x128xf32, #tpu.memory_space<vmem>>, vector<8x128xf32>
    %48 = arith.maximumf %46, %47 : vector<8x128xf32>
    %c0_37 = arith.constant 0 : index
    %c0_38 = arith.constant 0 : index
    %49 = vector.load %arg20[%c0_37, %c0_38] : memref<112x128xf32, #tpu.memory_space<vmem>>, vector<8x128xf32>
    %50 = arith.subf %49, %48 : vector<8x128xf32>
    %51 = math.exp %50 : vector<8x128xf32>
    %c8_39 = arith.constant 8 : index
    %c0_40 = arith.constant 0 : index
    %52 = vector.load %arg20[%c8_39, %c0_40] : memref<112x128xf32, #tpu.memory_space<vmem>>, vector<8x128xf32>
    %53 = arith.subf %52, %48 : vector<8x128xf32>
    %54 = math.exp %53 : vector<8x128xf32>
    %c16_41 = arith.constant 16 : index
    %c0_42 = arith.constant 0 : index
    %55 = vector.load %arg20[%c16_41, %c0_42] : memref<112x128xf32, #tpu.memory_space<vmem>>, vector<8x128xf32>
    %56 = arith.subf %55, %48 : vector<8x128xf32>
    %57 = math.exp %56 : vector<8x128xf32>
    %c24_43 = arith.constant 24 : index
    %c0_44 = arith.constant 0 : index
    %58 = vector.load %arg20[%c24_43, %c0_44] : memref<112x128xf32, #tpu.memory_space<vmem>>, vector<8x128xf32>
    %59 = arith.subf %58, %48 : vector<8x128xf32>
    %60 = math.exp %59 : vector<8x128xf32>
    %c32_45 = arith.constant 32 : index
    %c0_46 = arith.constant 0 : index
    %61 = vector.load %arg20[%c32_45, %c0_46] : memref<112x128xf32, #tpu.memory_space<vmem>>, vector<8x128xf32>
    %62 = arith.subf %61, %48 : vector<8x128xf32>
    %63 = math.exp %62 : vector<8x128xf32>
    %64 = arith.addf %51, %54 : vector<8x128xf32>
    %65 = arith.addf %64, %57 : vector<8x128xf32>
    %66 = arith.addf %65, %60 : vector<8x128xf32>
    %67 = arith.addf %66, %63 : vector<8x128xf32>
    %cst_47 = arith.constant 6.000000e+00 : f32
    %68 = vector.broadcast %cst_47 : f32 to vector<8x128xf32>
    %69 = arith.divf %68, %67 : vector<8x128xf32>
    %70 = arith.mulf %51, %69 : vector<8x128xf32>
    %71 = math.exp %70 : vector<8x128xf32>
    %72 = arith.mulf %54, %69 : vector<8x128xf32>
    %73 = math.exp %72 : vector<8x128xf32>
    %74 = arith.mulf %57, %69 : vector<8x128xf32>
    %75 = math.exp %74 : vector<8x128xf32>
    %76 = arith.mulf %60, %69 : vector<8x128xf32>
    %77 = math.exp %76 : vector<8x128xf32>
    %78 = arith.mulf %63, %69 : vector<8x128xf32>
    %79 = math.exp %78 : vector<8x128xf32>
    %80 = arith.addf %71, %73 : vector<8x128xf32>
    %81 = arith.addf %80, %75 : vector<8x128xf32>
    %82 = arith.addf %81, %77 : vector<8x128xf32>
    %83 = arith.addf %82, %79 : vector<8x128xf32>
    %cst_48 = arith.constant 9.950000e-01 : f32
    %84 = vector.broadcast %cst_48 : f32 to vector<8x128xf32>
    %85 = arith.divf %84, %83 : vector<8x128xf32>
    %86 = arith.mulf %71, %85 : vector<8x128xf32>
    %cst_49 = arith.constant 1.000000e-03 : f32
    %87 = vector.broadcast %cst_49 : f32 to vector<8x128xf32>
    %88 = arith.addf %87, %86 : vector<8x128xf32>
    %89 = arith.mulf %73, %85 : vector<8x128xf32>
    %cst_50 = arith.constant 1.000000e-03 : f32
    %90 = vector.broadcast %cst_50 : f32 to vector<8x128xf32>
    %91 = arith.addf %90, %89 : vector<8x128xf32>
    %92 = arith.mulf %75, %85 : vector<8x128xf32>
    %cst_51 = arith.constant 1.000000e-03 : f32
    %93 = vector.broadcast %cst_51 : f32 to vector<8x128xf32>
    %94 = arith.addf %93, %92 : vector<8x128xf32>
    %95 = arith.mulf %77, %85 : vector<8x128xf32>
    %cst_52 = arith.constant 1.000000e-03 : f32
    %96 = vector.broadcast %cst_52 : f32 to vector<8x128xf32>
    %97 = arith.addf %96, %95 : vector<8x128xf32>
    %c40 = arith.constant 40 : index
    %c0_53 = arith.constant 0 : index
    %98 = vector.load %arg20[%c40, %c0_53] : memref<112x128xf32, #tpu.memory_space<vmem>>, vector<8x128xf32>
    %c48 = arith.constant 48 : index
    %c0_54 = arith.constant 0 : index
    %99 = vector.load %arg20[%c48, %c0_54] : memref<112x128xf32, #tpu.memory_space<vmem>>, vector<8x128xf32>
    %100 = arith.maximumf %98, %99 : vector<8x128xf32>
    %c56 = arith.constant 56 : index
    %c0_55 = arith.constant 0 : index
    %101 = vector.load %arg20[%c56, %c0_55] : memref<112x128xf32, #tpu.memory_space<vmem>>, vector<8x128xf32>
    %102 = arith.maximumf %100, %101 : vector<8x128xf32>
    %c64 = arith.constant 64 : index
    %c0_56 = arith.constant 0 : index
    %103 = vector.load %arg20[%c64, %c0_56] : memref<112x128xf32, #tpu.memory_space<vmem>>, vector<8x128xf32>
    %104 = arith.maximumf %102, %103 : vector<8x128xf32>
    %c72 = arith.constant 72 : index
    %c0_57 = arith.constant 0 : index
    %105 = vector.load %arg20[%c72, %c0_57] : memref<112x128xf32, #tpu.memory_space<vmem>>, vector<8x128xf32>
    %106 = arith.maximumf %104, %105 : vector<8x128xf32>
    %c40_58 = arith.constant 40 : index
    %c0_59 = arith.constant 0 : index
    %107 = vector.load %arg20[%c40_58, %c0_59] : memref<112x128xf32, #tpu.memory_space<vmem>>, vector<8x128xf32>
    %108 = arith.subf %107, %106 : vector<8x128xf32>
    %109 = math.exp %108 : vector<8x128xf32>
    %c48_60 = arith.constant 48 : index
    %c0_61 = arith.constant 0 : index
    %110 = vector.load %arg20[%c48_60, %c0_61] : memref<112x128xf32, #tpu.memory_space<vmem>>, vector<8x128xf32>
    %111 = arith.subf %110, %106 : vector<8x128xf32>
    %112 = math.exp %111 : vector<8x128xf32>
    %c56_62 = arith.constant 56 : index
    %c0_63 = arith.constant 0 : index
    %113 = vector.load %arg20[%c56_62, %c0_63] : memref<112x128xf32, #tpu.memory_space<vmem>>, vector<8x128xf32>
    %114 = arith.subf %113, %106 : vector<8x128xf32>
    %115 = math.exp %114 : vector<8x128xf32>
    %c64_64 = arith.constant 64 : index
    %c0_65 = arith.constant 0 : index
    %116 = vector.load %arg20[%c64_64, %c0_65] : memref<112x128xf32, #tpu.memory_space<vmem>>, vector<8x128xf32>
    %117 = arith.subf %116, %106 : vector<8x128xf32>
    %118 = math.exp %117 : vector<8x128xf32>
    %c72_66 = arith.constant 72 : index
    %c0_67 = arith.constant 0 : index
    %119 = vector.load %arg20[%c72_66, %c0_67] : memref<112x128xf32, #tpu.memory_space<vmem>>, vector<8x128xf32>
    %120 = arith.subf %119, %106 : vector<8x128xf32>
    %121 = math.exp %120 : vector<8x128xf32>
    %122 = arith.addf %109, %112 : vector<8x128xf32>
    %123 = arith.addf %122, %115 : vector<8x128xf32>
    %124 = arith.addf %123, %118 : vector<8x128xf32>
    %125 = arith.addf %124, %121 : vector<8x128xf32>
    %cst_68 = arith.constant 6.000000e+00 : f32
    %126 = vector.broadcast %cst_68 : f32 to vector<8x128xf32>
    %127 = arith.divf %126, %125 : vector<8x128xf32>
    %128 = arith.mulf %109, %127 : vector<8x128xf32>
    %129 = math.exp %128 : vector<8x128xf32>
    %130 = arith.mulf %112, %127 : vector<8x128xf32>
    %131 = math.exp %130 : vector<8x128xf32>
    %132 = arith.mulf %115, %127 : vector<8x128xf32>
    %133 = math.exp %132 : vector<8x128xf32>
    %134 = arith.mulf %118, %127 : vector<8x128xf32>
    %135 = math.exp %134 : vector<8x128xf32>
    %136 = arith.mulf %121, %127 : vector<8x128xf32>
    %137 = math.exp %136 : vector<8x128xf32>
    %138 = arith.addf %129, %131 : vector<8x128xf32>
    %139 = arith.addf %138, %133 : vector<8x128xf32>
    %140 = arith.addf %139, %135 : vector<8x128xf32>
    %141 = arith.addf %140, %137 : vector<8x128xf32>
    %cst_69 = arith.constant 9.950000e-01 : f32
    %142 = vector.broadcast %cst_69 : f32 to vector<8x128xf32>
    %143 = arith.divf %142, %141 : vector<8x128xf32>
    %144 = arith.mulf %129, %143 : vector<8x128xf32>
    %cst_70 = arith.constant 1.000000e-03 : f32
    %145 = vector.broadcast %cst_70 : f32 to vector<8x128xf32>
    %146 = arith.addf %145, %144 : vector<8x128xf32>
    %147 = arith.mulf %131, %143 : vector<8x128xf32>
    %cst_71 = arith.constant 1.000000e-03 : f32
    %148 = vector.broadcast %cst_71 : f32 to vector<8x128xf32>
    %149 = arith.addf %148, %147 : vector<8x128xf32>
    %150 = arith.mulf %133, %143 : vector<8x128xf32>
    %cst_72 = arith.constant 1.000000e-03 : f32
    %151 = vector.broadcast %cst_72 : f32 to vector<8x128xf32>
    %152 = arith.addf %151, %150 : vector<8x128xf32>
    %153 = arith.mulf %135, %143 : vector<8x128xf32>
    %cst_73 = arith.constant 1.000000e-03 : f32
    %154 = vector.broadcast %cst_73 : f32 to vector<8x128xf32>
    %155 = arith.addf %154, %153 : vector<8x128xf32>
    %cst_74 = arith.constant 1.000000e+00 : f32
    %156 = vector.broadcast %cst_74 : f32 to vector<8x128xf32>
    %cst_75 = arith.constant -3.000000e+00 : f32
    %157 = vector.broadcast %cst_75 : f32 to vector<8x128xf32>
    %cst_76 = arith.constant -3.000000e+00 : f32
    %158 = vector.broadcast %cst_76 : f32 to vector<8x128xf32>
    %cst_77 = arith.constant 6.000000e+00 : f32
    %159 = vector.broadcast %cst_77 : f32 to vector<8x128xf32>
    %160 = arith.mulf %159, %88 : vector<8x128xf32>
    %cst_78 = arith.constant 6.000000e+00 : f32
    %161 = vector.broadcast %cst_78 : f32 to vector<8x128xf32>
    %162 = arith.mulf %161, %146 : vector<8x128xf32>
    %c80 = arith.constant 80 : index
    %c0_79 = arith.constant 0 : index
    %163 = vector.load %arg20[%c80, %c0_79] : memref<112x128xf32, #tpu.memory_space<vmem>>, vector<8x128xf32>
    %cst_80 = arith.constant 0.000000e+00 : f32
    %164 = vector.broadcast %cst_80 : f32 to vector<8x128xf32>
    %165 = arith.maximumf %163, %164 : vector<8x128xf32>
    %166 = math.absf %163 : vector<8x128xf32>
    %cst_81 = arith.constant 0.000000e+00 : f32
    %167 = vector.broadcast %cst_81 : f32 to vector<8x128xf32>
    %168 = arith.subf %167, %166 : vector<8x128xf32>
    %169 = math.exp %168 : vector<8x128xf32>
    %cst_82 = arith.constant 1.000000e+00 : f32
    %170 = vector.broadcast %cst_82 : f32 to vector<8x128xf32>
    %171 = arith.addf %170, %169 : vector<8x128xf32>
    %172 = math.log %171 : vector<8x128xf32>
    %173 = arith.addf %165, %172 : vector<8x128xf32>
    %cst_83 = arith.constant 0.000000e+00 : f32
    %174 = vector.broadcast %cst_83 : f32 to vector<8x128xf32>
    %175 = arith.maximumf %173, %174 : vector<8x128xf32>
    %176 = math.absf %173 : vector<8x128xf32>
    %cst_84 = arith.constant 0.000000e+00 : f32
    %177 = vector.broadcast %cst_84 : f32 to vector<8x128xf32>
    %178 = arith.subf %177, %176 : vector<8x128xf32>
    %179 = math.exp %178 : vector<8x128xf32>
    %cst_85 = arith.constant 1.000000e+00 : f32
    %180 = vector.broadcast %cst_85 : f32 to vector<8x128xf32>
    %181 = arith.addf %180, %179 : vector<8x128xf32>
    %182 = math.log %181 : vector<8x128xf32>
    %183 = arith.addf %175, %182 : vector<8x128xf32>
    %cst_86 = arith.constant 1.000000e-03 : f32
    %184 = vector.broadcast %cst_86 : f32 to vector<8x128xf32>
    %185 = arith.addf %184, %183 : vector<8x128xf32>
    %186 = arith.addf %157, %160 : vector<8x128xf32>
    %187 = arith.addf %158, %162 : vector<8x128xf32>
    %cst_87 = arith.constant 6.000000e+00 : f32
    %188 = vector.broadcast %cst_87 : f32 to vector<8x128xf32>
    %189 = arith.mulf %188, %91 : vector<8x128xf32>
    %cst_88 = arith.constant 6.000000e+00 : f32
    %190 = vector.broadcast %cst_88 : f32 to vector<8x128xf32>
    %191 = arith.mulf %190, %149 : vector<8x128xf32>
    %c88 = arith.constant 88 : index
    %c0_89 = arith.constant 0 : index
    %192 = vector.load %arg20[%c88, %c0_89] : memref<112x128xf32, #tpu.memory_space<vmem>>, vector<8x128xf32>
    %cst_90 = arith.constant 0.000000e+00 : f32
    %193 = vector.broadcast %cst_90 : f32 to vector<8x128xf32>
    %194 = arith.maximumf %192, %193 : vector<8x128xf32>
    %195 = math.absf %192 : vector<8x128xf32>
    %cst_91 = arith.constant 0.000000e+00 : f32
    %196 = vector.broadcast %cst_91 : f32 to vector<8x128xf32>
    %197 = arith.subf %196, %195 : vector<8x128xf32>
    %198 = math.exp %197 : vector<8x128xf32>
    %cst_92 = arith.constant 1.000000e+00 : f32
    %199 = vector.broadcast %cst_92 : f32 to vector<8x128xf32>
    %200 = arith.addf %199, %198 : vector<8x128xf32>
    %201 = math.log %200 : vector<8x128xf32>
    %202 = arith.addf %194, %201 : vector<8x128xf32>
    %cst_93 = arith.constant 0.000000e+00 : f32
    %203 = vector.broadcast %cst_93 : f32 to vector<8x128xf32>
    %204 = arith.maximumf %202, %203 : vector<8x128xf32>
    %205 = math.absf %202 : vector<8x128xf32>
    %cst_94 = arith.constant 0.000000e+00 : f32
    %206 = vector.broadcast %cst_94 : f32 to vector<8x128xf32>
    %207 = arith.subf %206, %205 : vector<8x128xf32>
    %208 = math.exp %207 : vector<8x128xf32>
    %cst_95 = arith.constant 1.000000e+00 : f32
    %209 = vector.broadcast %cst_95 : f32 to vector<8x128xf32>
    %210 = arith.addf %209, %208 : vector<8x128xf32>
    %211 = math.log %210 : vector<8x128xf32>
    %212 = arith.addf %204, %211 : vector<8x128xf32>
    %cst_96 = arith.constant 1.000000e-03 : f32
    %213 = vector.broadcast %cst_96 : f32 to vector<8x128xf32>
    %214 = arith.addf %213, %212 : vector<8x128xf32>
    %215 = arith.cmpf oge, %39, %186 : vector<8x128xf32>
    %216 = arith.select %215, %186, %157 : vector<8x128xi1>, vector<8x128xf32>
    %217 = arith.select %215, %187, %158 : vector<8x128xi1>, vector<8x128xf32>
    %218 = arith.select %215, %189, %160 : vector<8x128xi1>, vector<8x128xf32>
    %219 = arith.select %215, %191, %162 : vector<8x128xi1>, vector<8x128xf32>
    %220 = arith.select %215, %185, %156 : vector<8x128xi1>, vector<8x128xf32>
    %221 = arith.select %215, %214, %185 : vector<8x128xi1>, vector<8x128xf32>
    %222 = arith.addf %186, %189 : vector<8x128xf32>
    %223 = arith.addf %187, %191 : vector<8x128xf32>
    %cst_97 = arith.constant 6.000000e+00 : f32
    %224 = vector.broadcast %cst_97 : f32 to vector<8x128xf32>
    %225 = arith.mulf %224, %94 : vector<8x128xf32>
    %cst_98 = arith.constant 6.000000e+00 : f32
    %226 = vector.broadcast %cst_98 : f32 to vector<8x128xf32>
    %227 = arith.mulf %226, %152 : vector<8x128xf32>
    %c96 = arith.constant 96 : index
    %c0_99 = arith.constant 0 : index
    %228 = vector.load %arg20[%c96, %c0_99] : memref<112x128xf32, #tpu.memory_space<vmem>>, vector<8x128xf32>
    %cst_100 = arith.constant 0.000000e+00 : f32
    %229 = vector.broadcast %cst_100 : f32 to vector<8x128xf32>
    %230 = arith.maximumf %228, %229 : vector<8x128xf32>
    %231 = math.absf %228 : vector<8x128xf32>
    %cst_101 = arith.constant 0.000000e+00 : f32
    %232 = vector.broadcast %cst_101 : f32 to vector<8x128xf32>
    %233 = arith.subf %232, %231 : vector<8x128xf32>
    %234 = math.exp %233 : vector<8x128xf32>
    %cst_102 = arith.constant 1.000000e+00 : f32
    %235 = vector.broadcast %cst_102 : f32 to vector<8x128xf32>
    %236 = arith.addf %235, %234 : vector<8x128xf32>
    %237 = math.log %236 : vector<8x128xf32>
    %238 = arith.addf %230, %237 : vector<8x128xf32>
    %cst_103 = arith.constant 0.000000e+00 : f32
    %239 = vector.broadcast %cst_103 : f32 to vector<8x128xf32>
    %240 = arith.maximumf %238, %239 : vector<8x128xf32>
    %241 = math.absf %238 : vector<8x128xf32>
    %cst_104 = arith.constant 0.000000e+00 : f32
    %242 = vector.broadcast %cst_104 : f32 to vector<8x128xf32>
    %243 = arith.subf %242, %241 : vector<8x128xf32>
    %244 = math.exp %243 : vector<8x128xf32>
    %cst_105 = arith.constant 1.000000e+00 : f32
    %245 = vector.broadcast %cst_105 : f32 to vector<8x128xf32>
    %246 = arith.addf %245, %244 : vector<8x128xf32>
    %247 = math.log %246 : vector<8x128xf32>
    %248 = arith.addf %240, %247 : vector<8x128xf32>
    %cst_106 = arith.constant 1.000000e-03 : f32
    %249 = vector.broadcast %cst_106 : f32 to vector<8x128xf32>
    %250 = arith.addf %249, %248 : vector<8x128xf32>
    %251 = arith.cmpf oge, %39, %222 : vector<8x128xf32>
    %252 = arith.select %251, %222, %216 : vector<8x128xi1>, vector<8x128xf32>
    %253 = arith.select %251, %223, %217 : vector<8x128xi1>, vector<8x128xf32>
    %254 = arith.select %251, %225, %218 : vector<8x128xi1>, vector<8x128xf32>
    %255 = arith.select %251, %227, %219 : vector<8x128xi1>, vector<8x128xf32>
    %256 = arith.select %251, %214, %220 : vector<8x128xi1>, vector<8x128xf32>
    %257 = arith.select %251, %250, %221 : vector<8x128xi1>, vector<8x128xf32>
    %258 = arith.addf %222, %225 : vector<8x128xf32>
    %259 = arith.addf %223, %227 : vector<8x128xf32>
    %cst_107 = arith.constant 6.000000e+00 : f32
    %260 = vector.broadcast %cst_107 : f32 to vector<8x128xf32>
    %261 = arith.mulf %260, %97 : vector<8x128xf32>
    %cst_108 = arith.constant 6.000000e+00 : f32
    %262 = vector.broadcast %cst_108 : f32 to vector<8x128xf32>
    %263 = arith.mulf %262, %155 : vector<8x128xf32>
    %c104 = arith.constant 104 : index
    %c0_109 = arith.constant 0 : index
    %264 = vector.load %arg20[%c104, %c0_109] : memref<112x128xf32, #tpu.memory_space<vmem>>, vector<8x128xf32>
    %cst_110 = arith.constant 0.000000e+00 : f32
    %265 = vector.broadcast %cst_110 : f32 to vector<8x128xf32>
    %266 = arith.maximumf %264, %265 : vector<8x128xf32>
    %267 = math.absf %264 : vector<8x128xf32>
    %cst_111 = arith.constant 0.000000e+00 : f32
    %268 = vector.broadcast %cst_111 : f32 to vector<8x128xf32>
    %269 = arith.subf %268, %267 : vector<8x128xf32>
    %270 = math.exp %269 : vector<8x128xf32>
    %cst_112 = arith.constant 1.000000e+00 : f32
    %271 = vector.broadcast %cst_112 : f32 to vector<8x128xf32>
    %272 = arith.addf %271, %270 : vector<8x128xf32>
    %273 = math.log %272 : vector<8x128xf32>
    %274 = arith.addf %266, %273 : vector<8x128xf32>
    %cst_113 = arith.constant 0.000000e+00 : f32
    %275 = vector.broadcast %cst_113 : f32 to vector<8x128xf32>
    %276 = arith.maximumf %274, %275 : vector<8x128xf32>
    %277 = math.absf %274 : vector<8x128xf32>
    %cst_114 = arith.constant 0.000000e+00 : f32
    %278 = vector.broadcast %cst_114 : f32 to vector<8x128xf32>
    %279 = arith.subf %278, %277 : vector<8x128xf32>
    %280 = math.exp %279 : vector<8x128xf32>
    %cst_115 = arith.constant 1.000000e+00 : f32
    %281 = vector.broadcast %cst_115 : f32 to vector<8x128xf32>
    %282 = arith.addf %281, %280 : vector<8x128xf32>
    %283 = math.log %282 : vector<8x128xf32>
    %284 = arith.addf %276, %283 : vector<8x128xf32>
    %cst_116 = arith.constant 1.000000e-03 : f32
    %285 = vector.broadcast %cst_116 : f32 to vector<8x128xf32>
    %286 = arith.addf %285, %284 : vector<8x128xf32>
    %287 = arith.cmpf oge, %39, %258 : vector<8x128xf32>
    %288 = arith.select %287, %258, %252 : vector<8x128xi1>, vector<8x128xf32>
    %289 = arith.select %287, %259, %253 : vector<8x128xi1>, vector<8x128xf32>
    %290 = arith.select %287, %261, %254 : vector<8x128xi1>, vector<8x128xf32>
    %291 = arith.select %287, %263, %255 : vector<8x128xi1>, vector<8x128xf32>
    %292 = arith.select %287, %250, %256 : vector<8x128xi1>, vector<8x128xf32>
    %293 = arith.select %287, %286, %257 : vector<8x128xi1>, vector<8x128xf32>
    %294 = arith.addf %258, %261 : vector<8x128xf32>
    %295 = arith.addf %259, %263 : vector<8x128xf32>
    %cst_117 = arith.constant 3.000000e+00 : f32
    %296 = vector.broadcast %cst_117 : f32 to vector<8x128xf32>
    %297 = arith.subf %296, %294 : vector<8x128xf32>
    %cst_118 = arith.constant 3.000000e+00 : f32
    %298 = vector.broadcast %cst_118 : f32 to vector<8x128xf32>
    %299 = arith.subf %298, %295 : vector<8x128xf32>
    %300 = arith.cmpf oge, %39, %294 : vector<8x128xf32>
    %301 = arith.select %300, %294, %288 : vector<8x128xi1>, vector<8x128xf32>
    %302 = arith.select %300, %295, %289 : vector<8x128xi1>, vector<8x128xf32>
    %303 = arith.select %300, %297, %290 : vector<8x128xi1>, vector<8x128xf32>
    %304 = arith.select %300, %299, %291 : vector<8x128xi1>, vector<8x128xf32>
    %305 = arith.select %300, %286, %292 : vector<8x128xi1>, vector<8x128xf32>
    %306 = arith.select %300, %156, %293 : vector<8x128xi1>, vector<8x128xf32>
    %307 = arith.subf %39, %301 : vector<8x128xf32>
    %308 = arith.divf %307, %303 : vector<8x128xf32>
    %cst_119 = arith.constant 0.000000e+00 : f32
    %cst_120 = arith.constant 1.000000e+00 : f32
    %309 = vector.broadcast %cst_119 : f32 to vector<8x128xf32>
    %310 = arith.maximumf %309, %308 : vector<8x128xf32>
    %311 = vector.broadcast %cst_120 : f32 to vector<8x128xf32>
    %312 = arith.minimumf %311, %310 : vector<8x128xf32>
    %313 = arith.divf %304, %303 : vector<8x128xf32>
    %cst_121 = arith.constant 1.000000e+00 : f32
    %314 = vector.broadcast %cst_121 : f32 to vector<8x128xf32>
    %315 = arith.subf %314, %312 : vector<8x128xf32>
    %316 = arith.mulf %312, %315 : vector<8x128xf32>
    %317 = arith.mulf %312, %312 : vector<8x128xf32>
    %318 = arith.mulf %313, %317 : vector<8x128xf32>
    %319 = arith.mulf %305, %316 : vector<8x128xf32>
    %320 = arith.addf %318, %319 : vector<8x128xf32>
    %321 = arith.mulf %304, %320 : vector<8x128xf32>
    %322 = arith.addf %305, %306 : vector<8x128xf32>
    %cst_122 = arith.constant 2.000000e+00 : f32
    %323 = vector.broadcast %cst_122 : f32 to vector<8x128xf32>
    %324 = arith.mulf %323, %313 : vector<8x128xf32>
    %325 = arith.subf %322, %324 : vector<8x128xf32>
    %326 = arith.mulf %325, %316 : vector<8x128xf32>
    %327 = arith.addf %313, %326 : vector<8x128xf32>
    %328 = arith.divf %321, %327 : vector<8x128xf32>
    %329 = arith.addf %302, %328 : vector<8x128xf32>
    %330 = arith.mulf %313, %313 : vector<8x128xf32>
    %331 = arith.mulf %306, %317 : vector<8x128xf32>
    %cst_123 = arith.constant 2.000000e+00 : f32
    %332 = vector.broadcast %cst_123 : f32 to vector<8x128xf32>
    %333 = arith.mulf %332, %313 : vector<8x128xf32>
    %334 = arith.mulf %333, %316 : vector<8x128xf32>
    %335 = arith.addf %331, %334 : vector<8x128xf32>
    %cst_124 = arith.constant 1.000000e+00 : f32
    %336 = vector.broadcast %cst_124 : f32 to vector<8x128xf32>
    %337 = arith.subf %336, %312 : vector<8x128xf32>
    %338 = arith.mulf %305, %337 : vector<8x128xf32>
    %cst_125 = arith.constant 1.000000e+00 : f32
    %339 = vector.broadcast %cst_125 : f32 to vector<8x128xf32>
    %340 = arith.subf %339, %312 : vector<8x128xf32>
    %341 = arith.mulf %338, %340 : vector<8x128xf32>
    %342 = arith.addf %335, %341 : vector<8x128xf32>
    %343 = arith.mulf %330, %342 : vector<8x128xf32>
    %344 = math.log %343 : vector<8x128xf32>
    %345 = math.log %327 : vector<8x128xf32>
    %cst_126 = arith.constant 2.000000e+00 : f32
    %346 = vector.broadcast %cst_126 : f32 to vector<8x128xf32>
    %347 = arith.mulf %346, %345 : vector<8x128xf32>
    %348 = arith.subf %344, %347 : vector<8x128xf32>
    %cst_127 = arith.constant -3.000000e+00 : f32
    %349 = vector.broadcast %cst_127 : f32 to vector<8x128xf32>
    %350 = arith.cmpf oge, %1, %349 : vector<8x128xf32>
    %cst_128 = arith.constant 3.000000e+00 : f32
    %351 = vector.broadcast %cst_128 : f32 to vector<8x128xf32>
    %352 = arith.cmpf ole, %1, %351 : vector<8x128xf32>
    %353 = arith.andi %350, %352 : vector<8x128xi1>
    %354 = arith.select %353, %329, %1 : vector<8x128xi1>, vector<8x128xf32>
    %cst_129 = arith.constant 0.000000e+00 : f32
    %355 = vector.broadcast %cst_129 : f32 to vector<8x128xf32>
    %356 = arith.select %353, %348, %355 : vector<8x128xi1>, vector<8x128xf32>
    %c0_130 = arith.constant 0 : index
    %c0_131 = arith.constant 0 : index
    %357 = vector.load %arg11[%c0_130, %c0_131] : memref<128x8xbf16, #tpu.memory_space<vmem>>, vector<128x8xbf16>
    %358 = arith.truncf %354 : vector<8x128xf32> to vector<8x128xbf16>
    %cst_132 = arith.constant dense<0.000000e+00> : vector<128x128xf32>
    %359 = tpu.matmul %357, %358, %cst_132 {dimension_numbers = #tpu.dot_dimension_numbers<[1], [0], [0], [1], [0, 0, 1, 1], [], []>} : vector<128x8xbf16>, vector<8x128xbf16>, vector<128x128xf32> -> vector<128x128xf32>
    %c0_133 = arith.constant 0 : index
    %c0_134 = arith.constant 0 : index
    %360 = vector.load %arg12[%c0_133, %c0_134] : memref<128x1xf32, #tpu.memory_space<vmem>>, vector<128x1xf32>
    %361 = vector.broadcast %360 : vector<128x1xf32> to vector<128x128xf32>
    %362 = arith.addf %359, %361 : vector<128x128xf32>
    %cst_135 = arith.constant 0.000000e+00 : f32
    %363 = vector.broadcast %cst_135 : f32 to vector<128x128xf32>
    %364 = arith.maximumf %362, %363 : vector<128x128xf32>
    %c0_136 = arith.constant 0 : index
    %c0_137 = arith.constant 0 : index
    %365 = vector.load %arg13[%c0_136, %c0_137] : memref<128x128xbf16, #tpu.memory_space<vmem>>, vector<128x128xbf16>
    %366 = arith.truncf %364 : vector<128x128xf32> to vector<128x128xbf16>
    %cst_138 = arith.constant dense<0.000000e+00> : vector<128x128xf32>
    %367 = tpu.matmul %365, %366, %cst_138 {dimension_numbers = #tpu.dot_dimension_numbers<[1], [0], [0], [1], [0, 0, 1, 1], [], []>} : vector<128x128xbf16>, vector<128x128xbf16>, vector<128x128xf32> -> vector<128x128xf32>
    %c0_139 = arith.constant 0 : index
    %c0_140 = arith.constant 0 : index
    %368 = vector.load %arg14[%c0_139, %c0_140] : memref<128x1xf32, #tpu.memory_space<vmem>>, vector<128x1xf32>
    %369 = vector.broadcast %368 : vector<128x1xf32> to vector<128x128xf32>
    %370 = arith.addf %367, %369 : vector<128x128xf32>
    %cst_141 = arith.constant 0.000000e+00 : f32
    %371 = vector.broadcast %cst_141 : f32 to vector<128x128xf32>
    %372 = arith.maximumf %370, %371 : vector<128x128xf32>
    %373 = arith.addf %364, %372 : vector<128x128xf32>
    %c0_142 = arith.constant 0 : index
    %c0_143 = arith.constant 0 : index
    %374 = vector.load %arg15[%c0_142, %c0_143] : memref<128x128xbf16, #tpu.memory_space<vmem>>, vector<128x128xbf16>
    %375 = arith.truncf %373 : vector<128x128xf32> to vector<128x128xbf16>
    %cst_144 = arith.constant dense<0.000000e+00> : vector<128x128xf32>
    %376 = tpu.matmul %374, %375, %cst_144 {dimension_numbers = #tpu.dot_dimension_numbers<[1], [0], [0], [1], [0, 0, 1, 1], [], []>} : vector<128x128xbf16>, vector<128x128xbf16>, vector<128x128xf32> -> vector<128x128xf32>
    %c0_145 = arith.constant 0 : index
    %c0_146 = arith.constant 0 : index
    %377 = vector.load %arg16[%c0_145, %c0_146] : memref<128x1xf32, #tpu.memory_space<vmem>>, vector<128x1xf32>
    %378 = vector.broadcast %377 : vector<128x1xf32> to vector<128x128xf32>
    %379 = arith.addf %376, %378 : vector<128x128xf32>
    %cst_147 = arith.constant 0.000000e+00 : f32
    %380 = vector.broadcast %cst_147 : f32 to vector<128x128xf32>
    %381 = arith.maximumf %379, %380 : vector<128x128xf32>
    %382 = arith.addf %373, %381 : vector<128x128xf32>
    %c0_148 = arith.constant 0 : index
    %c0_149 = arith.constant 0 : index
    %383 = vector.load %arg17[%c0_148, %c0_149] : memref<112x128xbf16, #tpu.memory_space<vmem>>, vector<112x128xbf16>
    %384 = arith.truncf %382 : vector<128x128xf32> to vector<128x128xbf16>
    %cst_150 = arith.constant dense<0.000000e+00> : vector<112x128xf32>
    %385 = tpu.matmul %383, %384, %cst_150 {dimension_numbers = #tpu.dot_dimension_numbers<[1], [0], [0], [1], [0, 0, 1, 1], [], []>} : vector<112x128xbf16>, vector<128x128xbf16>, vector<112x128xf32> -> vector<112x128xf32>
    %c0_151 = arith.constant 0 : index
    %c0_152 = arith.constant 0 : index
    %386 = vector.load %arg18[%c0_151, %c0_152] : memref<112x1xf32, #tpu.memory_space<vmem>>, vector<112x1xf32>
    %387 = vector.broadcast %386 : vector<112x1xf32> to vector<112x128xf32>
    %388 = arith.addf %385, %387 : vector<112x128xf32>
    %c0_153 = arith.constant 0 : index
    %c0_154 = arith.constant 0 : index
    %389 = vector.load %arg20[%c0_153, %c0_154] : memref<112x128xf32, #tpu.memory_space<vmem>>, vector<112x128xf32>
    tpu.vector_store %arg20[%c0_153, %c0_154], %388 {strides = array<i32>} : memref<112x128xf32, #tpu.memory_space<vmem>>, vector<112x128xf32>,
    %cst_155 = arith.constant -3.000000e+00 : f32
    %cst_156 = arith.constant 3.000000e+00 : f32
    %390 = vector.broadcast %cst_155 : f32 to vector<8x128xf32>
    %391 = arith.maximumf %390, %0 : vector<8x128xf32>
    %392 = vector.broadcast %cst_156 : f32 to vector<8x128xf32>
    %393 = arith.minimumf %392, %391 : vector<8x128xf32>
    %c0_157 = arith.constant 0 : index
    %c0_158 = arith.constant 0 : index
    %394 = vector.load %arg20[%c0_157, %c0_158] : memref<112x128xf32, #tpu.memory_space<vmem>>, vector<8x128xf32>
    %c8_159 = arith.constant 8 : index
    %c0_160 = arith.constant 0 : index
    %395 = vector.load %arg20[%c8_159, %c0_160] : memref<112x128xf32, #tpu.memory_space<vmem>>, vector<8x128xf32>
    %396 = arith.maximumf %394, %395 : vector<8x128xf32>
    %c16_161 = arith.constant 16 : index
    %c0_162 = arith.constant 0 : index
    %397 = vector.load %arg20[%c16_161, %c0_162] : memref<112x128xf32, #tpu.memory_space<vmem>>, vector<8x128xf32>
    %398 = arith.maximumf %396, %397 : vector<8x128xf32>
    %c24_163 = arith.constant 24 : index
    %c0_164 = arith.constant 0 : index
    %399 = vector.load %arg20[%c24_163, %c0_164] : memref<112x128xf32, #tpu.memory_space<vmem>>, vector<8x128xf32>
    %400 = arith.maximumf %398, %399 : vector<8x128xf32>
    %c32_165 = arith.constant 32 : index
    %c0_166 = arith.constant 0 : index
    %401 = vector.load %arg20[%c32_165, %c0_166] : memref<112x128xf32, #tpu.memory_space<vmem>>, vector<8x128xf32>
    %402 = arith.maximumf %400, %401 : vector<8x128xf32>
    %c0_167 = arith.constant 0 : index
    %c0_168 = arith.constant 0 : index
    %403 = vector.load %arg20[%c0_167, %c0_168] : memref<112x128xf32, #tpu.memory_space<vmem>>, vector<8x128xf32>
    %404 = arith.subf %403, %402 : vector<8x128xf32>
    %405 = math.exp %404 : vector<8x128xf32>
    %c8_169 = arith.constant 8 : index
    %c0_170 = arith.constant 0 : index
    %406 = vector.load %arg20[%c8_169, %c0_170] : memref<112x128xf32, #tpu.memory_space<vmem>>, vector<8x128xf32>
    %407 = arith.subf %406, %402 : vector<8x128xf32>
    %408 = math.exp %407 : vector<8x128xf32>
    %c16_171 = arith.constant 16 : index
    %c0_172 = arith.constant 0 : index
    %409 = vector.load %arg20[%c16_171, %c0_172] : memref<112x128xf32, #tpu.memory_space<vmem>>, vector<8x128xf32>
    %410 = arith.subf %409, %402 : vector<8x128xf32>
    %411 = math.exp %410 : vector<8x128xf32>
    %c24_173 = arith.constant 24 : index
    %c0_174 = arith.constant 0 : index
    %412 = vector.load %arg20[%c24_173, %c0_174] : memref<112x128xf32, #tpu.memory_space<vmem>>, vector<8x128xf32>
    %413 = arith.subf %412, %402 : vector<8x128xf32>
    %414 = math.exp %413 : vector<8x128xf32>
    %c32_175 = arith.constant 32 : index
    %c0_176 = arith.constant 0 : index
    %415 = vector.load %arg20[%c32_175, %c0_176] : memref<112x128xf32, #tpu.memory_space<vmem>>, vector<8x128xf32>
    %416 = arith.subf %415, %402 : vector<8x128xf32>
    %417 = math.exp %416 : vector<8x128xf32>
    %418 = arith.addf %405, %408 : vector<8x128xf32>
    %419 = arith.addf %418, %411 : vector<8x128xf32>
    %420 = arith.addf %419, %414 : vector<8x128xf32>
    %421 = arith.addf %420, %417 : vector<8x128xf32>
    %cst_177 = arith.constant 6.000000e+00 : f32
    %422 = vector.broadcast %cst_177 : f32 to vector<8x128xf32>
    %423 = arith.divf %422, %421 : vector<8x128xf32>
    %424 = arith.mulf %405, %423 : vector<8x128xf32>
    %425 = math.exp %424 : vector<8x128xf32>
    %426 = arith.mulf %408, %423 : vector<8x128xf32>
    %427 = math.exp %426 : vector<8x128xf32>
    %428 = arith.mulf %411, %423 : vector<8x128xf32>
    %429 = math.exp %428 : vector<8x128xf32>
    %430 = arith.mulf %414, %423 : vector<8x128xf32>
    %431 = math.exp %430 : vector<8x128xf32>
    %432 = arith.mulf %417, %423 : vector<8x128xf32>
    %433 = math.exp %432 : vector<8x128xf32>
    %434 = arith.addf %425, %427 : vector<8x128xf32>
    %435 = arith.addf %434, %429 : vector<8x128xf32>
    %436 = arith.addf %435, %431 : vector<8x128xf32>
    %437 = arith.addf %436, %433 : vector<8x128xf32>
    %cst_178 = arith.constant 9.950000e-01 : f32
    %438 = vector.broadcast %cst_178 : f32 to vector<8x128xf32>
    %439 = arith.divf %438, %437 : vector<8x128xf32>
    %440 = arith.mulf %425, %439 : vector<8x128xf32>
    %cst_179 = arith.constant 1.000000e-03 : f32
    %441 = vector.broadcast %cst_179 : f32 to vector<8x128xf32>
    %442 = arith.addf %441, %440 : vector<8x128xf32>
    %443 = arith.mulf %427, %439 : vector<8x128xf32>
    %cst_180 = arith.constant 1.000000e-03 : f32
    %444 = vector.broadcast %cst_180 : f32 to vector<8x128xf32>
    %445 = arith.addf %444, %443 : vector<8x128xf32>
    %446 = arith.mulf %429, %439 : vector<8x128xf32>
    %cst_181 = arith.constant 1.000000e-03 : f32
    %447 = vector.broadcast %cst_181 : f32 to vector<8x128xf32>
    %448 = arith.addf %447, %446 : vector<8x128xf32>
    %449 = arith.mulf %431, %439 : vector<8x128xf32>
    %cst_182 = arith.constant 1.000000e-03 : f32
    %450 = vector.broadcast %cst_182 : f32 to vector<8x128xf32>
    %451 = arith.addf %450, %449 : vector<8x128xf32>
    %c40_183 = arith.constant 40 : index
    %c0_184 = arith.constant 0 : index
    %452 = vector.load %arg20[%c40_183, %c0_184] : memref<112x128xf32, #tpu.memory_space<vmem>>, vector<8x128xf32>
    %c48_185 = arith.constant 48 : index
    %c0_186 = arith.constant 0 : index
    %453 = vector.load %arg20[%c48_185, %c0_186] : memref<112x128xf32, #tpu.memory_space<vmem>>, vector<8x128xf32>
    %454 = arith.maximumf %452, %453 : vector<8x128xf32>
    %c56_187 = arith.constant 56 : index
    %c0_188 = arith.constant 0 : index
    %455 = vector.load %arg20[%c56_187, %c0_188] : memref<112x128xf32, #tpu.memory_space<vmem>>, vector<8x128xf32>
    %456 = arith.maximumf %454, %455 : vector<8x128xf32>
    %c64_189 = arith.constant 64 : index
    %c0_190 = arith.constant 0 : index
    %457 = vector.load %arg20[%c64_189, %c0_190] : memref<112x128xf32, #tpu.memory_space<vmem>>, vector<8x128xf32>
    %458 = arith.maximumf %456, %457 : vector<8x128xf32>
    %c72_191 = arith.constant 72 : index
    %c0_192 = arith.constant 0 : index
    %459 = vector.load %arg20[%c72_191, %c0_192] : memref<112x128xf32, #tpu.memory_space<vmem>>, vector<8x128xf32>
    %460 = arith.maximumf %458, %459 : vector<8x128xf32>
    %c40_193 = arith.constant 40 : index
    %c0_194 = arith.constant 0 : index
    %461 = vector.load %arg20[%c40_193, %c0_194] : memref<112x128xf32, #tpu.memory_space<vmem>>, vector<8x128xf32>
    %462 = arith.subf %461, %460 : vector<8x128xf32>
    %463 = math.exp %462 : vector<8x128xf32>
    %c48_195 = arith.constant 48 : index
    %c0_196 = arith.constant 0 : index
    %464 = vector.load %arg20[%c48_195, %c0_196] : memref<112x128xf32, #tpu.memory_space<vmem>>, vector<8x128xf32>
    %465 = arith.subf %464, %460 : vector<8x128xf32>
    %466 = math.exp %465 : vector<8x128xf32>
    %c56_197 = arith.constant 56 : index
    %c0_198 = arith.constant 0 : index
    %467 = vector.load %arg20[%c56_197, %c0_198] : memref<112x128xf32, #tpu.memory_space<vmem>>, vector<8x128xf32>
    %468 = arith.subf %467, %460 : vector<8x128xf32>
    %469 = math.exp %468 : vector<8x128xf32>
    %c64_199 = arith.constant 64 : index
    %c0_200 = arith.constant 0 : index
    %470 = vector.load %arg20[%c64_199, %c0_200] : memref<112x128xf32, #tpu.memory_space<vmem>>, vector<8x128xf32>
    %471 = arith.subf %470, %460 : vector<8x128xf32>
    %472 = math.exp %471 : vector<8x128xf32>
    %c72_201 = arith.constant 72 : index
    %c0_202 = arith.constant 0 : index
    %473 = vector.load %arg20[%c72_201, %c0_202] : memref<112x128xf32, #tpu.memory_space<vmem>>, vector<8x128xf32>
    %474 = arith.subf %473, %460 : vector<8x128xf32>
    %475 = math.exp %474 : vector<8x128xf32>
    %476 = arith.addf %463, %466 : vector<8x128xf32>
    %477 = arith.addf %476, %469 : vector<8x128xf32>
    %478 = arith.addf %477, %472 : vector<8x128xf32>
    %479 = arith.addf %478, %475 : vector<8x128xf32>
    %cst_203 = arith.constant 6.000000e+00 : f32
    %480 = vector.broadcast %cst_203 : f32 to vector<8x128xf32>
    %481 = arith.divf %480, %479 : vector<8x128xf32>
    %482 = arith.mulf %463, %481 : vector<8x128xf32>
    %483 = math.exp %482 : vector<8x128xf32>
    %484 = arith.mulf %466, %481 : vector<8x128xf32>
    %485 = math.exp %484 : vector<8x128xf32>
    %486 = arith.mulf %469, %481 : vector<8x128xf32>
    %487 = math.exp %486 : vector<8x128xf32>
    %488 = arith.mulf %472, %481 : vector<8x128xf32>
    %489 = math.exp %488 : vector<8x128xf32>
    %490 = arith.mulf %475, %481 : vector<8x128xf32>
    %491 = math.exp %490 : vector<8x128xf32>
    %492 = arith.addf %483, %485 : vector<8x128xf32>
    %493 = arith.addf %492, %487 : vector<8x128xf32>
    %494 = arith.addf %493, %489 : vector<8x128xf32>
    %495 = arith.addf %494, %491 : vector<8x128xf32>
    %cst_204 = arith.constant 9.950000e-01 : f32
    %496 = vector.broadcast %cst_204 : f32 to vector<8x128xf32>
    %497 = arith.divf %496, %495 : vector<8x128xf32>
    %498 = arith.mulf %483, %497 : vector<8x128xf32>
    %cst_205 = arith.constant 1.000000e-03 : f32
    %499 = vector.broadcast %cst_205 : f32 to vector<8x128xf32>
    %500 = arith.addf %499, %498 : vector<8x128xf32>
    %501 = arith.mulf %485, %497 : vector<8x128xf32>
    %cst_206 = arith.constant 1.000000e-03 : f32
    %502 = vector.broadcast %cst_206 : f32 to vector<8x128xf32>
    %503 = arith.addf %502, %501 : vector<8x128xf32>
    %504 = arith.mulf %487, %497 : vector<8x128xf32>
    %cst_207 = arith.constant 1.000000e-03 : f32
    %505 = vector.broadcast %cst_207 : f32 to vector<8x128xf32>
    %506 = arith.addf %505, %504 : vector<8x128xf32>
    %507 = arith.mulf %489, %497 : vector<8x128xf32>
    %cst_208 = arith.constant 1.000000e-03 : f32
    %508 = vector.broadcast %cst_208 : f32 to vector<8x128xf32>
    %509 = arith.addf %508, %507 : vector<8x128xf32>
    %cst_209 = arith.constant 1.000000e+00 : f32
    %510 = vector.broadcast %cst_209 : f32 to vector<8x128xf32>
    %cst_210 = arith.constant -3.000000e+00 : f32
    %511 = vector.broadcast %cst_210 : f32 to vector<8x128xf32>
    %cst_211 = arith.constant -3.000000e+00 : f32
    %512 = vector.broadcast %cst_211 : f32 to vector<8x128xf32>
    %cst_212 = arith.constant 6.000000e+00 : f32
    %513 = vector.broadcast %cst_212 : f32 to vector<8x128xf32>
    %514 = arith.mulf %513, %442 : vector<8x128xf32>
    %cst_213 = arith.constant 6.000000e+00 : f32
    %515 = vector.broadcast %cst_213 : f32 to vector<8x128xf32>
    %516 = arith.mulf %515, %500 : vector<8x128xf32>
    %c80_214 = arith.constant 80 : index
    %c0_215 = arith.constant 0 : index
    %517 = vector.load %arg20[%c80_214, %c0_215] : memref<112x128xf32, #tpu.memory_space<vmem>>, vector<8x128xf32>
    %cst_216 = arith.constant 0.000000e+00 : f32
    %518 = vector.broadcast %cst_216 : f32 to vector<8x128xf32>
    %519 = arith.maximumf %517, %518 : vector<8x128xf32>
    %520 = math.absf %517 : vector<8x128xf32>
    %cst_217 = arith.constant 0.000000e+00 : f32
    %521 = vector.broadcast %cst_217 : f32 to vector<8x128xf32>
    %522 = arith.subf %521, %520 : vector<8x128xf32>
    %523 = math.exp %522 : vector<8x128xf32>
    %cst_218 = arith.constant 1.000000e+00 : f32
    %524 = vector.broadcast %cst_218 : f32 to vector<8x128xf32>
    %525 = arith.addf %524, %523 : vector<8x128xf32>
    %526 = math.log %525 : vector<8x128xf32>
    %527 = arith.addf %519, %526 : vector<8x128xf32>
    %cst_219 = arith.constant 0.000000e+00 : f32
    %528 = vector.broadcast %cst_219 : f32 to vector<8x128xf32>
    %529 = arith.maximumf %527, %528 : vector<8x128xf32>
    %530 = math.absf %527 : vector<8x128xf32>
    %cst_220 = arith.constant 0.000000e+00 : f32
    %531 = vector.broadcast %cst_220 : f32 to vector<8x128xf32>
    %532 = arith.subf %531, %530 : vector<8x128xf32>
    %533 = math.exp %532 : vector<8x128xf32>
    %cst_221 = arith.constant 1.000000e+00 : f32
    %534 = vector.broadcast %cst_221 : f32 to vector<8x128xf32>
    %535 = arith.addf %534, %533 : vector<8x128xf32>
    %536 = math.log %535 : vector<8x128xf32>
    %537 = arith.addf %529, %536 : vector<8x128xf32>
    %cst_222 = arith.constant 1.000000e-03 : f32
    %538 = vector.broadcast %cst_222 : f32 to vector<8x128xf32>
    %539 = arith.addf %538, %537 : vector<8x128xf32>
    %540 = arith.addf %511, %514 : vector<8x128xf32>
    %541 = arith.addf %512, %516 : vector<8x128xf32>
    %cst_223 = arith.constant 6.000000e+00 : f32
    %542 = vector.broadcast %cst_223 : f32 to vector<8x128xf32>
    %543 = arith.mulf %542, %445 : vector<8x128xf32>
    %cst_224 = arith.constant 6.000000e+00 : f32
    %544 = vector.broadcast %cst_224 : f32 to vector<8x128xf32>
    %545 = arith.mulf %544, %503 : vector<8x128xf32>
    %c88_225 = arith.constant 88 : index
    %c0_226 = arith.constant 0 : index
    %546 = vector.load %arg20[%c88_225, %c0_226] : memref<112x128xf32, #tpu.memory_space<vmem>>, vector<8x128xf32>
    %cst_227 = arith.constant 0.000000e+00 : f32
    %547 = vector.broadcast %cst_227 : f32 to vector<8x128xf32>
    %548 = arith.maximumf %546, %547 : vector<8x128xf32>
    %549 = math.absf %546 : vector<8x128xf32>
    %cst_228 = arith.constant 0.000000e+00 : f32
    %550 = vector.broadcast %cst_228 : f32 to vector<8x128xf32>
    %551 = arith.subf %550, %549 : vector<8x128xf32>
    %552 = math.exp %551 : vector<8x128xf32>
    %cst_229 = arith.constant 1.000000e+00 : f32
    %553 = vector.broadcast %cst_229 : f32 to vector<8x128xf32>
    %554 = arith.addf %553, %552 : vector<8x128xf32>
    %555 = math.log %554 : vector<8x128xf32>
    %556 = arith.addf %548, %555 : vector<8x128xf32>
    %cst_230 = arith.constant 0.000000e+00 : f32
    %557 = vector.broadcast %cst_230 : f32 to vector<8x128xf32>
    %558 = arith.maximumf %556, %557 : vector<8x128xf32>
    %559 = math.absf %556 : vector<8x128xf32>
    %cst_231 = arith.constant 0.000000e+00 : f32
    %560 = vector.broadcast %cst_231 : f32 to vector<8x128xf32>
    %561 = arith.subf %560, %559 : vector<8x128xf32>
    %562 = math.exp %561 : vector<8x128xf32>
    %cst_232 = arith.constant 1.000000e+00 : f32
    %563 = vector.broadcast %cst_232 : f32 to vector<8x128xf32>
    %564 = arith.addf %563, %562 : vector<8x128xf32>
    %565 = math.log %564 : vector<8x128xf32>
    %566 = arith.addf %558, %565 : vector<8x128xf32>
    %cst_233 = arith.constant 1.000000e-03 : f32
    %567 = vector.broadcast %cst_233 : f32 to vector<8x128xf32>
    %568 = arith.addf %567, %566 : vector<8x128xf32>
    %569 = arith.cmpf oge, %393, %540 : vector<8x128xf32>
    %570 = arith.select %569, %540, %511 : vector<8x128xi1>, vector<8x128xf32>
    %571 = arith.select %569, %541, %512 : vector<8x128xi1>, vector<8x128xf32>
    %572 = arith.select %569, %543, %514 : vector<8x128xi1>, vector<8x128xf32>
    %573 = arith.select %569, %545, %516 : vector<8x128xi1>, vector<8x128xf32>
    %574 = arith.select %569, %539, %510 : vector<8x128xi1>, vector<8x128xf32>
    %575 = arith.select %569, %568, %539 : vector<8x128xi1>, vector<8x128xf32>
    %576 = arith.addf %540, %543 : vector<8x128xf32>
    %577 = arith.addf %541, %545 : vector<8x128xf32>
    %cst_234 = arith.constant 6.000000e+00 : f32
    %578 = vector.broadcast %cst_234 : f32 to vector<8x128xf32>
    %579 = arith.mulf %578, %448 : vector<8x128xf32>
    %cst_235 = arith.constant 6.000000e+00 : f32
    %580 = vector.broadcast %cst_235 : f32 to vector<8x128xf32>
    %581 = arith.mulf %580, %506 : vector<8x128xf32>
    %c96_236 = arith.constant 96 : index
    %c0_237 = arith.constant 0 : index
    %582 = vector.load %arg20[%c96_236, %c0_237] : memref<112x128xf32, #tpu.memory_space<vmem>>, vector<8x128xf32>
    %cst_238 = arith.constant 0.000000e+00 : f32
    %583 = vector.broadcast %cst_238 : f32 to vector<8x128xf32>
    %584 = arith.maximumf %582, %583 : vector<8x128xf32>
    %585 = math.absf %582 : vector<8x128xf32>
    %cst_239 = arith.constant 0.000000e+00 : f32
    %586 = vector.broadcast %cst_239 : f32 to vector<8x128xf32>
    %587 = arith.subf %586, %585 : vector<8x128xf32>
    %588 = math.exp %587 : vector<8x128xf32>
    %cst_240 = arith.constant 1.000000e+00 : f32
    %589 = vector.broadcast %cst_240 : f32 to vector<8x128xf32>
    %590 = arith.addf %589, %588 : vector<8x128xf32>
    %591 = math.log %590 : vector<8x128xf32>
    %592 = arith.addf %584, %591 : vector<8x128xf32>
    %cst_241 = arith.constant 0.000000e+00 : f32
    %593 = vector.broadcast %cst_241 : f32 to vector<8x128xf32>
    %594 = arith.maximumf %592, %593 : vector<8x128xf32>
    %595 = math.absf %592 : vector<8x128xf32>
    %cst_242 = arith.constant 0.000000e+00 : f32
    %596 = vector.broadcast %cst_242 : f32 to vector<8x128xf32>
    %597 = arith.subf %596, %595 : vector<8x128xf32>
    %598 = math.exp %597 : vector<8x128xf32>
    %cst_243 = arith.constant 1.000000e+00 : f32
    %599 = vector.broadcast %cst_243 : f32 to vector<8x128xf32>
    %600 = arith.addf %599, %598 : vector<8x128xf32>
    %601 = math.log %600 : vector<8x128xf32>
    %602 = arith.addf %594, %601 : vector<8x128xf32>
    %cst_244 = arith.constant 1.000000e-03 : f32
    %603 = vector.broadcast %cst_244 : f32 to vector<8x128xf32>
    %604 = arith.addf %603, %602 : vector<8x128xf32>
    %605 = arith.cmpf oge, %393, %576 : vector<8x128xf32>
    %606 = arith.select %605, %576, %570 : vector<8x128xi1>, vector<8x128xf32>
    %607 = arith.select %605, %577, %571 : vector<8x128xi1>, vector<8x128xf32>
    %608 = arith.select %605, %579, %572 : vector<8x128xi1>, vector<8x128xf32>
    %609 = arith.select %605, %581, %573 : vector<8x128xi1>, vector<8x128xf32>
    %610 = arith.select %605, %568, %574 : vector<8x128xi1>, vector<8x128xf32>
    %611 = arith.select %605, %604, %575 : vector<8x128xi1>, vector<8x128xf32>
    %612 = arith.addf %576, %579 : vector<8x128xf32>
    %613 = arith.addf %577, %581 : vector<8x128xf32>
    %cst_245 = arith.constant 6.000000e+00 : f32
    %614 = vector.broadcast %cst_245 : f32 to vector<8x128xf32>
    %615 = arith.mulf %614, %451 : vector<8x128xf32>
    %cst_246 = arith.constant 6.000000e+00 : f32
    %616 = vector.broadcast %cst_246 : f32 to vector<8x128xf32>
    %617 = arith.mulf %616, %509 : vector<8x128xf32>
    %c104_247 = arith.constant 104 : index
    %c0_248 = arith.constant 0 : index
    %618 = vector.load %arg20[%c104_247, %c0_248] : memref<112x128xf32, #tpu.memory_space<vmem>>, vector<8x128xf32>
    %cst_249 = arith.constant 0.000000e+00 : f32
    %619 = vector.broadcast %cst_249 : f32 to vector<8x128xf32>
    %620 = arith.maximumf %618, %619 : vector<8x128xf32>
    %621 = math.absf %618 : vector<8x128xf32>
    %cst_250 = arith.constant 0.000000e+00 : f32
    %622 = vector.broadcast %cst_250 : f32 to vector<8x128xf32>
    %623 = arith.subf %622, %621 : vector<8x128xf32>
    %624 = math.exp %623 : vector<8x128xf32>
    %cst_251 = arith.constant 1.000000e+00 : f32
    %625 = vector.broadcast %cst_251 : f32 to vector<8x128xf32>
    %626 = arith.addf %625, %624 : vector<8x128xf32>
    %627 = math.log %626 : vector<8x128xf32>
    %628 = arith.addf %620, %627 : vector<8x128xf32>
    %cst_252 = arith.constant 0.000000e+00 : f32
    %629 = vector.broadcast %cst_252 : f32 to vector<8x128xf32>
    %630 = arith.maximumf %628, %629 : vector<8x128xf32>
    %631 = math.absf %628 : vector<8x128xf32>
    %cst_253 = arith.constant 0.000000e+00 : f32
    %632 = vector.broadcast %cst_253 : f32 to vector<8x128xf32>
    %633 = arith.subf %632, %631 : vector<8x128xf32>
    %634 = math.exp %633 : vector<8x128xf32>
    %cst_254 = arith.constant 1.000000e+00 : f32
    %635 = vector.broadcast %cst_254 : f32 to vector<8x128xf32>
    %636 = arith.addf %635, %634 : vector<8x128xf32>
    %637 = math.log %636 : vector<8x128xf32>
    %638 = arith.addf %630, %637 : vector<8x128xf32>
    %cst_255 = arith.constant 1.000000e-03 : f32
    %639 = vector.broadcast %cst_255 : f32 to vector<8x128xf32>
    %640 = arith.addf %639, %638 : vector<8x128xf32>
    %641 = arith.cmpf oge, %393, %612 : vector<8x128xf32>
    %642 = arith.select %641, %612, %606 : vector<8x128xi1>, vector<8x128xf32>
    %643 = arith.select %641, %613, %607 : vector<8x128xi1>, vector<8x128xf32>
    %644 = arith.select %641, %615, %608 : vector<8x128xi1>, vector<8x128xf32>
    %645 = arith.select %641, %617, %609 : vector<8x128xi1>, vector<8x128xf32>
    %646 = arith.select %641, %604, %610 : vector<8x128xi1>, vector<8x128xf32>
    %647 = arith.select %641, %640, %611 : vector<8x128xi1>, vector<8x128xf32>
    %648 = arith.addf %612, %615 : vector<8x128xf32>
    %649 = arith.addf %613, %617 : vector<8x128xf32>
    %cst_256 = arith.constant 3.000000e+00 : f32
    %650 = vector.broadcast %cst_256 : f32 to vector<8x128xf32>
    %651 = arith.subf %650, %648 : vector<8x128xf32>
    %cst_257 = arith.constant 3.000000e+00 : f32
    %652 = vector.broadcast %cst_257 : f32 to vector<8x128xf32>
    %653 = arith.subf %652, %649 : vector<8x128xf32>
    %654 = arith.cmpf oge, %393, %648 : vector<8x128xf32>
    %655 = arith.select %654, %648, %642 : vector<8x128xi1>, vector<8x128xf32>
    %656 = arith.select %654, %649, %643 : vector<8x128xi1>, vector<8x128xf32>
    %657 = arith.select %654, %651, %644 : vector<8x128xi1>, vector<8x128xf32>
    %658 = arith.select %654, %653, %645 : vector<8x128xi1>, vector<8x128xf32>
    %659 = arith.select %654, %640, %646 : vector<8x128xi1>, vector<8x128xf32>
    %660 = arith.select %654, %510, %647 : vector<8x128xi1>, vector<8x128xf32>
    %661 = arith.subf %393, %655 : vector<8x128xf32>
    %662 = arith.divf %661, %657 : vector<8x128xf32>
    %cst_258 = arith.constant 0.000000e+00 : f32
    %cst_259 = arith.constant 1.000000e+00 : f32
    %663 = vector.broadcast %cst_258 : f32 to vector<8x128xf32>
    %664 = arith.maximumf %663, %662 : vector<8x128xf32>
    %665 = vector.broadcast %cst_259 : f32 to vector<8x128xf32>
    %666 = arith.minimumf %665, %664 : vector<8x128xf32>
    %667 = arith.divf %658, %657 : vector<8x128xf32>
    %cst_260 = arith.constant 1.000000e+00 : f32
    %668 = vector.broadcast %cst_260 : f32 to vector<8x128xf32>
    %669 = arith.subf %668, %666 : vector<8x128xf32>
    %670 = arith.mulf %666, %669 : vector<8x128xf32>
    %671 = arith.mulf %666, %666 : vector<8x128xf32>
    %672 = arith.mulf %667, %671 : vector<8x128xf32>
    %673 = arith.mulf %659, %670 : vector<8x128xf32>
    %674 = arith.addf %672, %673 : vector<8x128xf32>
    %675 = arith.mulf %658, %674 : vector<8x128xf32>
    %676 = arith.addf %659, %660 : vector<8x128xf32>
    %cst_261 = arith.constant 2.000000e+00 : f32
    %677 = vector.broadcast %cst_261 : f32 to vector<8x128xf32>
    %678 = arith.mulf %677, %667 : vector<8x128xf32>
    %679 = arith.subf %676, %678 : vector<8x128xf32>
    %680 = arith.mulf %679, %670 : vector<8x128xf32>
    %681 = arith.addf %667, %680 : vector<8x128xf32>
    %682 = arith.divf %675, %681 : vector<8x128xf32>
    %683 = arith.addf %656, %682 : vector<8x128xf32>
    %684 = arith.mulf %667, %667 : vector<8x128xf32>
    %685 = arith.mulf %660, %671 : vector<8x128xf32>
    %cst_262 = arith.constant 2.000000e+00 : f32
    %686 = vector.broadcast %cst_262 : f32 to vector<8x128xf32>
    %687 = arith.mulf %686, %667 : vector<8x128xf32>
    %688 = arith.mulf %687, %670 : vector<8x128xf32>
    %689 = arith.addf %685, %688 : vector<8x128xf32>
    %cst_263 = arith.constant 1.000000e+00 : f32
    %690 = vector.broadcast %cst_263 : f32 to vector<8x128xf32>
    %691 = arith.subf %690, %666 : vector<8x128xf32>
    %692 = arith.mulf %659, %691 : vector<8x128xf32>
    %cst_264 = arith.constant 1.000000e+00 : f32
    %693 = vector.broadcast %cst_264 : f32 to vector<8x128xf32>
    %694 = arith.subf %693, %666 : vector<8x128xf32>
    %695 = arith.mulf %692, %694 : vector<8x128xf32>
    %696 = arith.addf %689, %695 : vector<8x128xf32>
    %697 = arith.mulf %684, %696 : vector<8x128xf32>
    %698 = math.log %697 : vector<8x128xf32>
    %699 = math.log %681 : vector<8x128xf32>
    %cst_265 = arith.constant 2.000000e+00 : f32
    %700 = vector.broadcast %cst_265 : f32 to vector<8x128xf32>
    %701 = arith.mulf %700, %699 : vector<8x128xf32>
    %702 = arith.subf %698, %701 : vector<8x128xf32>
    %cst_266 = arith.constant -3.000000e+00 : f32
    %703 = vector.broadcast %cst_266 : f32 to vector<8x128xf32>
    %704 = arith.cmpf oge, %0, %703 : vector<8x128xf32>
    %cst_267 = arith.constant 3.000000e+00 : f32
    %705 = vector.broadcast %cst_267 : f32 to vector<8x128xf32>
    %706 = arith.cmpf ole, %0, %705 : vector<8x128xf32>
    %707 = arith.andi %704, %706 : vector<8x128xi1>
    %708 = arith.select %707, %683, %0 : vector<8x128xi1>, vector<8x128xf32>
    %cst_268 = arith.constant 0.000000e+00 : f32
    %709 = vector.broadcast %cst_268 : f32 to vector<8x128xf32>
    %710 = arith.select %707, %702, %709 : vector<8x128xi1>, vector<8x128xf32>
    %c0_269 = arith.constant 0 : index
    %c0_270 = arith.constant 0 : index
    %711 = vector.load %arg19[%c0_269, %c0_270] : memref<18x128xf32, #tpu.memory_space<vmem>>, vector<8x128xf32>
    tpu.vector_store %arg19[%c0_269, %c0_270], %354 {strides = array<i32>} : memref<18x128xf32, #tpu.memory_space<vmem>>, vector<8x128xf32>,
    %c8_271 = arith.constant 8 : index
    %c0_272 = arith.constant 0 : index
    %712 = vector.load %arg19[%c8_271, %c0_272] : memref<18x128xf32, #tpu.memory_space<vmem>>, vector<8x128xf32>
    tpu.vector_store %arg19[%c8_271, %c0_272], %708 {strides = array<i32>} : memref<18x128xf32, #tpu.memory_space<vmem>>, vector<8x128xf32>,
    %713 = vector.extract_strided_slice %356 {offsets = [0, 0], sizes = [4, 128], strides = [1, 1]} : vector<8x128xf32> to vector<4x128xf32>
    %cst_273 = arith.constant dense<0.000000e+00> : vector<128xf32>
    %714 = vector.multi_reduction <add>, %713, %cst_273 [0] : vector<4x128xf32> to vector<128xf32>
    %715 = vector.shape_cast %714 : vector<128xf32> to vector<1x128xf32>
    %716 = vector.extract_strided_slice %710 {offsets = [0, 0], sizes = [4, 128], strides = [1, 1]} : vector<8x128xf32> to vector<4x128xf32>
    %cst_274 = arith.constant dense<0.000000e+00> : vector<128xf32>
    %717 = vector.multi_reduction <add>, %716, %cst_274 [0] : vector<4x128xf32> to vector<128xf32>
    %718 = vector.shape_cast %717 : vector<128xf32> to vector<1x128xf32>
    %719 = arith.addf %715, %718 : vector<1x128xf32>
    %c16_275 = arith.constant 16 : index
    %c0_276 = arith.constant 0 : index
    %720 = vector.load %arg19[%c16_275, %c0_276] : memref<18x128xf32, #tpu.memory_space<vmem>>, vector<1x128xf32>
    tpu.vector_store %arg19[%c16_275, %c0_276], %719 {strides = array<i32>} : memref<18x128xf32, #tpu.memory_space<vmem>>, vector<1x128xf32>,
    %721 = vector.extract_strided_slice %356 {offsets = [4, 0], sizes = [4, 128], strides = [1, 1]} : vector<8x128xf32> to vector<4x128xf32>
    %cst_277 = arith.constant dense<0.000000e+00> : vector<128xf32>
    %722 = vector.multi_reduction <add>, %721, %cst_277 [0] : vector<4x128xf32> to vector<128xf32>
    %723 = vector.shape_cast %722 : vector<128xf32> to vector<1x128xf32>
    %724 = vector.extract_strided_slice %710 {offsets = [4, 0], sizes = [4, 128], strides = [1, 1]} : vector<8x128xf32> to vector<4x128xf32>
    %cst_278 = arith.constant dense<0.000000e+00> : vector<128xf32>
    %725 = vector.multi_reduction <add>, %724, %cst_278 [0] : vector<4x128xf32> to vector<128xf32>
    %726 = vector.shape_cast %725 : vector<128xf32> to vector<1x128xf32>
    %727 = arith.addf %723, %726 : vector<1x128xf32>
    %c17 = arith.constant 17 : index
    %c0_279 = arith.constant 0 : index
    %728 = vector.load %arg19[%c17, %c0_279] : memref<18x128xf32, #tpu.memory_space<vmem>>, vector<1x128xf32>
    tpu.vector_store %arg19[%c17, %c0_279], %727 {strides = array<i32>} : memref<18x128xf32, #tpu.memory_space<vmem>>, vector<1x128xf32>,
    return
  }
  func.func @transform_0(%arg0: i32) -> (i32, i32) {
    %c0_i32 = arith.constant 0 : i32
    %c0_i32_0 = arith.constant 0 : i32
    return %c0_i32, %arg0 : i32, i32
  }
  func.func @transform_1(%arg0: i32) -> (i32, i32) {
    %c0_i32 = arith.constant 0 : i32
    %c0_i32_0 = arith.constant 0 : i32
    return %c0_i32, %arg0 : i32, i32
  }
  func.func @transform_2(%arg0: i32) -> (i32, i32) {
    %c0_i32 = arith.constant 0 : i32
    %c0_i32_0 = arith.constant 0 : i32
    %c0_i32_1 = arith.constant 0 : i32
    return %c0_i32, %c0_i32_0 : i32, i32
  }
  func.func @transform_3(%arg0: i32) -> (i32, i32) {
    %c0_i32 = arith.constant 0 : i32
    %c0_i32_0 = arith.constant 0 : i32
    %c0_i32_1 = arith.constant 0 : i32
    return %c0_i32, %c0_i32_0 : i32, i32
  }
  func.func @transform_4(%arg0: i32) -> (i32, i32) {
    %c0_i32 = arith.constant 0 : i32
    %c0_i32_0 = arith.constant 0 : i32
    %c0_i32_1 = arith.constant 0 : i32
    return %c0_i32, %c0_i32_0 : i32, i32
  }
  func.func @transform_5(%arg0: i32) -> (i32, i32) {
    %c0_i32 = arith.constant 0 : i32
    %c0_i32_0 = arith.constant 0 : i32
    %c0_i32_1 = arith.constant 0 : i32
    return %c0_i32, %c0_i32_0 : i32, i32
  }
  func.func @transform_6(%arg0: i32) -> (i32, i32) {
    %c0_i32 = arith.constant 0 : i32
    %c0_i32_0 = arith.constant 0 : i32
    %c0_i32_1 = arith.constant 0 : i32
    return %c0_i32, %c0_i32_0 : i32, i32
  }
  func.func @transform_7(%arg0: i32) -> (i32, i32) {
    %c0_i32 = arith.constant 0 : i32
    %c0_i32_0 = arith.constant 0 : i32
    %c0_i32_1 = arith.constant 0 : i32
    return %c0_i32, %c0_i32_0 : i32, i32
  }
  func.func @transform_8(%arg0: i32) -> (i32, i32) {
    %c0_i32 = arith.constant 0 : i32
    %c0_i32_0 = arith.constant 0 : i32
    %c0_i32_1 = arith.constant 0 : i32
    return %c0_i32, %c0_i32_0 : i32, i32
  }
  func.func @transform_9(%arg0: i32) -> (i32, i32) {
    %c0_i32 = arith.constant 0 : i32
    %c0_i32_0 = arith.constant 0 : i32
    %c0_i32_1 = arith.constant 0 : i32
    return %c0_i32, %c0_i32_0 : i32, i32
  }
  func.func @transform_10(%arg0: i32) -> (i32, i32) {
    %c0_i32 = arith.constant 0 : i32
    %c0_i32_0 = arith.constant 0 : i32
    %c0_i32_1 = arith.constant 0 : i32
    return %c0_i32, %c0_i32_0 : i32, i32
  }
  func.func @transform_11(%arg0: i32) -> (i32, i32) {
    %c0_i32 = arith.constant 0 : i32
    %c0_i32_0 = arith.constant 0 : i32
    %c0_i32_1 = arith.constant 0 : i32
    return %c0_i32, %c0_i32_0 : i32, i32
  }
  func.func @transform_12(%arg0: i32) -> (i32, i32) {
    %c0_i32 = arith.constant 0 : i32
    %c0_i32_0 = arith.constant 0 : i32
    %c0_i32_1 = arith.constant 0 : i32
    return %c0_i32, %c0_i32_0 : i32, i32
  }
  func.func @transform_13(%arg0: i32) -> (i32, i32) {
    %c0_i32 = arith.constant 0 : i32
    %c0_i32_0 = arith.constant 0 : i32
    %c0_i32_1 = arith.constant 0 : i32
    return %c0_i32, %c0_i32_0 : i32, i32
  }
  func.func @transform_14(%arg0: i32) -> (i32, i32) {
    %c0_i32 = arith.constant 0 : i32
    %c0_i32_0 = arith.constant 0 : i32
    %c0_i32_1 = arith.constant 0 : i32
    return %c0_i32, %c0_i32_0 : i32, i32
  }
  func.func @transform_15(%arg0: i32) -> (i32, i32) {
    %c0_i32 = arith.constant 0 : i32
    %c0_i32_0 = arith.constant 0 : i32
    %c0_i32_1 = arith.constant 0 : i32
    return %c0_i32, %c0_i32_0 : i32, i32
  }
  func.func @transform_16(%arg0: i32) -> (i32, i32) {
    %c0_i32 = arith.constant 0 : i32
    %c0_i32_0 = arith.constant 0 : i32
    %c0_i32_1 = arith.constant 0 : i32
    return %c0_i32, %c0_i32_0 : i32, i32
  }
  func.func @transform_17(%arg0: i32) -> (i32, i32) {
    %c0_i32 = arith.constant 0 : i32
    %c0_i32_0 = arith.constant 0 : i32
    %c0_i32_1 = arith.constant 0 : i32
    return %c0_i32, %c0_i32_0 : i32, i32
  }
  func.func @transform_18(%arg0: i32) -> (i32, i32) {
    %c0_i32 = arith.constant 0 : i32
    %c0_i32_0 = arith.constant 0 : i32
    return %c0_i32, %arg0 : i32, i32
  }
}

</mosaic_0001>

<llo_original>
// kernel: tpu_custom_call.1
$region0: #{tpu_custom_call.1}
  #allocation0 [shape = 'u32[]', space=smem, size = 0x4, offset = 0x4, fixed_abs, tag = 'smem constant byte address 0x4 - core index']
  #allocation1 [shape = 'u32[144,128]{1,0:T(1,128)}', space=vmem, size = 0x12000, scoped, tag = 'internal scratch']
  #allocation2 [shape = 'f32[112,128]{1,0:T(8,128)}', space=vmem, size = 0xe000, scoped, tag = 'scratch operand']
  %s0 = inlined_call_operand.vmem [shape: f32[8,256], index: 0, kind: input, shape index: {}]
  %s1 = inlined_call_operand.vmem [shape: f32[8,256], index: 1, kind: input, shape index: {}]
  %s2 = inlined_call_operand.vmem [shape: bf16[128,8], index: 2, kind: input, shape index: {}]
  %s3 = inlined_call_operand.vmem [shape: f32[128,1], index: 3, kind: input, shape index: {}]
  %s4 = inlined_call_operand.vmem [shape: bf16[128,128], index: 4, kind: input, shape index: {}]
  %s5 = inlined_call_operand.vmem [shape: f32[128,1], index: 5, kind: input, shape index: {}]
  %s6 = inlined_call_operand.vmem [shape: bf16[128,128], index: 6, kind: input, shape index: {}]
  %s7 = inlined_call_operand.vmem [shape: f32[128,1], index: 7, kind: input, shape index: {}]
  %s8 = inlined_call_operand.vmem [shape: bf16[112,128], index: 8, kind: input, shape index: {}]
  %s9 = inlined_call_operand.vmem [shape: f32[112,1], index: 9, kind: input, shape index: {}]
  %s10 = inlined_call_operand.vmem [shape: bf16[128,8], index: 10, kind: input, shape index: {}]
  %s11 = inlined_call_operand.vmem [shape: f32[128,1], index: 11, kind: input, shape index: {}]
  %s12 = inlined_call_operand.vmem [shape: bf16[128,128], index: 12, kind: input, shape index: {}]
  %s13 = inlined_call_operand.vmem [shape: f32[128,1], index: 13, kind: input, shape index: {}]
  %s14 = inlined_call_operand.vmem [shape: bf16[128,128], index: 14, kind: input, shape index: {}]
  %s15 = inlined_call_operand.vmem [shape: f32[128,1], index: 15, kind: input, shape index: {}]
  %s16 = inlined_call_operand.vmem [shape: bf16[112,128], index: 16, kind: input, shape index: {}]
  %s17 = inlined_call_operand.vmem [shape: f32[112,1], index: 17, kind: input, shape index: {}]
  %s18 = inlined_call_operand.hbm [shape: f32[18,256], index: 18, kind: output, shape index: {}]
  %s19 = sld [smem:[#allocation0]]
  $region105: #{tpu_custom_call.1} parent=0
    _
  %s21 = ssub.s32 1, %s19
  %s22 = scalar_select 0, %s21, %s19
  $region1: #{tpu_custom_call.1} parent=0
    #allocation3 [shape = 'u8[24576]{0}', space=vmem, size = 0x6000, scoped, tag = 'output window, operand 0']
    #allocation4 [shape = 's32[2]{0}', space=sflag, size = 0x8, scoped, tag = 'scoped memory for tpu_custom_call.1']
    %23 = vsyncpa [#allocation4], 0
    %s24 = scalar_lea.sflag [#allocation4], 1
    %25 = vsyncpa %s24, 0
    loop: start=0, step=1, limit=4
    $region2: #{tpu_custom_call.1} parent=1 // loop_pre_header
      _
    $region3: #{tpu_custom_call.1} parent=1 // loop_header
      %s27 = sphi 0, %s31
      %p28 = scmp.ge.s32.totalorder %s27, 4
      %s37 = sphi 0, %s39
      %s40 = sphi 0, %s37
      %s41 = sphi 0, %s40
      %s57 = sphi 0, %s41
      %s63 = sphi 0, %s65
      %s66 = sphi 0, %s63
      %s67 = sphi 0, %s66
      %s83 = sphi 0, %s67
      %s87 = sphi 0, %s87
      %s89 = sphi 0, %s87
      %s90 = sphi 0, %s89
      %s104 = sphi 0, %s90
      %s108 = sphi 0, %s108
      %s110 = sphi 0, %s108
      %s111 = sphi 0, %s110
      %s125 = sphi 0, %s111
      %s129 = sphi 0, %s129
      %s131 = sphi 0, %s129
      %s132 = sphi 0, %s131
      %s146 = sphi 0, %s132
      %s150 = sphi 0, %s150
      %s152 = sphi 0, %s150
      %s153 = sphi 0, %s152
      %s167 = sphi 0, %s153
      %s171 = sphi 0, %s171
      %s173 = sphi 0, %s171
      %s174 = sphi 0, %s173
      %s188 = sphi 0, %s174
      %s192 = sphi 0, %s192
      %s194 = sphi 0, %s192
      %s195 = sphi 0, %s194
      %s209 = sphi 0, %s195
      %s213 = sphi 0, %s213
      %s215 = sphi 0, %s213
      %s216 = sphi 0, %s215
      %s230 = sphi 0, %s216
      %s234 = sphi 0, %s234
      %s236 = sphi 0, %s234
      %s237 = sphi 0, %s236
      %s251 = sphi 0, %s237
      %s255 = sphi 0, %s255
      %s257 = sphi 0, %s255
      %s258 = sphi 0, %s257
      %s272 = sphi 0, %s258
      %s276 = sphi 0, %s276
      %s278 = sphi 0, %s276
      %s279 = sphi 0, %s278
      %s293 = sphi 0, %s279
      %s297 = sphi 0, %s297
      %s299 = sphi 0, %s297
      %s300 = sphi 0, %s299
      %s314 = sphi 0, %s300
      %s318 = sphi 0, %s318
      %s320 = sphi 0, %s318
      %s321 = sphi 0, %s320
      %s335 = sphi 0, %s321
      %s339 = sphi 0, %s339
      %s341 = sphi 0, %s339
      %s342 = sphi 0, %s341
      %s356 = sphi 0, %s342
      %s360 = sphi 0, %s360
      %s362 = sphi 0, %s360
      %s363 = sphi 0, %s362
      %s377 = sphi 0, %s363
      %s381 = sphi 0, %s381
      %s383 = sphi 0, %s381
      %s384 = sphi 0, %s383
      %s398 = sphi 0, %s384
      %s402 = sphi 0, %s402
      %s404 = sphi 0, %s402
      %s405 = sphi 0, %s404
      %s419 = sphi 0, %s405
      %s425 = sphi 0, %s427
      %s428 = sphi 0, %s425
      %s429 = sphi 0, %s428
      %s445 = sphi 0, %s429
    $region4: #{tpu_custom_call.1} parent=1 // loop_header_branch
      %30 = sbr.rel (%p28) target = $region8
    $region5: #{tpu_custom_call.1} parent=1 // loop_body
      %s32 = ssub.s32 %s27, 1
      %s33 = ssub.s32 %s27, 2
      %s34 = sadd.s32 %s27, 1
      %s35 = ssub.s32 %s27, %s34
      %p36 = scmp.eq.s32.totalorder %s35, 0
      %s38 = sadd.s32 %s37, 1
      %s39 = scalar_select %p36, %s37, %s38
      %p42 = pneg %p36
      %p43 = scmp.eq.s32.totalorder %s27, 1
      %p44 = por %p42, %p43
      %p45 = scmp.ne.s32.totalorder %s37, %s40
      %p46 = scmp.eq.s32.totalorder %s27, 0
      %p47 = por %p45, %p46
      %p48 = scmp.ne.s32.totalorder %s37, %s40
      %p49 = scmp.eq.s32.totalorder %s32, 1
      %p50 = por %p48, %p49
      %p51 = scmp.ne.s32.totalorder %s40, %s41
      %p52 = scmp.eq.s32.totalorder %s32, 0
      %p53 = por %p51, %p52
      %p54 = scmp.ne.s32.totalorder %s40, %s41
      %p55 = scmp.eq.s32.totalorder %s33, 1
      %p56 = por %p54, %p55
      %p58 = scmp.ne.s32.totalorder %s41, %s57
      %p59 = scmp.eq.s32.totalorder %s33, 0
      %p60 = por %p58, %p59
      %s61 = ssub.s32 %s27, %s34
      %p62 = scmp.eq.s32.totalorder %s61, 0
      %s64 = sadd.s32 %s63, 1
      %s65 = scalar_select %p62, %s63, %s64
      %p68 = pneg %p62
      %p69 = scmp.eq.s32.totalorder %s27, 1
      %p70 = por %p68, %p69
      %p71 = scmp.ne.s32.totalorder %s63, %s66
      %p72 = scmp.eq.s32.totalorder %s27, 0
      %p73 = por %p71, %p72
      %p74 = scmp.ne.s32.totalorder %s63, %s66
      %p75 = scmp.eq.s32.totalorder %s32, 1
      %p76 = por %p74, %p75
      %p77 = scmp.ne.s32.totalorder %s66, %s67
      %p78 = scmp.eq.s32.totalorder %s32, 0
      %p79 = por %p77, %p78
      %p80 = scmp.ne.s32.totalorder %s66, %s67
      %p81 = scmp.eq.s32.totalorder %s33, 1
      %p82 = por %p80, %p81
      %p84 = scmp.ne.s32.totalorder %s67, %s83
      %p85 = scmp.eq.s32.totalorder %s33, 0
      %p86 = por %p84, %p85
      %s88 = sadd.s32 %s87, 1
      %p91 = scmp.eq.s32.totalorder %s27, 1
      %p92 = scmp.ne.s32.totalorder %s87, %s89
      %p93 = scmp.eq.s32.totalorder %s27, 0
      %p94 = por %p92, %p93
      %p95 = scmp.ne.s32.totalorder %s87, %s89
      %p96 = scmp.eq.s32.totalorder %s32, 1
      %p97 = por %p95, %p96
      %p98 = scmp.ne.s32.totalorder %s89, %s90
      %p99 = scmp.eq.s32.totalorder %s32, 0
      %p100 = por %p98, %p99
      %p101 = scmp.ne.s32.totalorder %s89, %s90
      %p102 = scmp.eq.s32.totalorder %s33, 1
      %p103 = por %p101, %p102
      %p105 = scmp.ne.s32.totalorder %s90, %s104
      %p106 = scmp.eq.s32.totalorder %s33, 0
      %p107 = por %p105, %p106
      %s109 = sadd.s32 %s108, 1
      %p112 = scmp.eq.s32.totalorder %s27, 1
      %p113 = scmp.ne.s32.totalorder %s108, %s110
      %p114 = scmp.eq.s32.totalorder %s27, 0
      %p115 = por %p113, %p114
      %p116 = scmp.ne.s32.totalorder %s108, %s110
      %p117 = scmp.eq.s32.totalorder %s32, 1
      %p118 = por %p116, %p117
      %p119 = scmp.ne.s32.totalorder %s110, %s111
      %p120 = scmp.eq.s32.totalorder %s32, 0
      %p121 = por %p119, %p120
      %p122 = scmp.ne.s32.totalorder %s110, %s111
      %p123 = scmp.eq.s32.totalorder %s33, 1
      %p124 = por %p122, %p123
      %p126 = scmp.ne.s32.totalorder %s111, %s125
      %p127 = scmp.eq.s32.totalorder %s33, 0
      %p128 = por %p126, %p127
      %s130 = sadd.s32 %s129, 1
      %p133 = scmp.eq.s32.totalorder %s27, 1
      %p134 = scmp.ne.s32.totalorder %s129, %s131
      %p135 = scmp.eq.s32.totalorder %s27, 0
      %p136 = por %p134, %p135
      %p137 = scmp.ne.s32.totalorder %s129, %s131
      %p138 = scmp.eq.s32.totalorder %s32, 1
      %p139 = por %p137, %p138
      %p140 = scmp.ne.s32.totalorder %s131, %s132
      %p141 = scmp.eq.s32.totalorder %s32, 0
      %p142 = por %p140, %p141
      %p143 = scmp.ne.s32.totalorder %s131, %s132
      %p144 = scmp.eq.s32.totalorder %s33, 1
      %p145 = por %p143, %p144
      %p147 = scmp.ne.s32.totalorder %s132, %s146
      %p148 = scmp.eq.s32.totalorder %s33, 0
      %p149 = por %p147, %p148
      %s151 = sadd.s32 %s150, 1
      %p154 = scmp.eq.s32.totalorder %s27, 1
      %p155 = scmp.ne.s32.totalorder %s150, %s152
      %p156 = scmp.eq.s32.totalorder %s27, 0
      %p157 = por %p155, %p156
      %p158 = scmp.ne.s32.totalorder %s150, %s152
      %p159 = scmp.eq.s32.totalorder %s32, 1
      %p160 = por %p158, %p159
      %p161 = scmp.ne.s32.totalorder %s152, %s153
      %p162 = scmp.eq.s32.totalorder %s32, 0
      %p163 = por %p161, %p162
      %p164 = scmp.ne.s32.totalorder %s152, %s153
      %p165 = scmp.eq.s32.totalorder %s33, 1
      %p166 = por %p164, %p165
      %p168 = scmp.ne.s32.totalorder %s153, %s167
      %p169 = scmp.eq.s32.totalorder %s33, 0
      %p170 = por %p168, %p169
      %s172 = sadd.s32 %s171, 1
      %p175 = scmp.eq.s32.totalorder %s27, 1
      %p176 = scmp.ne.s32.totalorder %s171, %s173
      %p177 = scmp.eq.s32.totalorder %s27, 0
      %p178 = por %p176, %p177
      %p179 = scmp.ne.s32.totalorder %s171, %s173
      %p180 = scmp.eq.s32.totalorder %s32, 1
      %p181 = por %p179, %p180
      %p182 = scmp.ne.s32.totalorder %s173, %s174
      %p183 = scmp.eq.s32.totalorder %s32, 0
      %p184 = por %p182, %p183
      %p185 = scmp.ne.s32.totalorder %s173, %s174
      %p186 = scmp.eq.s32.totalorder %s33, 1
      %p187 = por %p185, %p186
      %p189 = scmp.ne.s32.totalorder %s174, %s188
      %p190 = scmp.eq.s32.totalorder %s33, 0
      %p191 = por %p189, %p190
      %s193 = sadd.s32 %s192, 1
      %p196 = scmp.eq.s32.totalorder %s27, 1
      %p197 = scmp.ne.s32.totalorder %s192, %s194
      %p198 = scmp.eq.s32.totalorder %s27, 0
      %p199 = por %p197, %p198
      %p200 = scmp.ne.s32.totalorder %s192, %s194
      %p201 = scmp.eq.s32.totalorder %s32, 1
      %p202 = por %p200, %p201
      %p203 = scmp.ne.s32.totalorder %s194, %s195
      %p204 = scmp.eq.s32.totalorder %s32, 0
      %p205 = por %p203, %p204
      %p206 = scmp.ne.s32.totalorder %s194, %s195
      %p207 = scmp.eq.s32.totalorder %s33, 1
      %p208 = por %p206, %p207
      %p210 = scmp.ne.s32.totalorder %s195, %s209
      %p211 = scmp.eq.s32.totalorder %s33, 0
      %p212 = por %p210, %p211
      %s214 = sadd.s32 %s213, 1
      %p217 = scmp.eq.s32.totalorder %s27, 1
      %p218 = scmp.ne.s32.totalorder %s213, %s215
      %p219 = scmp.eq.s32.totalorder %s27, 0
      %p220 = por %p218, %p219
      %p221 = scmp.ne.s32.totalorder %s213, %s215
      %p222 = scmp.eq.s32.totalorder %s32, 1
      %p223 = por %p221, %p222
      %p224 = scmp.ne.s32.totalorder %s215, %s216
      %p225 = scmp.eq.s32.totalorder %s32, 0
      %p226 = por %p224, %p225
      %p227 = scmp.ne.s32.totalorder %s215, %s216
      %p228 = scmp.eq.s32.totalorder %s33, 1
      %p229 = por %p227, %p228
      %p231 = scmp.ne.s32.totalorder %s216, %s230
      %p232 = scmp.eq.s32.totalorder %s33, 0
      %p233 = por %p231, %p232
      %s235 = sadd.s32 %s234, 1
      %p238 = scmp.eq.s32.totalorder %s27, 1
      %p239 = scmp.ne.s32.totalorder %s234, %s236
      %p240 = scmp.eq.s32.totalorder %s27, 0
      %p241 = por %p239, %p240
      %p242 = scmp.ne.s32.totalorder %s234, %s236
      %p243 = scmp.eq.s32.totalorder %s32, 1
      %p244 = por %p242, %p243
      %p245 = scmp.ne.s32.totalorder %s236, %s237
      %p246 = scmp.eq.s32.totalorder %s32, 0
      %p247 = por %p245, %p246
      %p248 = scmp.ne.s32.totalorder %s236, %s237
      %p249 = scmp.eq.s32.totalorder %s33, 1
      %p250 = por %p248, %p249
      %p252 = scmp.ne.s32.totalorder %s237, %s251
      %p253 = scmp.eq.s32.totalorder %s33, 0
      %p254 = por %p252, %p253
      %s256 = sadd.s32 %s255, 1
      %p259 = scmp.eq.s32.totalorder %s27, 1
      %p260 = scmp.ne.s32.totalorder %s255, %s257
      %p261 = scmp.eq.s32.totalorder %s27, 0
      %p262 = por %p260, %p261
      %p263 = scmp.ne.s32.totalorder %s255, %s257
      %p264 = scmp.eq.s32.totalorder %s32, 1
      %p265 = por %p263, %p264
      %p266 = scmp.ne.s32.totalorder %s257, %s258
      %p267 = scmp.eq.s32.totalorder %s32, 0
      %p268 = por %p266, %p267
      %p269 = scmp.ne.s32.totalorder %s257, %s258
      %p270 = scmp.eq.s32.totalorder %s33, 1
      %p271 = por %p269, %p270
      %p273 = scmp.ne.s32.totalorder %s258, %s272
      %p274 = scmp.eq.s32.totalorder %s33, 0
      %p275 = por %p273, %p274
      %s277 = sadd.s32 %s276, 1
      %p280 = scmp.eq.s32.totalorder %s27, 1
      %p281 = scmp.ne.s32.totalorder %s276, %s278
      %p282 = scmp.eq.s32.totalorder %s27, 0
      %p283 = por %p281, %p282
      %p284 = scmp.ne.s32.totalorder %s276, %s278
      %p285 = scmp.eq.s32.totalorder %s32, 1
      %p286 = por %p284, %p285
      %p287 = scmp.ne.s32.totalorder %s278, %s279
      %p288 = scmp.eq.s32.totalorder %s32, 0
      %p289 = por %p287, %p288
      %p290 = scmp.ne.s32.totalorder %s278, %s279
      %p291 = scmp.eq.s32.totalorder %s33, 1
      %p292 = por %p290, %p291
      %p294 = scmp.ne.s32.totalorder %s279, %s293
      %p295 = scmp.eq.s32.totalorder %s33, 0
      %p296 = por %p294, %p295
      %s298 = sadd.s32 %s297, 1
      %p301 = scmp.eq.s32.totalorder %s27, 1
      %p302 = scmp.ne.s32.totalorder %s297, %s299
      %p303 = scmp.eq.s32.totalorder %s27, 0
      %p304 = por %p302, %p303
      %p305 = scmp.ne.s32.totalorder %s297, %s299
      %p306 = scmp.eq.s32.totalorder %s32, 1
      %p307 = por %p305, %p306
      %p308 = scmp.ne.s32.totalorder %s299, %s300
      %p309 = scmp.eq.s32.totalorder %s32, 0
      %p310 = por %p308, %p309
      %p311 = scmp.ne.s32.totalorder %s299, %s300
      %p312 = scmp.eq.s32.totalorder %s33, 1
      %p313 = por %p311, %p312
      %p315 = scmp.ne.s32.totalorder %s300, %s314
      %p316 = scmp.eq.s32.totalorder %s33, 0
      %p317 = por %p315, %p316
      %s319 = sadd.s32 %s318, 1
      %p322 = scmp.eq.s32.totalorder %s27, 1
      %p323 = scmp.ne.s32.totalorder %s318, %s320
      %p324 = scmp.eq.s32.totalorder %s27, 0
      %p325 = por %p323, %p324
      %p326 = scmp.ne.s32.totalorder %s318, %s320
      %p327 = scmp.eq.s32.totalorder %s32, 1
      %p328 = por %p326, %p327
      %p329 = scmp.ne.s32.totalorder %s320, %s321
      %p330 = scmp.eq.s32.totalorder %s32, 0
      %p331 = por %p329, %p330
      %p332 = scmp.ne.s32.totalorder %s320, %s321
      %p333 = scmp.eq.s32.totalorder %s33, 1
      %p334 = por %p332, %p333
      %p336 = scmp.ne.s32.totalorder %s321, %s335
      %p337 = scmp.eq.s32.totalorder %s33, 0
      %p338 = por %p336, %p337
      %s340 = sadd.s32 %s339, 1
      %p343 = scmp.eq.s32.totalorder %s27, 1
      %p344 = scmp.ne.s32.totalorder %s339, %s341
      %p345 = scmp.eq.s32.totalorder %s27, 0
      %p346 = por %p344, %p345
      %p347 = scmp.ne.s32.totalorder %s339, %s341
      %p348 = scmp.eq.s32.totalorder %s32, 1
      %p349 = por %p347, %p348
      %p350 = scmp.ne.s32.totalorder %s341, %s342
      %p351 = scmp.eq.s32.totalorder %s32, 0
      %p352 = por %p350, %p351
      %p353 = scmp.ne.s32.totalorder %s341, %s342
      %p354 = scmp.eq.s32.totalorder %s33, 1
      %p355 = por %p353, %p354
      %p357 = scmp.ne.s32.totalorder %s342, %s356
      %p358 = scmp.eq.s32.totalorder %s33, 0
      %p359 = por %p357, %p358
      %s361 = sadd.s32 %s360, 1
      %p364 = scmp.eq.s32.totalorder %s27, 1
      %p365 = scmp.ne.s32.totalorder %s360, %s362
      %p366 = scmp.eq.s32.totalorder %s27, 0
      %p367 = por %p365, %p366
      %p368 = scmp.ne.s32.totalorder %s360, %s362
      %p369 = scmp.eq.s32.totalorder %s32, 1
      %p370 = por %p368, %p369
      %p371 = scmp.ne.s32.totalorder %s362, %s363
      %p372 = scmp.eq.s32.totalorder %s32, 0
      %p373 = por %p371, %p372
      %p374 = scmp.ne.s32.totalorder %s362, %s363
      %p375 = scmp.eq.s32.totalorder %s33, 1
      %p376 = por %p374, %p375
      %p378 = scmp.ne.s32.totalorder %s363, %s377
      %p379 = scmp.eq.s32.totalorder %s33, 0
      %p380 = por %p378, %p379
      %s382 = sadd.s32 %s381, 1
      %p385 = scmp.eq.s32.totalorder %s27, 1
      %p386 = scmp.ne.s32.totalorder %s381, %s383
      %p387 = scmp.eq.s32.totalorder %s27, 0
      %p388 = por %p386, %p387
      %p389 = scmp.ne.s32.totalorder %s381, %s383
      %p390 = scmp.eq.s32.totalorder %s32, 1
      %p391 = por %p389, %p390
      %p392 = scmp.ne.s32.totalorder %s383, %s384
      %p393 = scmp.eq.s32.totalorder %s32, 0
      %p394 = por %p392, %p393
      %p395 = scmp.ne.s32.totalorder %s383, %s384
      %p396 = scmp.eq.s32.totalorder %s33, 1
      %p397 = por %p395, %p396
      %p399 = scmp.ne.s32.totalorder %s384, %s398
      %p400 = scmp.eq.s32.totalorder %s33, 0
      %p401 = por %p399, %p400
      %s403 = sadd.s32 %s402, 1
      %p406 = scmp.eq.s32.totalorder %s27, 1
      %p407 = scmp.ne.s32.totalorder %s402, %s404
      %p408 = scmp.eq.s32.totalorder %s27, 0
      %p409 = por %p407, %p408
      %p410 = scmp.ne.s32.totalorder %s402, %s404
      %p411 = scmp.eq.s32.totalorder %s32, 1
      %p412 = por %p410, %p411
      %p413 = scmp.ne.s32.totalorder %s404, %s405
      %p414 = scmp.eq.s32.totalorder %s32, 0
      %p415 = por %p413, %p414
      %p416 = scmp.ne.s32.totalorder %s404, %s405
      %p417 = scmp.eq.s32.totalorder %s33, 1
      %p418 = por %p416, %p417
      %p420 = scmp.ne.s32.totalorder %s405, %s419
      %p421 = scmp.eq.s32.totalorder %s33, 0
      %p422 = por %p420, %p421
      %s423 = ssub.s32 %s27, %s34
      %p424 = scmp.eq.s32.totalorder %s423, 0
      %s426 = sadd.s32 %s425, 1
      %s427 = scalar_select %p424, %s425, %s426
      %p430 = pneg %p424
      %p431 = scmp.eq.s32.totalorder %s27, 1
      %p432 = por %p430, %p431
      %p433 = scmp.ne.s32.totalorder %s425, %s428
      %p434 = scmp.eq.s32.totalorder %s27, 0
      %p435 = por %p433, %p434
      %p436 = scmp.ne.s32.totalorder %s425, %s428
      %p437 = scmp.eq.s32.totalorder %s32, 1
      %p438 = por %p436, %p437
      %p439 = scmp.ne.s32.totalorder %s428, %s429
      %p440 = scmp.eq.s32.totalorder %s32, 0
      %p441 = por %p439, %p440
      %p442 = scmp.ne.s32.totalorder %s428, %s429
      %p443 = scmp.eq.s32.totalorder %s33, 1
      %p444 = por %p442, %p443
      %p446 = scmp.ne.s32.totalorder %s429, %s445
      %p447 = scmp.eq.s32.totalorder %s33, 0
      %p448 = por %p446, %p447
      %p449 = scmp.le.s32.totalorder 1, %s27
      %p450 = scmp.lt.s32.totalorder %s27, 3
      %p451 = pnand %p449, %p450
      %p452 = pneg %p451
      // Predicated region
      $region9: #{tpu_custom_call.1} parent=5 // pred_check
        _
      $region10: #{tpu_custom_call.1} parent=5 // pred_check_branch
        %454 = sbr.rel (%p451) target = $region12
      $region11: #{tpu_custom_call.1} parent=5 // pred_region
        %s455 = ssub.s32 %s27, 1
        // Predicated region
        $region13: #{tpu_custom_call.1} parent=11 // pred_check
          %p456 = pneg %p100
        $region14: #{tpu_custom_call.1} parent=11 // pred_check_branch
          %458 = sbr.rel (%p456) target = $region16
        $region15: #{tpu_custom_call.1} parent=11 // pred_region
          _
        $region16: #{tpu_custom_call.1} parent=11 // pred_fallthru
          _
        // Predicated region
        $region17: #{tpu_custom_call.1} parent=11 // pred_check
          %p459 = pneg %p121
        $region18: #{tpu_custom_call.1} parent=11 // pred_check_branch
          %461 = sbr.rel (%p459) target = $region20
        $region19: #{tpu_custom_call.1} parent=11 // pred_region
          _
        $region20: #{tpu_custom_call.1} parent=11 // pred_fallthru
          _
        // Predicated region
        $region21: #{tpu_custom_call.1} parent=11 // pred_check
          %p462 = pneg %p142
        $region22: #{tpu_custom_call.1} parent=11 // pred_check_branch
          %464 = sbr.rel (%p462) target = $region24
        $region23: #{tpu_custom_call.1} parent=11 // pred_region
          _
        $region24: #{tpu_custom_call.1} parent=11 // pred_fallthru
          _
        // Predicated region
        $region25: #{tpu_custom_call.1} parent=11 // pred_check
          %p465 = pneg %p163
        $region26: #{tpu_custom_call.1} parent=11 // pred_check_branch
          %467 = sbr.rel (%p465) target = $region28
        $region27: #{tpu_custom_call.1} parent=11 // pred_region
          _
        $region28: #{tpu_custom_call.1} parent=11 // pred_fallthru
          _
        // Predicated region
        $region29: #{tpu_custom_call.1} parent=11 // pred_check
          %p468 = pneg %p184
        $region30: #{tpu_custom_call.1} parent=11 // pred_check_branch
          %470 = sbr.rel (%p468) target = $region32
        $region31: #{tpu_custom_call.1} parent=11 // pred_region
          _
        $region32: #{tpu_custom_call.1} parent=11 // pred_fallthru
          _
        // Predicated region
        $region33: #{tpu_custom_call.1} parent=11 // pred_check
          %p471 = pneg %p205
        $region34: #{tpu_custom_call.1} parent=11 // pred_check_branch
          %473 = sbr.rel (%p471) target = $region36
        $region35: #{tpu_custom_call.1} parent=11 // pred_region
          _
        $region36: #{tpu_custom_call.1} parent=11 // pred_fallthru
          _
        // Predicated region
        $region37: #{tpu_custom_call.1} parent=11 // pred_check
          %p474 = pneg %p226
        $region38: #{tpu_custom_call.1} parent=11 // pred_check_branch
          %476 = sbr.rel (%p474) target = $region40
        $region39: #{tpu_custom_call.1} parent=11 // pred_region
          _
        $region40: #{tpu_custom_call.1} parent=11 // pred_fallthru
          _
        // Predicated region
        $region41: #{tpu_custom_call.1} parent=11 // pred_check
          %p477 = pneg %p247
        $region42: #{tpu_custom_call.1} parent=11 // pred_check_branch
          %479 = sbr.rel (%p477) target = $region44
        $region43: #{tpu_custom_call.1} parent=11 // pred_region
          _
        $region44: #{tpu_custom_call.1} parent=11 // pred_fallthru
          _
        // Predicated region
        $region45: #{tpu_custom_call.1} parent=11 // pred_check
          %p480 = pneg %p268
        $region46: #{tpu_custom_call.1} parent=11 // pred_check_branch
          %482 = sbr.rel (%p480) target = $region48
        $region47: #{tpu_custom_call.1} parent=11 // pred_region
          _
        $region48: #{tpu_custom_call.1} parent=11 // pred_fallthru
          _
        // Predicated region
        $region49: #{tpu_custom_call.1} parent=11 // pred_check
          %p483 = pneg %p289
        $region50: #{tpu_custom_call.1} parent=11 // pred_check_branch
          %485 = sbr.rel (%p483) target = $region52
        $region51: #{tpu_custom_call.1} parent=11 // pred_region
          _
        $region52: #{tpu_custom_call.1} parent=11 // pred_fallthru
          _
        // Predicated region
        $region53: #{tpu_custom_call.1} parent=11 // pred_check
          %p486 = pneg %p310
        $region54: #{tpu_custom_call.1} parent=11 // pred_check_branch
          %488 = sbr.rel (%p486) target = $region56
        $region55: #{tpu_custom_call.1} parent=11 // pred_region
          _
        $region56: #{tpu_custom_call.1} parent=11 // pred_fallthru
          _
        // Predicated region
        $region57: #{tpu_custom_call.1} parent=11 // pred_check
          %p489 = pneg %p331
        $region58: #{tpu_custom_call.1} parent=11 // pred_check_branch
          %491 = sbr.rel (%p489) target = $region60
        $region59: #{tpu_custom_call.1} parent=11 // pred_region
          _
        $region60: #{tpu_custom_call.1} parent=11 // pred_fallthru
          _
        // Predicated region
        $region61: #{tpu_custom_call.1} parent=11 // pred_check
          %p492 = pneg %p352
        $region62: #{tpu_custom_call.1} parent=11 // pred_check_branch
          %494 = sbr.rel (%p492) target = $region64
        $region63: #{tpu_custom_call.1} parent=11 // pred_region
          _
        $region64: #{tpu_custom_call.1} parent=11 // pred_fallthru
          _
        // Predicated region
        $region65: #{tpu_custom_call.1} parent=11 // pred_check
          %p495 = pneg %p373
        $region66: #{tpu_custom_call.1} parent=11 // pred_check_branch
          %497 = sbr.rel (%p495) target = $region68
        $region67: #{tpu_custom_call.1} parent=11 // pred_region
          _
        $region68: #{tpu_custom_call.1} parent=11 // pred_fallthru
          _
        // Predicated region
        $region69: #{tpu_custom_call.1} parent=11 // pred_check
          %p498 = pneg %p394
        $region70: #{tpu_custom_call.1} parent=11 // pred_check_branch
          %500 = sbr.rel (%p498) target = $region72
        $region71: #{tpu_custom_call.1} parent=11 // pred_region
          _
        $region72: #{tpu_custom_call.1} parent=11 // pred_fallthru
          _
        // Predicated region
        $region73: #{tpu_custom_call.1} parent=11 // pred_check
          %p501 = pneg %p415
        $region74: #{tpu_custom_call.1} parent=11 // pred_check_branch
          %503 = sbr.rel (%p501) target = $region76
        $region75: #{tpu_custom_call.1} parent=11 // pred_region
          _
        $region76: #{tpu_custom_call.1} parent=11 // pred_fallthru
          _
      $region12: #{tpu_custom_call.1} parent=5 // pred_fallthru
        _
      %p504 = scmp.lt.s32.totalorder %s27, 2
      // Predicated region
      $region77: #{tpu_custom_call.1} parent=5 // pred_check
        %p505 = pneg %p504
      $region78: #{tpu_custom_call.1} parent=5 // pred_check_branch
        %507 = sbr.rel (%p505) target = $region80
      $region79: #{tpu_custom_call.1} parent=5 // pred_region
        // Predicated region
        $region81: #{tpu_custom_call.1} parent=79 // pred_check
          %p508 = pneg %p47
        $region82: #{tpu_custom_call.1} parent=79 // pred_check_branch
          %510 = sbr.rel (%p508) target = $region84
        $region83: #{tpu_custom_call.1} parent=79 // pred_region
          %p511 = scmp.lt.s32.totalorder %s27, 1
          %s512 = scalar_select %p511, %s27, 1
          %s513 = smul.addr %s512, 8
          %s514 = scalar_lea.vmem %s0, %s513
        $region84: #{tpu_custom_call.1} parent=79 // pred_fallthru
          _
        // Predicated region
        $region85: #{tpu_custom_call.1} parent=79 // pred_check
          %p515 = pneg %p73
        $region86: #{tpu_custom_call.1} parent=79 // pred_check_branch
          %517 = sbr.rel (%p515) target = $region88
        $region87: #{tpu_custom_call.1} parent=79 // pred_region
          %p518 = scmp.lt.s32.totalorder %s27, 1
          %s519 = scalar_select %p518, %s27, 1
          %s520 = smul.addr %s519, 8
          %s521 = scalar_lea.vmem %s1, %s520
        $region88: #{tpu_custom_call.1} parent=79 // pred_fallthru
          _
      $region80: #{tpu_custom_call.1} parent=5 // pred_fallthru
        _
      %p522 = scmp.le.s32.totalorder 1, %s27
      %p523 = scmp.lt.s32.totalorder %s27, 3
      %p524 = pnand %p522, %p523
      %p525 = pneg %p524
      // Predicated region
      $region89: #{tpu_custom_call.1} parent=5 // pred_check
        _
      $region90: #{tpu_custom_call.1} parent=5 // pred_check_branch
        %527 = sbr.rel (%p524) target = $region92
      $region91: #{tpu_custom_call.1} parent=5 // pred_region
        %s528 = ssub.s32 %s27, 1
        %p529 = scmp.lt.s32.totalorder %s32, 1
        %s530 = scalar_select %p529, %s32, 1
        %s531 = smul.addr %s530, 8
        %s532 = scalar_lea.vmem %s0, %s531
        %p533 = pneg %p53
        %p534 = pneg %p50
        %p535 = scmp.lt.s32.totalorder %s32, 1
        %s536 = scalar_select %p535, %s32, 1
        %s537 = smul.addr %s536, 8
        %s538 = scalar_lea.vmem %s1, %s537
        %p539 = pneg %p79
        %p540 = pneg %p76
        %p541 = pneg %p100
        %p542 = pneg %p97
        %p543 = pneg %p121
        %p544 = pneg %p118
        %p545 = pneg %p142
        %p546 = pneg %p139
        %p547 = pneg %p163
        %p548 = pneg %p160
        %p549 = pneg %p184
        %p550 = pneg %p181
        %p551 = pneg %p205
        %p552 = pneg %p202
        %p553 = pneg %p226
        %p554 = pneg %p223
        %p555 = pneg %p247
        %p556 = pneg %p244
        %p557 = pneg %p268
        %p558 = pneg %p265
        %p559 = pneg %p289
        %p560 = pneg %p286
        %p561 = pneg %p310
        %p562 = pneg %p307
        %p563 = pneg %p331
        %p564 = pneg %p328
        %p565 = pneg %p352
        %p566 = pneg %p349
        %p567 = pneg %p373
        %p568 = pneg %p370
        %p569 = pneg %p394
        %p570 = pneg %p391
        %p571 = pneg %p415
        %p572 = pneg %p412
        %p573 = pneg %p441
        %p574 = pneg %p438
        %s575 = sand.u32 %s428, 1
        %s576 = scalar_lea.sflag [#allocation4], %s575
        %s577 = sand.u32 %s428, 1
        %s578 = smul.addr %s577, 24
        %s579 = scalar_lea.vmem [#allocation3], %s578
        %p580 = scmp.lt.s32.totalorder %s32, 1
        %s581 = scalar_select %p580, %s32, 1
        %s582 = smul.addr %s581, 8
        %s583 = scalar_lea.vmem %s0, %s582
        %p584 = scmp.lt.s32.totalorder %s32, 1
        %s585 = scalar_select %p584, %s32, 1
        %s586 = smul.addr %s585, 8
        %s587 = scalar_lea.vmem %s1, %s586
        %v589 = vld [vmem:[%s583] sm:$0xff]
        %v590 = vld [vmem:[%s587] sm:$0xff]
        %v591 = vld [vmem:[%s2] sm:$0xf]
        %v592 = vld [vmem:[%s2 + $0x4] sm:$0xf]
        %v593 = vld [vmem:[%s2 + $0x8] sm:$0xf]
        %v594 = vld [vmem:[%s2 + $0xc] sm:$0xf]
        %v595 = vld [vmem:[%s2 + $0x10] sm:$0xf]
        %v596 = vld [vmem:[%s2 + $0x14] sm:$0xf]
        %v597 = vld [vmem:[%s2 + $0x18] sm:$0xf]
        %v598 = vld [vmem:[%s2 + $0x1c] sm:$0xf]
        %v599 = vld [vmem:[%s2 + $0x20] sm:$0xf]
        %v600 = vld [vmem:[%s2 + $0x24] sm:$0xf]
        %v601 = vld [vmem:[%s2 + $0x28] sm:$0xf]
        %v602 = vld [vmem:[%s2 + $0x2c] sm:$0xf]
        %v603 = vld [vmem:[%s2 + $0x30] sm:$0xf]
        %v604 = vld [vmem:[%s2 + $0x34] sm:$0xf]
        %v605 = vld [vmem:[%s2 + $0x38] sm:$0xf]
        %v606 = vld [vmem:[%s2 + $0x3c] sm:$0xf]
        %v607 = vpack.c.bf16 %v589, %v589
        %v608 = vld [vmem:[%s3] sm:$0xff]
        %v609 = vld [vmem:[%s3 + $0x8] sm:$0xff]
        %v610 = vld [vmem:[%s3 + $0x10] sm:$0xff]
        %v611 = vld [vmem:[%s3 + $0x18] sm:$0xff]
        %v612 = vld [vmem:[%s3 + $0x20] sm:$0xff]
        %v613 = vld [vmem:[%s3 + $0x28] sm:$0xff]
        %v614 = vld [vmem:[%s3 + $0x30] sm:$0xff]
        %v615 = vld [vmem:[%s3 + $0x38] sm:$0xff]
        %v616 = vld [vmem:[%s3 + $0x40] sm:$0xff]
        %v617 = vld [vmem:[%s3 + $0x48] sm:$0xff]
        %v618 = vld [vmem:[%s3 + $0x50] sm:$0xff]
        %v619 = vld [vmem:[%s3 + $0x58] sm:$0xff]
        %v620 = vld [vmem:[%s3 + $0x60] sm:$0xff]
        %v621 = vld [vmem:[%s3 + $0x68] sm:$0xff]
        %v622 = vld [vmem:[%s3 + $0x70] sm:$0xff]
        %v623 = vld [vmem:[%s3 + $0x78] sm:$0xff]
        %625 = vset.pattern.permute.xlu0 0
        %626 = vperm.xlu0 %625, %v608
        %v627 = vpop.permute.xlu0 %626
        %630 = vset.pattern.permute.xlu0 0
        %631 = vperm.xlu0 %630, %v609
        %v632 = vpop.permute.xlu0 %631
        %635 = vset.pattern.permute.xlu0 0
        %636 = vperm.xlu0 %635, %v610
        %v637 = vpop.permute.xlu0 %636
        %640 = vset.pattern.permute.xlu0 0
        %641 = vperm.xlu0 %640, %v611
        %v642 = vpop.permute.xlu0 %641
        %645 = vset.pattern.permute.xlu0 0
        %646 = vperm.xlu0 %645, %v612
        %v647 = vpop.permute.xlu0 %646
        %650 = vset.pattern.permute.xlu0 0
        %651 = vperm.xlu0 %650, %v613
        %v652 = vpop.permute.xlu0 %651
        %655 = vset.pattern.permute.xlu0 0
        %656 = vperm.xlu0 %655, %v614
        %v657 = vpop.permute.xlu0 %656
        %660 = vset.pattern.permute.xlu0 0
        %661 = vperm.xlu0 %660, %v615
        %v662 = vpop.permute.xlu0 %661
        %665 = vset.pattern.permute.xlu0 0
        %666 = vperm.xlu0 %665, %v616
        %v667 = vpop.permute.xlu0 %666
        %670 = vset.pattern.permute.xlu0 0
        %671 = vperm.xlu0 %670, %v617
        %v672 = vpop.permute.xlu0 %671
        %675 = vset.pattern.permute.xlu0 0
        %676 = vperm.xlu0 %675, %v618
        %v677 = vpop.permute.xlu0 %676
        %680 = vset.pattern.permute.xlu0 0
        %681 = vperm.xlu0 %680, %v619
        %v682 = vpop.permute.xlu0 %681
        %685 = vset.pattern.permute.xlu0 0
        %686 = vperm.xlu0 %685, %v620
        %v687 = vpop.permute.xlu0 %686
        %690 = vset.pattern.permute.xlu0 0
        %691 = vperm.xlu0 %690, %v621
        %v692 = vpop.permute.xlu0 %691
        %695 = vset.pattern.permute.xlu0 0
        %696 = vperm.xlu0 %695, %v622
        %v697 = vpop.permute.xlu0 %696
        %700 = vset.pattern.permute.xlu0 0
        %701 = vperm.xlu0 %700, %v623
        %v702 = vpop.permute.xlu0 %701
        %v720 = vunpack.c.l.b16 %v591
        %v721 = vunpack.c.l.b16 %v592
        %v722 = vunpack.c.l.b16 %v593
        %v723 = vunpack.c.l.b16 %v594
        %v724 = vunpack.c.l.b16 %v595
        %v725 = vunpack.c.l.b16 %v596
        %v726 = vunpack.c.l.b16 %v597
        %v727 = vunpack.c.l.b16 %v598
        %v728 = vunpack.c.l.b16 %v599
        %v729 = vunpack.c.l.b16 %v600
        %v730 = vunpack.c.l.b16 %v601
        %v731 = vunpack.c.l.b16 %v602
        %v732 = vunpack.c.l.b16 %v603
        %v733 = vunpack.c.l.b16 %v604
        %v734 = vunpack.c.l.b16 %v605
        %v735 = vunpack.c.l.b16 %v606
        %v736 = vpack.c.b16 %v721, %v720
        %v737 = vpack.c.b16 %v723, %v722
        %v738 = vpack.c.b16 %v725, %v724
        %v739 = vpack.c.b16 %v727, %v726
        %v740 = vpack.c.b16 %v729, %v728
        %v741 = vpack.c.b16 %v731, %v730
        %v742 = vpack.c.b16 %v733, %v732
        %v743 = vpack.c.b16 %v735, %v734
        %vm744 = vcmask 64512
        %v746 = vsel %vm744, %v736, 0
        %v749 = vsel %vm744, %v737, 0
        %v752 = vsel %vm744, %v738, 0
        %v755 = vsel %vm744, %v739, 0
        %v758 = vsel %vm744, %v740, 0
        %v761 = vsel %vm744, %v741, 0
        %v764 = vsel %vm744, %v742, 0
        %v767 = vsel %vm744, %v743, 0
        %vm769 = vcmask 1043456
        %v771 = vsel %vm769, %v607, 0
        %773 = vmatprep.subr.bf16.mxu0 0
        %774 = vmatpush1.bf16.msra.mxu0 %v771
        %775 = vmatprep.subr.bf16.mxu0 0
        %776 = vmatpush1.bf16.msra.mxu0 0
        %777 = vmatprep.subr.bf16.mxu0 0
        %778 = vmatpush1.bf16.msra.mxu0 0
        %779 = vmatprep.subr.bf16.mxu0 0
        %780 = vmatpush1.bf16.msra.mxu0 0
        %781 = vmatprep.subr.bf16.mxu0 0
        %782 = vmatpush1.bf16.msra.mxu0 0
        %783 = vmatprep.subr.bf16.mxu0 0
        %784 = vmatpush1.bf16.msra.mxu0 0
        %785 = vmatprep.subr.bf16.mxu0 0
        %786 = vmatpush1.bf16.msra.mxu0 0
        %787 = vmatprep.subr.bf16.mxu0 0
        %788 = vmatpush1.bf16.msra.mxu0 0
        %789 = vmatprep.subr.bf16.mxu0 0
        %790 = vmatpush1.bf16.msra.mxu0 0
        %791 = vmatprep.subr.bf16.mxu0 0
        %792 = vmatpush1.bf16.msra.mxu0 0
        %793 = vmatprep.subr.bf16.mxu0 0
        %794 = vmatpush1.bf16.msra.mxu0 0
        %795 = vmatprep.subr.bf16.mxu0 0
        %796 = vmatpush1.bf16.msra.mxu0 0
        %797 = vmatprep.subr.bf16.mxu0 0
        %798 = vmatpush1.bf16.msra.mxu0 0
        %799 = vmatprep.subr.bf16.mxu0 0
        %800 = vmatpush1.bf16.msra.mxu0 0
        %801 = vmatprep.subr.bf16.mxu0 0
        %802 = vmatpush1.bf16.msra.mxu0 0
        %803 = vmatprep.subr.bf16.mxu0 0
        %804 = vmatpush1.bf16.msra.mxu0 0
        %805 = vmatprep.mubr.bf16.mxu0 0
        %806 = vmatmul.mubr.bf16.gmra.mrb[0].mxu0 %v746
        %v807 = vpop.f32.mrb[0].mxu0
        %v808 = vadd.f32 %v627, %v807
        %v809 = vpop.f32.mrb[0].mxu0
        %v810 = vpop.f32.mrb[0].mxu0
        %v811 = vadd.f32 %v632, %v810
        %v812 = vpop.f32.mrb[0].mxu0
        %813 = vmatprep.mubr.bf16.mxu0 0
        %814 = vmatmul.mubr.bf16.gmra.mrb[0].mxu0 %v749
        %v815 = vpop.f32.mrb[0].mxu0
        %v816 = vadd.f32 %v637, %v815
        %v817 = vpop.f32.mrb[0].mxu0
        %v818 = vpop.f32.mrb[0].mxu0
        %v819 = vadd.f32 %v642, %v818
        %v820 = vpop.f32.mrb[0].mxu0
        %821 = vmatprep.mubr.bf16.mxu0 0
        %822 = vmatmul.mubr.bf16.gmra.mrb[0].mxu0 %v752
        %v823 = vpop.f32.mrb[0].mxu0
        %v824 = vadd.f32 %v647, %v823
        %v825 = vpop.f32.mrb[0].mxu0
        %v826 = vpop.f32.mrb[0].mxu0
        %v827 = vadd.f32 %v652, %v826
        %v828 = vpop.f32.mrb[0].mxu0
        %829 = vmatprep.mubr.bf16.mxu0 0
        %830 = vmatmul.mubr.bf16.gmra.mrb[0].mxu0 %v755
        %v831 = vpop.f32.mrb[0].mxu0
        %v832 = vadd.f32 %v657, %v831
        %v833 = vpop.f32.mrb[0].mxu0
        %v834 = vpop.f32.mrb[0].mxu0
        %v835 = vadd.f32 %v662, %v834
        %v836 = vpop.f32.mrb[0].mxu0
        %837 = vmatprep.mubr.bf16.mxu0 0
        %838 = vmatmul.mubr.bf16.gmra.mrb[0].mxu0 %v758
        %v839 = vpop.f32.mrb[0].mxu0
        %v840 = vadd.f32 %v667, %v839
        %v841 = vpop.f32.mrb[0].mxu0
        %v842 = vpop.f32.mrb[0].mxu0
        %v843 = vadd.f32 %v672, %v842
        %v844 = vpop.f32.mrb[0].mxu0
        %845 = vmatprep.mubr.bf16.mxu0 0
        %846 = vmatmul.mubr.bf16.gmra.mrb[0].mxu0 %v761
        %v847 = vpop.f32.mrb[0].mxu0
        %v848 = vadd.f32 %v677, %v847
        %v849 = vpop.f32.mrb[0].mxu0
        %v850 = vpop.f32.mrb[0].mxu0
        %v851 = vadd.f32 %v682, %v850
        %v852 = vpop.f32.mrb[0].mxu0
        %853 = vmatprep.mubr.bf16.mxu0 0
        %854 = vmatmul.mubr.bf16.gmra.mrb[0].mxu0 %v764
        %v855 = vpop.f32.mrb[0].mxu0
        %v856 = vadd.f32 %v687, %v855
        %v857 = vpop.f32.mrb[0].mxu0
        %v858 = vpop.f32.mrb[0].mxu0
        %v859 = vadd.f32 %v692, %v858
        %v860 = vpop.f32.mrb[0].mxu0
        %861 = vmatprep.mubr.bf16.mxu0 0
        %862 = vmatmul.mubr.bf16.gmra.mrb[0].mxu0 %v767
        %v863 = vpop.f32.mrb[0].mxu0
        %v864 = vadd.f32 %v697, %v863
        %v865 = vpop.f32.mrb[0].mxu0
        %v866 = vpop.f32.mrb[0].mxu0
        %v867 = vadd.f32 %v702, %v866
        %v868 = vpop.f32.mrb[0].mxu0
        %869 = vdwg.mxu0
        %v870 = vmax.f32 %v808, 0.0
        %v871 = vmax.f32 %v811, 0.0
        %v872 = vmax.f32 %v816, 0.0
        %v873 = vmax.f32 %v819, 0.0
        %v874 = vmax.f32 %v824, 0.0
        %v875 = vmax.f32 %v827, 0.0
        %v876 = vmax.f32 %v832, 0.0
        %v877 = vmax.f32 %v835, 0.0
        %v878 = vmax.f32 %v840, 0.0
        %v879 = vmax.f32 %v843, 0.0
        %v880 = vmax.f32 %v848, 0.0
        %v881 = vmax.f32 %v851, 0.0
        %v882 = vmax.f32 %v856, 0.0
        %v883 = vmax.f32 %v859, 0.0
        %v884 = vmax.f32 %v864, 0.0
        %v885 = vmax.f32 %v867, 0.0
        %v886 = vld [vmem:[%s4] sm:$0xf]
        %v887 = vld [vmem:[%s4 + $0x4] sm:$0xf]
        %v888 = vld [vmem:[%s4 + $0x8] sm:$0xf]
        %v889 = vld [vmem:[%s4 + $0xc] sm:$0xf]
        %v890 = vld [vmem:[%s4 + $0x10] sm:$0xf]
        %v891 = vld [vmem:[%s4 + $0x14] sm:$0xf]
        %v892 = vld [vmem:[%s4 + $0x18] sm:$0xf]
        %v893 = vld [vmem:[%s4 + $0x1c] sm:$0xf]
        %v894 = vld [vmem:[%s4 + $0x20] sm:$0xf]
        %v895 = vld [vmem:[%s4 + $0x24] sm:$0xf]
        %v896 = vld [vmem:[%s4 + $0x28] sm:$0xf]
        %v897 = vld [vmem:[%s4 + $0x2c] sm:$0xf]
        %v898 = vld [vmem:[%s4 + $0x30] sm:$0xf]
        %v899 = vld [vmem:[%s4 + $0x34] sm:$0xf]
        %v900 = vld [vmem:[%s4 + $0x38] sm:$0xf]
        %v901 = vld [vmem:[%s4 + $0x3c] sm:$0xf]
        %v902 = vpack.c.bf16 %v871, %v870
        %v903 = vpack.c.bf16 %v873, %v872
        %v904 = vpack.c.bf16 %v875, %v874
        %v905 = vpack.c.bf16 %v877, %v876
        %v906 = vpack.c.bf16 %v879, %v878
        %v907 = vpack.c.bf16 %v881, %v880
        %v908 = vpack.c.bf16 %v883, %v882
        %v909 = vpack.c.bf16 %v885, %v884
        %v910 = vld [vmem:[%s5] sm:$0xff]
        %v911 = vld [vmem:[%s5 + $0x8] sm:$0xff]
        %v912 = vld [vmem:[%s5 + $0x10] sm:$0xff]
        %v913 = vld [vmem:[%s5 + $0x18] sm:$0xff]
        %v914 = vld [vmem:[%s5 + $0x20] sm:$0xff]
        %v915 = vld [vmem:[%s5 + $0x28] sm:$0xff]
        %v916 = vld [vmem:[%s5 + $0x30] sm:$0xff]
        %v917 = vld [vmem:[%s5 + $0x38] sm:$0xff]
        %v918 = vld [vmem:[%s5 + $0x40] sm:$0xff]
        %v919 = vld [vmem:[%s5 + $0x48] sm:$0xff]
        %v920 = vld [vmem:[%s5 + $0x50] sm:$0xff]
        %v921 = vld [vmem:[%s5 + $0x58] sm:$0xff]
        %v922 = vld [vmem:[%s5 + $0x60] sm:$0xff]
        %v923 = vld [vmem:[%s5 + $0x68] sm:$0xff]
        %v924 = vld [vmem:[%s5 + $0x70] sm:$0xff]
        %v925 = vld [vmem:[%s5 + $0x78] sm:$0xff]
        %927 = vset.pattern.permute.xlu0 0
        %928 = vperm.xlu0 %927, %v910
        %v929 = vpop.permute.xlu0 %928
        %932 = vset.pattern.permute.xlu0 0
        %933 = vperm.xlu0 %932, %v911
        %v934 = vpop.permute.xlu0 %933
        %937 = vset.pattern.permute.xlu0 0
        %938 = vperm.xlu0 %937, %v912
        %v939 = vpop.permute.xlu0 %938
        %942 = vset.pattern.permute.xlu0 0
        %943 = vperm.xlu0 %942, %v913
        %v944 = vpop.permute.xlu0 %943
        %947 = vset.pattern.permute.xlu0 0
        %948 = vperm.xlu0 %947, %v914
        %v949 = vpop.permute.xlu0 %948
        %952 = vset.pattern.permute.xlu0 0
        %953 = vperm.xlu0 %952, %v915
        %v954 = vpop.permute.xlu0 %953
        %957 = vset.pattern.permute.xlu0 0
        %958 = vperm.xlu0 %957, %v916
        %v959 = vpop.permute.xlu0 %958
        %962 = vset.pattern.permute.xlu0 0
        %963 = vperm.xlu0 %962, %v917
        %v964 = vpop.permute.xlu0 %963
        %967 = vset.pattern.permute.xlu0 0
        %968 = vperm.xlu0 %967, %v918
        %v969 = vpop.permute.xlu0 %968
        %972 = vset.pattern.permute.xlu0 0
        %973 = vperm.xlu0 %972, %v919
        %v974 = vpop.permute.xlu0 %973
        %977 = vset.pattern.permute.xlu0 0
        %978 = vperm.xlu0 %977, %v920
        %v979 = vpop.permute.xlu0 %978
        %982 = vset.pattern.permute.xlu0 0
        %983 = vperm.xlu0 %982, %v921
        %v984 = vpop.permute.xlu0 %983
        %987 = vset.pattern.permute.xlu0 0
        %988 = vperm.xlu0 %987, %v922
        %v989 = vpop.permute.xlu0 %988
        %992 = vset.pattern.permute.xlu0 0
        %993 = vperm.xlu0 %992, %v923
        %v994 = vpop.permute.xlu0 %993
        %997 = vset.pattern.permute.xlu0 0
        %998 = vperm.xlu0 %997, %v924
        %v999 = vpop.permute.xlu0 %998
        %1002 = vset.pattern.permute.xlu0 0
        %1003 = vperm.xlu0 %1002, %v925
        %v1004 = vpop.permute.xlu0 %1003
        %v1022 = vunpack.c.l.b16 %v886
        %v1023 = vunpack.c.l.b16 %v887
        %v1024 = vunpack.c.l.b16 %v888
        %v1025 = vunpack.c.l.b16 %v889
        %v1026 = vunpack.c.l.b16 %v890
        %v1027 = vunpack.c.l.b16 %v891
        %v1028 = vunpack.c.l.b16 %v892
        %v1029 = vunpack.c.l.b16 %v893
        %v1030 = vunpack.c.l.b16 %v894
        %v1031 = vunpack.c.l.b16 %v895
        %v1032 = vunpack.c.l.b16 %v896
        %v1033 = vunpack.c.l.b16 %v897
        %v1034 = vunpack.c.l.b16 %v898
        %v1035 = vunpack.c.l.b16 %v899
        %v1036 = vunpack.c.l.b16 %v900
        %v1037 = vunpack.c.l.b16 %v901
        %v1038 = vpack.c.b16 %v1023, %v1022
        %v1039 = vpack.c.b16 %v1025, %v1024
        %v1040 = vpack.c.b16 %v1027, %v1026
        %v1041 = vpack.c.b16 %v1029, %v1028
        %v1042 = vpack.c.b16 %v1031, %v1030
        %v1043 = vpack.c.b16 %v1033, %v1032
        %v1044 = vpack.c.b16 %v1035, %v1034
        %v1045 = vpack.c.b16 %v1037, %v1036
        %1054 = vmatprep.subr.bf16.mxu0 0
        %1055 = vmatpush1.bf16.msra.mxu0 %v902
        %1056 = vmatprep.subr.bf16.mxu0 0
        %1057 = vmatpush1.bf16.msra.mxu0 %v903
        %1058 = vmatprep.subr.bf16.mxu0 0
        %1059 = vmatpush1.bf16.msra.mxu0 %v904
        %1060 = vmatprep.subr.bf16.mxu0 0
        %1061 = vmatpush1.bf16.msra.mxu0 %v905
        %1062 = vmatprep.subr.bf16.mxu0 0
        %1063 = vmatpush1.bf16.msra.mxu0 %v906
        %1064 = vmatprep.subr.bf16.mxu0 0
        %1065 = vmatpush1.bf16.msra.mxu0 %v907
        %1066 = vmatprep.subr.bf16.mxu0 0
        %1067 = vmatpush1.bf16.msra.mxu0 %v908
        %1068 = vmatprep.subr.bf16.mxu0 0
        %1069 = vmatpush1.bf16.msra.mxu0 %v909
        %1070 = vmatprep.subr.bf16.mxu0 0
        %1071 = vmatpush1.bf16.msra.mxu0 0
        %1072 = vmatprep.subr.bf16.mxu0 0
        %1073 = vmatpush1.bf16.msra.mxu0 0
        %1074 = vmatprep.subr.bf16.mxu0 0
        %1075 = vmatpush1.bf16.msra.mxu0 0
        %1076 = vmatprep.subr.bf16.mxu0 0
        %1077 = vmatpush1.bf16.msra.mxu0 0
        %1078 = vmatprep.subr.bf16.mxu0 0
        %1079 = vmatpush1.bf16.msra.mxu0 0
        %1080 = vmatprep.subr.bf16.mxu0 0
        %1081 = vmatpush1.bf16.msra.mxu0 0
        %1082 = vmatprep.subr.bf16.mxu0 0
        %1083 = vmatpush1.bf16.msra.mxu0 0
        %1084 = vmatprep.subr.bf16.mxu0 0
        %1085 = vmatpush1.bf16.msra.mxu0 0
        %1086 = vmatprep.mubr.bf16.mxu0 0
        %1087 = vmatmul.mubr.bf16.gmra.mrb[0].mxu0 %v1038
        %v1088 = vpop.f32.mrb[0].mxu0
        %v1089 = vadd.f32 %v929, %v1088
        %v1090 = vpop.f32.mrb[0].mxu0
        %v1091 = vpop.f32.mrb[0].mxu0
        %v1092 = vadd.f32 %v934, %v1091
        %v1093 = vpop.f32.mrb[0].mxu0
        %1094 = vmatprep.mubr.bf16.mxu0 0
        %1095 = vmatmul.mubr.bf16.gmra.mrb[0].mxu0 %v1039
        %v1096 = vpop.f32.mrb[0].mxu0
        %v1097 = vadd.f32 %v939, %v1096
        %v1098 = vpop.f32.mrb[0].mxu0
        %v1099 = vpop.f32.mrb[0].mxu0
        %v1100 = vadd.f32 %v944, %v1099
        %v1101 = vpop.f32.mrb[0].mxu0
        %1102 = vmatprep.mubr.bf16.mxu0 0
        %1103 = vmatmul.mubr.bf16.gmra.mrb[0].mxu0 %v1040
        %v1104 = vpop.f32.mrb[0].mxu0
        %v1105 = vadd.f32 %v949, %v1104
        %v1106 = vpop.f32.mrb[0].mxu0
        %v1107 = vpop.f32.mrb[0].mxu0
        %v1108 = vadd.f32 %v954, %v1107
        %v1109 = vpop.f32.mrb[0].mxu0
        %1110 = vmatprep.mubr.bf16.mxu0 0
        %1111 = vmatmul.mubr.bf16.gmra.mrb[0].mxu0 %v1041
        %v1112 = vpop.f32.mrb[0].mxu0
        %v1113 = vadd.f32 %v959, %v1112
        %v1114 = vpop.f32.mrb[0].mxu0
        %v1115 = vpop.f32.mrb[0].mxu0
        %v1116 = vadd.f32 %v964, %v1115
        %v1117 = vpop.f32.mrb[0].mxu0
        %1118 = vmatprep.mubr.bf16.mxu0 0
        %1119 = vmatmul.mubr.bf16.gmra.mrb[0].mxu0 %v1042
        %v1120 = vpop.f32.mrb[0].mxu0
        %v1121 = vadd.f32 %v969, %v1120
        %v1122 = vpop.f32.mrb[0].mxu0
        %v1123 = vpop.f32.mrb[0].mxu0
        %v1124 = vadd.f32 %v974, %v1123
        %v1125 = vpop.f32.mrb[0].mxu0
        %1126 = vmatprep.mubr.bf16.mxu0 0
        %1127 = vmatmul.mubr.bf16.gmra.mrb[0].mxu0 %v1043
        %v1128 = vpop.f32.mrb[0].mxu0
        %v1129 = vadd.f32 %v979, %v1128
        %v1130 = vpop.f32.mrb[0].mxu0
        %v1131 = vpop.f32.mrb[0].mxu0
        %v1132 = vadd.f32 %v984, %v1131
        %v1133 = vpop.f32.mrb[0].mxu0
        %1134 = vmatprep.mubr.bf16.mxu0 0
        %1135 = vmatmul.mubr.bf16.gmra.mrb[0].mxu0 %v1044
        %v1136 = vpop.f32.mrb[0].mxu0
        %v1137 = vadd.f32 %v989, %v1136
        %v1138 = vpop.f32.mrb[0].mxu0
        %v1139 = vpop.f32.mrb[0].mxu0
        %v1140 = vadd.f32 %v994, %v1139
        %v1141 = vpop.f32.mrb[0].mxu0
        %1142 = vmatprep.mubr.bf16.mxu0 0
        %1143 = vmatmul.mubr.bf16.gmra.mrb[0].mxu0 %v1045
        %v1144 = vpop.f32.mrb[0].mxu0
        %v1145 = vadd.f32 %v999, %v1144
        %v1146 = vpop.f32.mrb[0].mxu0
        %v1147 = vpop.f32.mrb[0].mxu0
        %v1148 = vadd.f32 %v1004, %v1147
        %v1149 = vpop.f32.mrb[0].mxu0
        %1150 = vdwg.mxu0
        %v1151 = vmax.f32 %v1089, 0.0
        %v1152 = vmax.f32 %v1092, 0.0
        %v1153 = vmax.f32 %v1097, 0.0
        %v1154 = vmax.f32 %v1100, 0.0
        %v1155 = vmax.f32 %v1105, 0.0
        %v1156 = vmax.f32 %v1108, 0.0
        %v1157 = vmax.f32 %v1113, 0.0
        %v1158 = vmax.f32 %v1116, 0.0
        %v1159 = vmax.f32 %v1121, 0.0
        %v1160 = vmax.f32 %v1124, 0.0
        %v1161 = vmax.f32 %v1129, 0.0
        %v1162 = vmax.f32 %v1132, 0.0
        %v1163 = vmax.f32 %v1137, 0.0
        %v1164 = vmax.f32 %v1140, 0.0
        %v1165 = vmax.f32 %v1145, 0.0
        %v1166 = vmax.f32 %v1148, 0.0
        %v1167 = vadd.f32 %v870, %v1151
        %v1168 = vadd.f32 %v871, %v1152
        %v1169 = vadd.f32 %v872, %v1153
        %v1170 = vadd.f32 %v873, %v1154
        %v1171 = vadd.f32 %v874, %v1155
        %v1172 = vadd.f32 %v875, %v1156
        %v1173 = vadd.f32 %v876, %v1157
        %v1174 = vadd.f32 %v877, %v1158
        %v1175 = vadd.f32 %v878, %v1159
        %v1176 = vadd.f32 %v879, %v1160
        %v1177 = vadd.f32 %v880, %v1161
        %v1178 = vadd.f32 %v881, %v1162
        %v1179 = vadd.f32 %v882, %v1163
        %v1180 = vadd.f32 %v883, %v1164
        %v1181 = vadd.f32 %v884, %v1165
        %v1182 = vadd.f32 %v885, %v1166
        %v1183 = vld [vmem:[%s6] sm:$0xf]
        %v1184 = vld [vmem:[%s6 + $0x4] sm:$0xf]
        %v1185 = vld [vmem:[%s6 + $0x8] sm:$0xf]
        %v1186 = vld [vmem:[%s6 + $0xc] sm:$0xf]
        %v1187 = vld [vmem:[%s6 + $0x10] sm:$0xf]
        %v1188 = vld [vmem:[%s6 + $0x14] sm:$0xf]
        %v1189 = vld [vmem:[%s6 + $0x18] sm:$0xf]
        %v1190 = vld [vmem:[%s6 + $0x1c] sm:$0xf]
        %v1191 = vld [vmem:[%s6 + $0x20] sm:$0xf]
        %v1192 = vld [vmem:[%s6 + $0x24] sm:$0xf]
        %v1193 = vld [vmem:[%s6 + $0x28] sm:$0xf]
        %v1194 = vld [vmem:[%s6 + $0x2c] sm:$0xf]
        %v1195 = vld [vmem:[%s6 + $0x30] sm:$0xf]
        %v1196 = vld [vmem:[%s6 + $0x34] sm:$0xf]
        %v1197 = vld [vmem:[%s6 + $0x38] sm:$0xf]
        %v1198 = vld [vmem:[%s6 + $0x3c] sm:$0xf]
        %v1199 = vpack.c.bf16 %v1168, %v1167
        %v1200 = vpack.c.bf16 %v1170, %v1169
        %v1201 = vpack.c.bf16 %v1172, %v1171
        %v1202 = vpack.c.bf16 %v1174, %v1173
        %v1203 = vpack.c.bf16 %v1176, %v1175
        %v1204 = vpack.c.bf16 %v1178, %v1177
        %v1205 = vpack.c.bf16 %v1180, %v1179
        %v1206 = vpack.c.bf16 %v1182, %v1181
        %v1207 = vld [vmem:[%s7] sm:$0xff]
        %v1208 = vld [vmem:[%s7 + $0x8] sm:$0xff]
        %v1209 = vld [vmem:[%s7 + $0x10] sm:$0xff]
        %v1210 = vld [vmem:[%s7 + $0x18] sm:$0xff]
        %v1211 = vld [vmem:[%s7 + $0x20] sm:$0xff]
        %v1212 = vld [vmem:[%s7 + $0x28] sm:$0xff]
        %v1213 = vld [vmem:[%s7 + $0x30] sm:$0xff]
        %v1214 = vld [vmem:[%s7 + $0x38] sm:$0xff]
        %v1215 = vld [vmem:[%s7 + $0x40] sm:$0xff]
        %v1216 = vld [vmem:[%s7 + $0x48] sm:$0xff]
        %v1217 = vld [vmem:[%s7 + $0x50] sm:$0xff]
        %v1218 = vld [vmem:[%s7 + $0x58] sm:$0xff]
        %v1219 = vld [vmem:[%s7 + $0x60] sm:$0xff]
        %v1220 = vld [vmem:[%s7 + $0x68] sm:$0xff]
        %v1221 = vld [vmem:[%s7 + $0x70] sm:$0xff]
        %v1222 = vld [vmem:[%s7 + $0x78] sm:$0xff]
        %1224 = vset.pattern.permute.xlu0 0
        %1225 = vperm.xlu0 %1224, %v1207
        %v1226 = vpop.permute.xlu0 %1225
        %1229 = vset.pattern.permute.xlu0 0
        %1230 = vperm.xlu0 %1229, %v1208
        %v1231 = vpop.permute.xlu0 %1230
        %1234 = vset.pattern.permute.xlu0 0
        %1235 = vperm.xlu0 %1234, %v1209
        %v1236 = vpop.permute.xlu0 %1235
        %1239 = vset.pattern.permute.xlu0 0
        %1240 = vperm.xlu0 %1239, %v1210
        %v1241 = vpop.permute.xlu0 %1240
        %1244 = vset.pattern.permute.xlu0 0
        %1245 = vperm.xlu0 %1244, %v1211
        %v1246 = vpop.permute.xlu0 %1245
        %1249 = vset.pattern.permute.xlu0 0
        %1250 = vperm.xlu0 %1249, %v1212
        %v1251 = vpop.permute.xlu0 %1250
        %1254 = vset.pattern.permute.xlu0 0
        %1255 = vperm.xlu0 %1254, %v1213
        %v1256 = vpop.permute.xlu0 %1255
        %1259 = vset.pattern.permute.xlu0 0
        %1260 = vperm.xlu0 %1259, %v1214
        %v1261 = vpop.permute.xlu0 %1260
        %1264 = vset.pattern.permute.xlu0 0
        %1265 = vperm.xlu0 %1264, %v1215
        %v1266 = vpop.permute.xlu0 %1265
        %1269 = vset.pattern.permute.xlu0 0
        %1270 = vperm.xlu0 %1269, %v1216
        %v1271 = vpop.permute.xlu0 %1270
        %1274 = vset.pattern.permute.xlu0 0
        %1275 = vperm.xlu0 %1274, %v1217
        %v1276 = vpop.permute.xlu0 %1275
        %1279 = vset.pattern.permute.xlu0 0
        %1280 = vperm.xlu0 %1279, %v1218
        %v1281 = vpop.permute.xlu0 %1280
        %1284 = vset.pattern.permute.xlu0 0
        %1285 = vperm.xlu0 %1284, %v1219
        %v1286 = vpop.permute.xlu0 %1285
        %1289 = vset.pattern.permute.xlu0 0
        %1290 = vperm.xlu0 %1289, %v1220
        %v1291 = vpop.permute.xlu0 %1290
        %1294 = vset.pattern.permute.xlu0 0
        %1295 = vperm.xlu0 %1294, %v1221
        %v1296 = vpop.permute.xlu0 %1295
        %1299 = vset.pattern.permute.xlu0 0
        %1300 = vperm.xlu0 %1299, %v1222
        %v1301 = vpop.permute.xlu0 %1300
        %v1319 = vunpack.c.l.b16 %v1183
        %v1320 = vunpack.c.l.b16 %v1184
        %v1321 = vunpack.c.l.b16 %v1185
        %v1322 = vunpack.c.l.b16 %v1186
        %v1323 = vunpack.c.l.b16 %v1187
        %v1324 = vunpack.c.l.b16 %v1188
        %v1325 = vunpack.c.l.b16 %v1189
        %v1326 = vunpack.c.l.b16 %v1190
        %v1327 = vunpack.c.l.b16 %v1191
        %v1328 = vunpack.c.l.b16 %v1192
        %v1329 = vunpack.c.l.b16 %v1193
        %v1330 = vunpack.c.l.b16 %v1194
        %v1331 = vunpack.c.l.b16 %v1195
        %v1332 = vunpack.c.l.b16 %v1196
        %v1333 = vunpack.c.l.b16 %v1197
        %v1334 = vunpack.c.l.b16 %v1198
        %v1335 = vpack.c.b16 %v1320, %v1319
        %v1336 = vpack.c.b16 %v1322, %v1321
        %v1337 = vpack.c.b16 %v1324, %v1323
        %v1338 = vpack.c.b16 %v1326, %v1325
        %v1339 = vpack.c.b16 %v1328, %v1327
        %v1340 = vpack.c.b16 %v1330, %v1329
        %v1341 = vpack.c.b16 %v1332, %v1331
        %v1342 = vpack.c.b16 %v1334, %v1333
        %1351 = vmatprep.subr.bf16.mxu0 0
        %1352 = vmatpush1.bf16.msra.mxu0 %v1199
        %1353 = vmatprep.subr.bf16.mxu0 0
        %1354 = vmatpush1.bf16.msra.mxu0 %v1200
        %1355 = vmatprep.subr.bf16.mxu0 0
        %1356 = vmatpush1.bf16.msra.mxu0 %v1201
        %1357 = vmatprep.subr.bf16.mxu0 0
        %1358 = vmatpush1.bf16.msra.mxu0 %v1202
        %1359 = vmatprep.subr.bf16.mxu0 0
        %1360 = vmatpush1.bf16.msra.mxu0 %v1203
        %1361 = vmatprep.subr.bf16.mxu0 0
        %1362 = vmatpush1.bf16.msra.mxu0 %v1204
        %1363 = vmatprep.subr.bf16.mxu0 0
        %1364 = vmatpush1.bf16.msra.mxu0 %v1205
        %1365 = vmatprep.subr.bf16.mxu0 0
        %1366 = vmatpush1.bf16.msra.mxu0 %v1206
        %1367 = vmatprep.subr.bf16.mxu0 0
        %1368 = vmatpush1.bf16.msra.mxu0 0
        %1369 = vmatprep.subr.bf16.mxu0 0
        %1370 = vmatpush1.bf16.msra.mxu0 0
        %1371 = vmatprep.subr.bf16.mxu0 0
        %1372 = vmatpush1.bf16.msra.mxu0 0
        %1373 = vmatprep.subr.bf16.mxu0 0
        %1374 = vmatpush1.bf16.msra.mxu0 0
        %1375 = vmatprep.subr.bf16.mxu0 0
        %1376 = vmatpush1.bf16.msra.mxu0 0
        %1377 = vmatprep.subr.bf16.mxu0 0
        %1378 = vmatpush1.bf16.msra.mxu0 0
        %1379 = vmatprep.subr.bf16.mxu0 0
        %1380 = vmatpush1.bf16.msra.mxu0 0
        %1381 = vmatprep.subr.bf16.mxu0 0
        %1382 = vmatpush1.bf16.msra.mxu0 0
        %1383 = vmatprep.mubr.bf16.mxu0 0
        %1384 = vmatmul.mubr.bf16.gmra.mrb[0].mxu0 %v1335
        %v1385 = vpop.f32.mrb[0].mxu0
        %v1386 = vadd.f32 %v1226, %v1385
        %v1387 = vpop.f32.mrb[0].mxu0
        %v1388 = vpop.f32.mrb[0].mxu0
        %v1389 = vadd.f32 %v1231, %v1388
        %v1390 = vpop.f32.mrb[0].mxu0
        %1391 = vmatprep.mubr.bf16.mxu0 0
        %1392 = vmatmul.mubr.bf16.gmra.mrb[0].mxu0 %v1336
        %v1393 = vpop.f32.mrb[0].mxu0
        %v1394 = vadd.f32 %v1236, %v1393
        %v1395 = vpop.f32.mrb[0].mxu0
        %v1396 = vpop.f32.mrb[0].mxu0
        %v1397 = vadd.f32 %v1241, %v1396
        %v1398 = vpop.f32.mrb[0].mxu0
        %1399 = vmatprep.mubr.bf16.mxu0 0
        %1400 = vmatmul.mubr.bf16.gmra.mrb[0].mxu0 %v1337
        %v1401 = vpop.f32.mrb[0].mxu0
        %v1402 = vadd.f32 %v1246, %v1401
        %v1403 = vpop.f32.mrb[0].mxu0
        %v1404 = vpop.f32.mrb[0].mxu0
        %v1405 = vadd.f32 %v1251, %v1404
        %v1406 = vpop.f32.mrb[0].mxu0
        %1407 = vmatprep.mubr.bf16.mxu0 0
        %1408 = vmatmul.mubr.bf16.gmra.mrb[0].mxu0 %v1338
        %v1409 = vpop.f32.mrb[0].mxu0
        %v1410 = vadd.f32 %v1256, %v1409
        %v1411 = vpop.f32.mrb[0].mxu0
        %v1412 = vpop.f32.mrb[0].mxu0
        %v1413 = vadd.f32 %v1261, %v1412
        %v1414 = vpop.f32.mrb[0].mxu0
        %1415 = vmatprep.mubr.bf16.mxu0 0
        %1416 = vmatmul.mubr.bf16.gmra.mrb[0].mxu0 %v1339
        %v1417 = vpop.f32.mrb[0].mxu0
        %v1418 = vadd.f32 %v1266, %v1417
        %v1419 = vpop.f32.mrb[0].mxu0
        %v1420 = vpop.f32.mrb[0].mxu0
        %v1421 = vadd.f32 %v1271, %v1420
        %v1422 = vpop.f32.mrb[0].mxu0
        %1423 = vmatprep.mubr.bf16.mxu0 0
        %1424 = vmatmul.mubr.bf16.gmra.mrb[0].mxu0 %v1340
        %v1425 = vpop.f32.mrb[0].mxu0
        %v1426 = vadd.f32 %v1276, %v1425
        %v1427 = vpop.f32.mrb[0].mxu0
        %v1428 = vpop.f32.mrb[0].mxu0
        %v1429 = vadd.f32 %v1281, %v1428
        %v1430 = vpop.f32.mrb[0].mxu0
        %1431 = vmatprep.mubr.bf16.mxu0 0
        %1432 = vmatmul.mubr.bf16.gmra.mrb[0].mxu0 %v1341
        %v1433 = vpop.f32.mrb[0].mxu0
        %v1434 = vadd.f32 %v1286, %v1433
        %v1435 = vpop.f32.mrb[0].mxu0
        %v1436 = vpop.f32.mrb[0].mxu0
        %v1437 = vadd.f32 %v1291, %v1436
        %v1438 = vpop.f32.mrb[0].mxu0
        %1439 = vmatprep.mubr.bf16.mxu0 0
        %1440 = vmatmul.mubr.bf16.gmra.mrb[0].mxu0 %v1342
        %v1441 = vpop.f32.mrb[0].mxu0
        %v1442 = vadd.f32 %v1296, %v1441
        %v1443 = vpop.f32.mrb[0].mxu0
        %v1444 = vpop.f32.mrb[0].mxu0
        %v1445 = vadd.f32 %v1301, %v1444
        %v1446 = vpop.f32.mrb[0].mxu0
        %1447 = vdwg.mxu0
        %v1448 = vmax.f32 %v1386, 0.0
        %v1449 = vmax.f32 %v1389, 0.0
        %v1450 = vmax.f32 %v1394, 0.0
        %v1451 = vmax.f32 %v1397, 0.0
        %v1452 = vmax.f32 %v1402, 0.0
        %v1453 = vmax.f32 %v1405, 0.0
        %v1454 = vmax.f32 %v1410, 0.0
        %v1455 = vmax.f32 %v1413, 0.0
        %v1456 = vmax.f32 %v1418, 0.0
        %v1457 = vmax.f32 %v1421, 0.0
        %v1458 = vmax.f32 %v1426, 0.0
        %v1459 = vmax.f32 %v1429, 0.0
        %v1460 = vmax.f32 %v1434, 0.0
        %v1461 = vmax.f32 %v1437, 0.0
        %v1462 = vmax.f32 %v1442, 0.0
        %v1463 = vmax.f32 %v1445, 0.0
        %v1464 = vadd.f32 %v1167, %v1448
        %v1465 = vadd.f32 %v1168, %v1449
        %v1466 = vadd.f32 %v1169, %v1450
        %v1467 = vadd.f32 %v1170, %v1451
        %v1468 = vadd.f32 %v1171, %v1452
        %v1469 = vadd.f32 %v1172, %v1453
        %v1470 = vadd.f32 %v1173, %v1454
        %v1471 = vadd.f32 %v1174, %v1455
        %v1472 = vadd.f32 %v1175, %v1456
        %v1473 = vadd.f32 %v1176, %v1457
        %v1474 = vadd.f32 %v1177, %v1458
        %v1475 = vadd.f32 %v1178, %v1459
        %v1476 = vadd.f32 %v1179, %v1460
        %v1477 = vadd.f32 %v1180, %v1461
        %v1478 = vadd.f32 %v1181, %v1462
        %v1479 = vadd.f32 %v1182, %v1463
        %v1480 = vld [vmem:[%s8] sm:$0xf]
        %v1481 = vld [vmem:[%s8 + $0x4] sm:$0xf]
        %v1482 = vld [vmem:[%s8 + $0x8] sm:$0xf]
        %v1483 = vld [vmem:[%s8 + $0xc] sm:$0xf]
        %v1484 = vld [vmem:[%s8 + $0x10] sm:$0xf]
        %v1485 = vld [vmem:[%s8 + $0x14] sm:$0xf]
        %v1486 = vld [vmem:[%s8 + $0x18] sm:$0xf]
        %v1487 = vld [vmem:[%s8 + $0x1c] sm:$0xf]
        %v1488 = vld [vmem:[%s8 + $0x20] sm:$0xf]
        %v1489 = vld [vmem:[%s8 + $0x24] sm:$0xf]
        %v1490 = vld [vmem:[%s8 + $0x28] sm:$0xf]
        %v1491 = vld [vmem:[%s8 + $0x2c] sm:$0xf]
        %v1492 = vld [vmem:[%s8 + $0x30] sm:$0xf]
        %v1493 = vld [vmem:[%s8 + $0x34] sm:$0xf]
        %v1494 = vpack.c.bf16 %v1465, %v1464
        %v1495 = vpack.c.bf16 %v1467, %v1466
        %v1496 = vpack.c.bf16 %v1469, %v1468
        %v1497 = vpack.c.bf16 %v1471, %v1470
        %v1498 = vpack.c.bf16 %v1473, %v1472
        %v1499 = vpack.c.bf16 %v1475, %v1474
        %v1500 = vpack.c.bf16 %v1477, %v1476
        %v1501 = vpack.c.bf16 %v1479, %v1478
        %v1502 = vld [vmem:[%s9] sm:$0xff]
        %v1503 = vld [vmem:[%s9 + $0x8] sm:$0xff]
        %v1504 = vld [vmem:[%s9 + $0x10] sm:$0xff]
        %v1505 = vld [vmem:[%s9 + $0x18] sm:$0xff]
        %v1506 = vld [vmem:[%s9 + $0x20] sm:$0xff]
        %v1507 = vld [vmem:[%s9 + $0x28] sm:$0xff]
        %v1508 = vld [vmem:[%s9 + $0x30] sm:$0xff]
        %v1509 = vld [vmem:[%s9 + $0x38] sm:$0xff]
        %v1510 = vld [vmem:[%s9 + $0x40] sm:$0xff]
        %v1511 = vld [vmem:[%s9 + $0x48] sm:$0xff]
        %v1512 = vld [vmem:[%s9 + $0x50] sm:$0xff]
        %v1513 = vld [vmem:[%s9 + $0x58] sm:$0xff]
        %v1514 = vld [vmem:[%s9 + $0x60] sm:$0xff]
        %v1515 = vld [vmem:[%s9 + $0x68] sm:$0xff]
        %1517 = vset.pattern.permute.xlu0 0
        %1518 = vperm.xlu0 %1517, %v1502
        %v1519 = vpop.permute.xlu0 %1518
        %1522 = vset.pattern.permute.xlu0 0
        %1523 = vperm.xlu0 %1522, %v1503
        %v1524 = vpop.permute.xlu0 %1523
        %1527 = vset.pattern.permute.xlu0 0
        %1528 = vperm.xlu0 %1527, %v1504
        %v1529 = vpop.permute.xlu0 %1528
        %1532 = vset.pattern.permute.xlu0 0
        %1533 = vperm.xlu0 %1532, %v1505
        %v1534 = vpop.permute.xlu0 %1533
        %1537 = vset.pattern.permute.xlu0 0
        %1538 = vperm.xlu0 %1537, %v1506
        %v1539 = vpop.permute.xlu0 %1538
        %1542 = vset.pattern.permute.xlu0 0
        %1543 = vperm.xlu0 %1542, %v1507
        %v1544 = vpop.permute.xlu0 %1543
        %1547 = vset.pattern.permute.xlu0 0
        %1548 = vperm.xlu0 %1547, %v1508
        %v1549 = vpop.permute.xlu0 %1548
        %1552 = vset.pattern.permute.xlu0 0
        %1553 = vperm.xlu0 %1552, %v1509
        %v1554 = vpop.permute.xlu0 %1553
        %1557 = vset.pattern.permute.xlu0 0
        %1558 = vperm.xlu0 %1557, %v1510
        %v1559 = vpop.permute.xlu0 %1558
        %1562 = vset.pattern.permute.xlu0 0
        %1563 = vperm.xlu0 %1562, %v1511
        %v1564 = vpop.permute.xlu0 %1563
        %1567 = vset.pattern.permute.xlu0 0
        %1568 = vperm.xlu0 %1567, %v1512
        %v1569 = vpop.permute.xlu0 %1568
        %1572 = vset.pattern.permute.xlu0 0
        %1573 = vperm.xlu0 %1572, %v1513
        %v1574 = vpop.permute.xlu0 %1573
        %1577 = vset.pattern.permute.xlu0 0
        %1578 = vperm.xlu0 %1577, %v1514
        %v1579 = vpop.permute.xlu0 %1578
        %1582 = vset.pattern.permute.xlu0 0
        %1583 = vperm.xlu0 %1582, %v1515
        %v1584 = vpop.permute.xlu0 %1583
        %v1600 = vunpack.c.l.b16 %v1480
        %v1601 = vunpack.c.l.b16 %v1481
        %v1602 = vunpack.c.l.b16 %v1482
        %v1603 = vunpack.c.l.b16 %v1483
        %v1604 = vunpack.c.l.b16 %v1484
        %v1605 = vunpack.c.l.b16 %v1485
        %v1606 = vunpack.c.l.b16 %v1486
        %v1607 = vunpack.c.l.b16 %v1487
        %v1608 = vunpack.c.l.b16 %v1488
        %v1609 = vunpack.c.l.b16 %v1489
        %v1610 = vunpack.c.l.b16 %v1490
        %v1611 = vunpack.c.l.b16 %v1491
        %v1612 = vunpack.c.l.b16 %v1492
        %v1613 = vunpack.c.l.b16 %v1493
        %v1614 = vpack.c.b16 %v1601, %v1600
        %v1615 = vpack.c.b16 %v1603, %v1602
        %v1616 = vpack.c.b16 %v1605, %v1604
        %v1617 = vpack.c.b16 %v1607, %v1606
        %v1618 = vpack.c.b16 %v1609, %v1608
        %v1619 = vpack.c.b16 %v1611, %v1610
        %v1620 = vpack.c.b16 %v1613, %v1612
        %1628 = vmatprep.subr.bf16.mxu0 0
        %1629 = vmatpush1.bf16.msra.mxu0 %v1494
        %1630 = vmatprep.subr.bf16.mxu0 0
        %1631 = vmatpush1.bf16.msra.mxu0 %v1495
        %1632 = vmatprep.subr.bf16.mxu0 0
        %1633 = vmatpush1.bf16.msra.mxu0 %v1496
        %1634 = vmatprep.subr.bf16.mxu0 0
        %1635 = vmatpush1.bf16.msra.mxu0 %v1497
        %1636 = vmatprep.subr.bf16.mxu0 0
        %1637 = vmatpush1.bf16.msra.mxu0 %v1498
        %1638 = vmatprep.subr.bf16.mxu0 0
        %1639 = vmatpush1.bf16.msra.mxu0 %v1499
        %1640 = vmatprep.subr.bf16.mxu0 0
        %1641 = vmatpush1.bf16.msra.mxu0 %v1500
        %1642 = vmatprep.subr.bf16.mxu0 0
        %1643 = vmatpush1.bf16.msra.mxu0 %v1501
        %1644 = vmatprep.subr.bf16.mxu0 0
        %1645 = vmatpush1.bf16.msra.mxu0 0
        %1646 = vmatprep.subr.bf16.mxu0 0
        %1647 = vmatpush1.bf16.msra.mxu0 0
        %1648 = vmatprep.subr.bf16.mxu0 0
        %1649 = vmatpush1.bf16.msra.mxu0 0
        %1650 = vmatprep.subr.bf16.mxu0 0
        %1651 = vmatpush1.bf16.msra.mxu0 0
        %1652 = vmatprep.subr.bf16.mxu0 0
        %1653 = vmatpush1.bf16.msra.mxu0 0
        %1654 = vmatprep.subr.bf16.mxu0 0
        %1655 = vmatpush1.bf16.msra.mxu0 0
        %1656 = vmatprep.subr.bf16.mxu0 0
        %1657 = vmatpush1.bf16.msra.mxu0 0
        %1658 = vmatprep.subr.bf16.mxu0 0
        %1659 = vmatpush1.bf16.msra.mxu0 0
        %1660 = vmatprep.mubr.bf16.mxu0 0
        %1661 = vmatmul.mubr.bf16.gmra.mrb[0].mxu0 %v1614
        %v1662 = vpop.f32.mrb[0].mxu0
        %v1663 = vadd.f32 %v1519, %v1662
        %v1664 = vpop.f32.mrb[0].mxu0
        %v1665 = vpop.f32.mrb[0].mxu0
        %v1666 = vadd.f32 %v1524, %v1665
        %v1667 = vpop.f32.mrb[0].mxu0
        %1668 = vmatprep.mubr.bf16.mxu0 0
        %1669 = vmatmul.mubr.bf16.gmra.mrb[0].mxu0 %v1615
        %v1670 = vpop.f32.mrb[0].mxu0
        %v1671 = vadd.f32 %v1529, %v1670
        %v1672 = vpop.f32.mrb[0].mxu0
        %v1673 = vpop.f32.mrb[0].mxu0
        %v1674 = vadd.f32 %v1534, %v1673
        %v1675 = vpop.f32.mrb[0].mxu0
        %1676 = vmatprep.mubr.bf16.mxu0 0
        %1677 = vmatmul.mubr.bf16.gmra.mrb[0].mxu0 %v1616
        %v1678 = vpop.f32.mrb[0].mxu0
        %v1679 = vadd.f32 %v1539, %v1678
        %v1680 = vpop.f32.mrb[0].mxu0
        %v1681 = vpop.f32.mrb[0].mxu0
        %v1682 = vadd.f32 %v1544, %v1681
        %v1683 = vpop.f32.mrb[0].mxu0
        %1684 = vmatprep.mubr.bf16.mxu0 0
        %1685 = vmatmul.mubr.bf16.gmra.mrb[0].mxu0 %v1617
        %v1686 = vpop.f32.mrb[0].mxu0
        %v1687 = vadd.f32 %v1549, %v1686
        %v1688 = vpop.f32.mrb[0].mxu0
        %v1689 = vpop.f32.mrb[0].mxu0
        %v1690 = vadd.f32 %v1554, %v1689
        %v1691 = vpop.f32.mrb[0].mxu0
        %1692 = vmatprep.mubr.bf16.mxu0 0
        %1693 = vmatmul.mubr.bf16.gmra.mrb[0].mxu0 %v1618
        %v1694 = vpop.f32.mrb[0].mxu0
        %v1695 = vadd.f32 %v1559, %v1694
        %v1696 = vpop.f32.mrb[0].mxu0
        %v1697 = vpop.f32.mrb[0].mxu0
        %v1698 = vadd.f32 %v1564, %v1697
        %v1699 = vpop.f32.mrb[0].mxu0
        %1700 = vmatprep.mubr.bf16.mxu0 0
        %1701 = vmatmul.mubr.bf16.gmra.mrb[0].mxu0 %v1619
        %v1702 = vpop.f32.mrb[0].mxu0
        %v1703 = vadd.f32 %v1569, %v1702
        %v1704 = vpop.f32.mrb[0].mxu0
        %v1705 = vpop.f32.mrb[0].mxu0
        %v1706 = vadd.f32 %v1574, %v1705
        %v1707 = vpop.f32.mrb[0].mxu0
        %1708 = vmatprep.mubr.bf16.mxu0 0
        %1709 = vmatmul.mubr.bf16.gmra.mrb[0].mxu0 %v1620
        %v1710 = vpop.f32.mrb[0].mxu0
        %v1711 = vadd.f32 %v1579, %v1710
        %v1712 = vpop.f32.mrb[0].mxu0
        %v1713 = vpop.f32.mrb[0].mxu0
        %v1714 = vadd.f32 %v1584, %v1713
        %v1715 = vpop.f32.mrb[0].mxu0
        %1716 = vdwg.mxu0
        %1717 = vst [vmem:[#allocation2] sm:$0xff] %v1663
        %1718 = vst [vmem:[#allocation2 + $0x8] sm:$0xff] %v1666
        %1719 = vst [vmem:[#allocation2 + $0x10] sm:$0xff] %v1671
        %1720 = vst [vmem:[#allocation2 + $0x18] sm:$0xff] %v1674
        %1721 = vst [vmem:[#allocation2 + $0x20] sm:$0xff] %v1679
        %1722 = vst [vmem:[#allocation2 + $0x28] sm:$0xff] %v1682
        %1723 = vst [vmem:[#allocation2 + $0x30] sm:$0xff] %v1687
        %1724 = vst [vmem:[#allocation2 + $0x38] sm:$0xff] %v1690
        %1725 = vst [vmem:[#allocation2 + $0x40] sm:$0xff] %v1695
        %1726 = vst [vmem:[#allocation2 + $0x48] sm:$0xff] %v1698
        %1727 = vst [vmem:[#allocation2 + $0x50] sm:$0xff] %v1703
        %1728 = vst [vmem:[#allocation2 + $0x58] sm:$0xff] %v1706
        %1729 = vst [vmem:[#allocation2 + $0x60] sm:$0xff] %v1711
        %1730 = vst [vmem:[#allocation2 + $0x68] sm:$0xff] %v1714
        %v1731 = vmax.f32 %v590, -3.0
        %v1732 = vmin.f32 %v1731, 3.0
        %v1733 = vld [vmem:[#allocation2] sm:$0xff]
        %v1734 = vld [vmem:[#allocation2 + $0x8] sm:$0xff]
        %v1735 = vmax.f32 %v1733, %v1734
        %v1736 = vld [vmem:[#allocation2 + $0x10] sm:$0xff]
        %v1737 = vmax.f32 %v1735, %v1736
        %v1738 = vld [vmem:[#allocation2 + $0x18] sm:$0xff]
        %v1739 = vmax.f32 %v1737, %v1738
        %v1740 = vld [vmem:[#allocation2 + $0x20] sm:$0xff]
        %v1741 = vmax.f32 %v1739, %v1740
        %v1742 = vsub.f32 %v1733, %v1741
        %v1743 = vmul.f32 %v1742, 1.442695
        %v1744 = vpow.pop %v1743
        %v1745 = vsub.f32 %v1734, %v1741
        %v1746 = vmul.f32 %v1745, 1.442695
        %v1747 = vpow.pop %v1746
        %v1748 = vsub.f32 %v1736, %v1741
        %v1749 = vmul.f32 %v1748, 1.442695
        %v1750 = vpow.pop %v1749
        %v1751 = vsub.f32 %v1738, %v1741
        %v1752 = vmul.f32 %v1751, 1.442695
        %v1753 = vpow.pop %v1752
        %v1754 = vsub.f32 %v1740, %v1741
        %v1755 = vmul.f32 %v1754, 1.442695
        %v1756 = vpow.pop %v1755
        %v1757 = vadd.f32 %v1744, %v1747
        %v1758 = vadd.f32 %v1757, %v1750
        %v1759 = vadd.f32 %v1758, %v1753
        %v1760 = vadd.f32 %v1759, %v1756
        %v1761 = vrcp.pop %v1760
        %v1762 = vmul.f32 6.0, %v1761
        %v1763 = vmul.f32 %v1744, %v1762
        %v1764 = vmul.f32 %v1763, 1.442695
        %v1765 = vpow.pop %v1764
        %v1766 = vmul.f32 %v1747, %v1762
        %v1767 = vmul.f32 %v1766, 1.442695
        %v1768 = vpow.pop %v1767
        %v1769 = vmul.f32 %v1750, %v1762
        %v1770 = vmul.f32 %v1769, 1.442695
        %v1771 = vpow.pop %v1770
        %v1772 = vmul.f32 %v1753, %v1762
        %v1773 = vmul.f32 %v1772, 1.442695
        %v1774 = vpow.pop %v1773
        %v1775 = vmul.f32 %v1756, %v1762
        %v1776 = vmul.f32 %v1775, 1.442695
        %v1777 = vpow.pop %v1776
        %v1778 = vadd.f32 %v1765, %v1768
        %v1779 = vadd.f32 %v1778, %v1771
        %v1780 = vadd.f32 %v1779, %v1774
        %v1781 = vadd.f32 %v1780, %v1777
        %v1782 = vrcp.pop %v1781
        %v1783 = vmul.f32 0.995, %v1782
        %v1784 = vmul.f32 %v1765, %v1783
        %v1785 = vadd.f32 %v1784, 0.001
        %v1786 = vmul.f32 %v1768, %v1783
        %v1787 = vadd.f32 %v1786, 0.001
        %v1788 = vmul.f32 %v1771, %v1783
        %v1789 = vadd.f32 %v1788, 0.001
        %v1790 = vmul.f32 %v1774, %v1783
        %v1791 = vadd.f32 %v1790, 0.001
        %v1792 = vld [vmem:[#allocation2 + $0x28] sm:$0xff]
        %v1793 = vld [vmem:[#allocation2 + $0x30] sm:$0xff]
        %v1794 = vmax.f32 %v1792, %v1793
        %v1795 = vld [vmem:[#allocation2 + $0x38] sm:$0xff]
        %v1796 = vmax.f32 %v1794, %v1795
        %v1797 = vld [vmem:[#allocation2 + $0x40] sm:$0xff]
        %v1798 = vmax.f32 %v1796, %v1797
        %v1799 = vld [vmem:[#allocation2 + $0x48] sm:$0xff]
        %v1800 = vmax.f32 %v1798, %v1799
        %v1801 = vsub.f32 %v1792, %v1800
        %v1802 = vmul.f32 %v1801, 1.442695
        %v1803 = vpow.pop %v1802
        %v1804 = vsub.f32 %v1793, %v1800
        %v1805 = vmul.f32 %v1804, 1.442695
        %v1806 = vpow.pop %v1805
        %v1807 = vsub.f32 %v1795, %v1800
        %v1808 = vmul.f32 %v1807, 1.442695
        %v1809 = vpow.pop %v1808
        %v1810 = vsub.f32 %v1797, %v1800
        %v1811 = vmul.f32 %v1810, 1.442695
        %v1812 = vpow.pop %v1811
        %v1813 = vsub.f32 %v1799, %v1800
        %v1814 = vmul.f32 %v1813, 1.442695
        %v1815 = vpow.pop %v1814
        %v1816 = vadd.f32 %v1803, %v1806
        %v1817 = vadd.f32 %v1816, %v1809
        %v1818 = vadd.f32 %v1817, %v1812
        %v1819 = vadd.f32 %v1818, %v1815
        %v1820 = vrcp.pop %v1819
        %v1821 = vmul.f32 6.0, %v1820
        %v1822 = vmul.f32 %v1803, %v1821
        %v1823 = vmul.f32 %v1822, 1.442695
        %v1824 = vpow.pop %v1823
        %v1825 = vmul.f32 %v1806, %v1821
        %v1826 = vmul.f32 %v1825, 1.442695
        %v1827 = vpow.pop %v1826
        %v1828 = vmul.f32 %v1809, %v1821
        %v1829 = vmul.f32 %v1828, 1.442695
        %v1830 = vpow.pop %v1829
        %v1831 = vmul.f32 %v1812, %v1821
        %v1832 = vmul.f32 %v1831, 1.442695
        %v1833 = vpow.pop %v1832
        %v1834 = vmul.f32 %v1815, %v1821
        %v1835 = vmul.f32 %v1834, 1.442695
        %v1836 = vpow.pop %v1835
        %v1837 = vadd.f32 %v1824, %v1827
        %v1838 = vadd.f32 %v1837, %v1830
        %v1839 = vadd.f32 %v1838, %v1833
        %v1840 = vadd.f32 %v1839, %v1836
        %v1841 = vrcp.pop %v1840
        %v1842 = vmul.f32 0.995, %v1841
        %v1843 = vmul.f32 %v1824, %v1842
        %v1844 = vadd.f32 %v1843, 0.001
        %v1845 = vmul.f32 %v1827, %v1842
        %v1846 = vadd.f32 %v1845, 0.001
        %v1847 = vmul.f32 %v1830, %v1842
        %v1848 = vadd.f32 %v1847, 0.001
        %v1849 = vmul.f32 %v1833, %v1842
        %v1850 = vadd.f32 %v1849, 0.001
        %v1851 = vmul.f32 %v1785, 6.0
        %v1852 = vmul.f32 %v1844, 6.0
        %v1853 = vld [vmem:[#allocation2 + $0x50] sm:$0xff]
        %v1854 = vmax.f32 %v1853, 0.0
        %v1855 = vand.u32 2147483647, %v1853
        %v1856 = vsub.f32 0.0, %v1855
        %v1857 = vmul.f32 %v1856, 1.442695
        %v1858 = vpow.pop %v1857
        %v1859 = vadd.f32 %v1858, 1.0
        %v1860 = vlog2.pop %v1859
        %v1861 = vmul.f32 %v1860, 0.6931472
        %v1862 = vadd.f32 %v1854, %v1861
        %v1863 = vmax.f32 %v1862, 0.0
        %v1864 = vand.u32 2147483647, %v1862
        %v1865 = vsub.f32 0.0, %v1864
        %v1866 = vmul.f32 %v1865, 1.442695
        %v1867 = vpow.pop %v1866
        %v1868 = vadd.f32 %v1867, 1.0
        %v1869 = vlog2.pop %v1868
        %v1870 = vmul.f32 %v1869, 0.6931472
        %v1871 = vadd.f32 %v1863, %v1870
        %v1872 = vadd.f32 %v1871, 0.001
        %v1873 = vadd.f32 %v1851, -3.0
        %v1874 = vadd.f32 %v1852, -3.0
        %v1875 = vmul.f32 %v1787, 6.0
        %v1876 = vmul.f32 %v1846, 6.0
        %v1877 = vld [vmem:[#allocation2 + $0x58] sm:$0xff]
        %v1878 = vmax.f32 %v1877, 0.0
        %v1879 = vand.u32 2147483647, %v1877
        %v1880 = vsub.f32 0.0, %v1879
        %v1881 = vmul.f32 %v1880, 1.442695
        %v1882 = vpow.pop %v1881
        %v1883 = vadd.f32 %v1882, 1.0
        %v1884 = vlog2.pop %v1883
        %v1885 = vmul.f32 %v1884, 0.6931472
        %v1886 = vadd.f32 %v1878, %v1885
        %v1887 = vmax.f32 %v1886, 0.0
        %v1888 = vand.u32 2147483647, %v1886
        %v1889 = vsub.f32 0.0, %v1888
        %v1890 = vmul.f32 %v1889, 1.442695
        %v1891 = vpow.pop %v1890
        %v1892 = vadd.f32 %v1891, 1.0
        %v1893 = vlog2.pop %v1892
        %v1894 = vmul.f32 %v1893, 0.6931472
        %v1895 = vadd.f32 %v1887, %v1894
        %v1896 = vadd.f32 %v1895, 0.001
        %vm1897 = vcmp.ge.f32.partialorder %v1732, %v1873
        %v1898 = vsel %vm1897, %v1873, -3.0
        %v1899 = vsel %vm1897, %v1874, -3.0
        %v1900 = vsel %vm1897, %v1875, %v1851
        %v1901 = vsel %vm1897, %v1876, %v1852
        %v1902 = vsel %vm1897, %v1872, 1.0
        %v1903 = vsel %vm1897, %v1896, %v1872
        %v1904 = vadd.f32 %v1873, %v1875
        %v1905 = vadd.f32 %v1874, %v1876
        %v1906 = vmul.f32 %v1789, 6.0
        %v1907 = vmul.f32 %v1848, 6.0
        %v1908 = vld [vmem:[#allocation2 + $0x60] sm:$0xff]
        %v1909 = vmax.f32 %v1908, 0.0
        %v1910 = vand.u32 2147483647, %v1908
        %v1911 = vsub.f32 0.0, %v1910
        %v1912 = vmul.f32 %v1911, 1.442695
        %v1913 = vpow.pop %v1912
        %v1914 = vadd.f32 %v1913, 1.0
        %v1915 = vlog2.pop %v1914
        %v1916 = vmul.f32 %v1915, 0.6931472
        %v1917 = vadd.f32 %v1909, %v1916
        %v1918 = vmax.f32 %v1917, 0.0
        %v1919 = vand.u32 2147483647, %v1917
        %v1920 = vsub.f32 0.0, %v1919
        %v1921 = vmul.f32 %v1920, 1.442695
        %v1922 = vpow.pop %v1921
        %v1923 = vadd.f32 %v1922, 1.0
        %v1924 = vlog2.pop %v1923
        %v1925 = vmul.f32 %v1924, 0.6931472
        %v1926 = vadd.f32 %v1918, %v1925
        %v1927 = vadd.f32 %v1926, 0.001
        %vm1928 = vcmp.ge.f32.partialorder %v1732, %v1904
        %v1929 = vsel %vm1928, %v1904, %v1898
        %v1930 = vsel %vm1928, %v1905, %v1899
        %v1931 = vsel %vm1928, %v1906, %v1900
        %v1932 = vsel %vm1928, %v1907, %v1901
        %v1933 = vsel %vm1928, %v1896, %v1902
        %v1934 = vsel %vm1928, %v1927, %v1903
        %v1935 = vadd.f32 %v1904, %v1906
        %v1936 = vadd.f32 %v1905, %v1907
        %v1937 = vmul.f32 %v1791, 6.0
        %v1938 = vmul.f32 %v1850, 6.0
        %v1939 = vld [vmem:[#allocation2 + $0x68] sm:$0xff]
        %v1940 = vmax.f32 %v1939, 0.0
        %v1941 = vand.u32 2147483647, %v1939
        %v1942 = vsub.f32 0.0, %v1941
        %v1943 = vmul.f32 %v1942, 1.442695
        %v1944 = vpow.pop %v1943
        %v1945 = vadd.f32 %v1944, 1.0
        %v1946 = vlog2.pop %v1945
        %v1947 = vmul.f32 %v1946, 0.6931472
        %v1948 = vadd.f32 %v1940, %v1947
        %v1949 = vmax.f32 %v1948, 0.0
        %v1950 = vand.u32 2147483647, %v1948
        %v1951 = vsub.f32 0.0, %v1950
        %v1952 = vmul.f32 %v1951, 1.442695
        %v1953 = vpow.pop %v1952
        %v1954 = vadd.f32 %v1953, 1.0
        %v1955 = vlog2.pop %v1954
        %v1956 = vmul.f32 %v1955, 0.6931472
        %v1957 = vadd.f32 %v1949, %v1956
        %v1958 = vadd.f32 %v1957, 0.001
        %vm1959 = vcmp.ge.f32.partialorder %v1732, %v1935
        %v1960 = vsel %vm1959, %v1935, %v1929
        %v1961 = vsel %vm1959, %v1936, %v1930
        %v1962 = vsel %vm1959, %v1937, %v1931
        %v1963 = vsel %vm1959, %v1938, %v1932
        %v1964 = vsel %vm1959, %v1927, %v1933
        %v1965 = vsel %vm1959, %v1958, %v1934
        %v1966 = vadd.f32 %v1935, %v1937
        %v1967 = vadd.f32 %v1936, %v1938
        %v1968 = vsub.f32 3.0, %v1966
        %v1969 = vsub.f32 3.0, %v1967
        %vm1970 = vcmp.ge.f32.partialorder %v1732, %v1966
        %v1971 = vsel %vm1970, %v1966, %v1960
        %v1972 = vsel %vm1970, %v1967, %v1961
        %v1973 = vsel %vm1970, %v1968, %v1962
        %v1974 = vsel %vm1970, %v1969, %v1963
        %v1975 = vsel %vm1970, %v1958, %v1964
        %v1976 = vsel %vm1970, 1.0, %v1965
        %v1977 = vsub.f32 %v1732, %v1971
        %v1978 = vrcp.pop %v1973
        %v1979 = vmul.f32 %v1977, %v1978
        %v1980 = vmax.f32 %v1979, 0.0
        %v1981 = vmin.f32 %v1980, 1.0
        %v1982 = vmul.f32 %v1974, %v1978
        %v1983 = vsub.f32 1.0, %v1981
        %v1984 = vmul.f32 %v1981, %v1983
        %v1985 = vmul.f32 %v1981, %v1981
        %v1986 = vmul.f32 %v1982, %v1985
        %v1987 = vmul.f32 %v1975, %v1984
        %v1988 = vadd.f32 %v1986, %v1987
        %v1989 = vmul.f32 %v1974, %v1988
        %v1990 = vadd.f32 %v1975, %v1976
        %v1991 = vmul.f32 %v1982, 2.0
        %v1992 = vsub.f32 %v1990, %v1991
        %v1993 = vmul.f32 %v1992, %v1984
        %v1994 = vadd.f32 %v1982, %v1993
        %v1995 = vrcp.pop %v1994
        %v1996 = vmul.f32 %v1989, %v1995
        %v1997 = vadd.f32 %v1972, %v1996
        %v1998 = vmul.f32 %v1982, %v1982
        %v1999 = vmul.f32 %v1976, %v1985
        %v2000 = vmul.f32 %v1991, %v1984
        %v2001 = vadd.f32 %v1999, %v2000
        %v2002 = vmul.f32 %v1975, %v1983
        %v2003 = vmul.f32 %v2002, %v1983
        %v2004 = vadd.f32 %v2001, %v2003
        %v2005 = vmul.f32 %v1998, %v2004
        %v2006 = vlog2.pop %v2005
        %v2007 = vmul.f32 %v2006, 0.6931472
        %v2008 = vlog2.pop %v1994
        %v2009 = vmul.f32 %v2008, 0.6931472
        %v2010 = vmul.f32 %v2009, 2.0
        %v2011 = vsub.f32 %v2007, %v2010
        %vm2012 = vcmp.ge.f32.partialorder %v590, -3.0
        %vm2013 = vcmp.le.f32.partialorder %v590, 3.0
        %vm2014 = vmand %vm2012, %vm2013
        %v2015 = vsel %vm2014, %v1997, %v590
        %v2016 = vsel %vm2014, %v2011, 0.0
        %v2017 = vld [vmem:[%s10] sm:$0xf]
        %v2018 = vld [vmem:[%s10 + $0x4] sm:$0xf]
        %v2019 = vld [vmem:[%s10 + $0x8] sm:$0xf]
        %v2020 = vld [vmem:[%s10 + $0xc] sm:$0xf]
        %v2021 = vld [vmem:[%s10 + $0x10] sm:$0xf]
        %v2022 = vld [vmem:[%s10 + $0x14] sm:$0xf]
        %v2023 = vld [vmem:[%s10 + $0x18] sm:$0xf]
        %v2024 = vld [vmem:[%s10 + $0x1c] sm:$0xf]
        %v2025 = vld [vmem:[%s10 + $0x20] sm:$0xf]
        %v2026 = vld [vmem:[%s10 + $0x24] sm:$0xf]
        %v2027 = vld [vmem:[%s10 + $0x28] sm:$0xf]
        %v2028 = vld [vmem:[%s10 + $0x2c] sm:$0xf]
        %v2029 = vld [vmem:[%s10 + $0x30] sm:$0xf]
        %v2030 = vld [vmem:[%s10 + $0x34] sm:$0xf]
        %v2031 = vld [vmem:[%s10 + $0x38] sm:$0xf]
        %v2032 = vld [vmem:[%s10 + $0x3c] sm:$0xf]
        %v2033 = vpack.c.bf16 %v2015, %v2015
        %v2034 = vld [vmem:[%s11] sm:$0xff]
        %v2035 = vld [vmem:[%s11 + $0x8] sm:$0xff]
        %v2036 = vld [vmem:[%s11 + $0x10] sm:$0xff]
        %v2037 = vld [vmem:[%s11 + $0x18] sm:$0xff]
        %v2038 = vld [vmem:[%s11 + $0x20] sm:$0xff]
        %v2039 = vld [vmem:[%s11 + $0x28] sm:$0xff]
        %v2040 = vld [vmem:[%s11 + $0x30] sm:$0xff]
        %v2041 = vld [vmem:[%s11 + $0x38] sm:$0xff]
        %v2042 = vld [vmem:[%s11 + $0x40] sm:$0xff]
        %v2043 = vld [vmem:[%s11 + $0x48] sm:$0xff]
        %v2044 = vld [vmem:[%s11 + $0x50] sm:$0xff]
        %v2045 = vld [vmem:[%s11 + $0x58] sm:$0xff]
        %v2046 = vld [vmem:[%s11 + $0x60] sm:$0xff]
        %v2047 = vld [vmem:[%s11 + $0x68] sm:$0xff]
        %v2048 = vld [vmem:[%s11 + $0x70] sm:$0xff]
        %v2049 = vld [vmem:[%s11 + $0x78] sm:$0xff]
        %2051 = vset.pattern.permute.xlu0 0
        %2052 = vperm.xlu0 %2051, %v2034
        %v2053 = vpop.permute.xlu0 %2052
        %2056 = vset.pattern.permute.xlu0 0
        %2057 = vperm.xlu0 %2056, %v2035
        %v2058 = vpop.permute.xlu0 %2057
        %2061 = vset.pattern.permute.xlu0 0
        %2062 = vperm.xlu0 %2061, %v2036
        %v2063 = vpop.permute.xlu0 %2062
        %2066 = vset.pattern.permute.xlu0 0
        %2067 = vperm.xlu0 %2066, %v2037
        %v2068 = vpop.permute.xlu0 %2067
        %2071 = vset.pattern.permute.xlu0 0
        %2072 = vperm.xlu0 %2071, %v2038
        %v2073 = vpop.permute.xlu0 %2072
        %2076 = vset.pattern.permute.xlu0 0
        %2077 = vperm.xlu0 %2076, %v2039
        %v2078 = vpop.permute.xlu0 %2077
        %2081 = vset.pattern.permute.xlu0 0
        %2082 = vperm.xlu0 %2081, %v2040
        %v2083 = vpop.permute.xlu0 %2082
        %2086 = vset.pattern.permute.xlu0 0
        %2087 = vperm.xlu0 %2086, %v2041
        %v2088 = vpop.permute.xlu0 %2087
        %2091 = vset.pattern.permute.xlu0 0
        %2092 = vperm.xlu0 %2091, %v2042
        %v2093 = vpop.permute.xlu0 %2092
        %2096 = vset.pattern.permute.xlu0 0
        %2097 = vperm.xlu0 %2096, %v2043
        %v2098 = vpop.permute.xlu0 %2097
        %2101 = vset.pattern.permute.xlu0 0
        %2102 = vperm.xlu0 %2101, %v2044
        %v2103 = vpop.permute.xlu0 %2102
        %2106 = vset.pattern.permute.xlu0 0
        %2107 = vperm.xlu0 %2106, %v2045
        %v2108 = vpop.permute.xlu0 %2107
        %2111 = vset.pattern.permute.xlu0 0
        %2112 = vperm.xlu0 %2111, %v2046
        %v2113 = vpop.permute.xlu0 %2112
        %2116 = vset.pattern.permute.xlu0 0
        %2117 = vperm.xlu0 %2116, %v2047
        %v2118 = vpop.permute.xlu0 %2117
        %2121 = vset.pattern.permute.xlu0 0
        %2122 = vperm.xlu0 %2121, %v2048
        %v2123 = vpop.permute.xlu0 %2122
        %2126 = vset.pattern.permute.xlu0 0
        %2127 = vperm.xlu0 %2126, %v2049
        %v2128 = vpop.permute.xlu0 %2127
        %v2146 = vunpack.c.l.b16 %v2017
        %v2147 = vunpack.c.l.b16 %v2018
        %v2148 = vunpack.c.l.b16 %v2019
        %v2149 = vunpack.c.l.b16 %v2020
        %v2150 = vunpack.c.l.b16 %v2021
        %v2151 = vunpack.c.l.b16 %v2022
        %v2152 = vunpack.c.l.b16 %v2023
        %v2153 = vunpack.c.l.b16 %v2024
        %v2154 = vunpack.c.l.b16 %v2025
        %v2155 = vunpack.c.l.b16 %v2026
        %v2156 = vunpack.c.l.b16 %v2027
        %v2157 = vunpack.c.l.b16 %v2028
        %v2158 = vunpack.c.l.b16 %v2029
        %v2159 = vunpack.c.l.b16 %v2030
        %v2160 = vunpack.c.l.b16 %v2031
        %v2161 = vunpack.c.l.b16 %v2032
        %v2162 = vpack.c.b16 %v2147, %v2146
        %v2163 = vpack.c.b16 %v2149, %v2148
        %v2164 = vpack.c.b16 %v2151, %v2150
        %v2165 = vpack.c.b16 %v2153, %v2152
        %v2166 = vpack.c.b16 %v2155, %v2154
        %v2167 = vpack.c.b16 %v2157, %v2156
        %v2168 = vpack.c.b16 %v2159, %v2158
        %v2169 = vpack.c.b16 %v2161, %v2160
        %v2171 = vsel %vm744, %v2162, 0
        %v2174 = vsel %vm744, %v2163, 0
        %v2177 = vsel %vm744, %v2164, 0
        %v2180 = vsel %vm744, %v2165, 0
        %v2183 = vsel %vm744, %v2166, 0
        %v2186 = vsel %vm744, %v2167, 0
        %v2189 = vsel %vm744, %v2168, 0
        %v2192 = vsel %vm744, %v2169, 0
        %v2195 = vsel %vm769, %v2033, 0
        %2197 = vmatprep.subr.bf16.mxu0 0
        %2198 = vmatpush1.bf16.msra.mxu0 %v2195
        %2199 = vmatprep.subr.bf16.mxu0 0
        %2200 = vmatpush1.bf16.msra.mxu0 0
        %2201 = vmatprep.subr.bf16.mxu0 0
        %2202 = vmatpush1.bf16.msra.mxu0 0
        %2203 = vmatprep.subr.bf16.mxu0 0
        %2204 = vmatpush1.bf16.msra.mxu0 0
        %2205 = vmatprep.subr.bf16.mxu0 0
        %2206 = vmatpush1.bf16.msra.mxu0 0
        %2207 = vmatprep.subr.bf16.mxu0 0
        %2208 = vmatpush1.bf16.msra.mxu0 0
        %2209 = vmatprep.subr.bf16.mxu0 0
        %2210 = vmatpush1.bf16.msra.mxu0 0
        %2211 = vmatprep.subr.bf16.mxu0 0
        %2212 = vmatpush1.bf16.msra.mxu0 0
        %2213 = vmatprep.subr.bf16.mxu0 0
        %2214 = vmatpush1.bf16.msra.mxu0 0
        %2215 = vmatprep.subr.bf16.mxu0 0
        %2216 = vmatpush1.bf16.msra.mxu0 0
        %2217 = vmatprep.subr.bf16.mxu0 0
        %2218 = vmatpush1.bf16.msra.mxu0 0
        %2219 = vmatprep.subr.bf16.mxu0 0
        %2220 = vmatpush1.bf16.msra.mxu0 0
        %2221 = vmatprep.subr.bf16.mxu0 0
        %2222 = vmatpush1.bf16.msra.mxu0 0
        %2223 = vmatprep.subr.bf16.mxu0 0
        %2224 = vmatpush1.bf16.msra.mxu0 0
        %2225 = vmatprep.subr.bf16.mxu0 0
        %2226 = vmatpush1.bf16.msra.mxu0 0
        %2227 = vmatprep.subr.bf16.mxu0 0
        %2228 = vmatpush1.bf16.msra.mxu0 0
        %2229 = vmatprep.mubr.bf16.mxu0 0
        %2230 = vmatmul.mubr.bf16.gmra.mrb[0].mxu0 %v2171
        %v2231 = vpop.f32.mrb[0].mxu0
        %v2232 = vadd.f32 %v2053, %v2231
        %v2233 = vpop.f32.mrb[0].mxu0
        %v2234 = vpop.f32.mrb[0].mxu0
        %v2235 = vadd.f32 %v2058, %v2234
        %v2236 = vpop.f32.mrb[0].mxu0
        %2237 = vmatprep.mubr.bf16.mxu0 0
        %2238 = vmatmul.mubr.bf16.gmra.mrb[0].mxu0 %v2174
        %v2239 = vpop.f32.mrb[0].mxu0
        %v2240 = vadd.f32 %v2063, %v2239
        %v2241 = vpop.f32.mrb[0].mxu0
        %v2242 = vpop.f32.mrb[0].mxu0
        %v2243 = vadd.f32 %v2068, %v2242
        %v2244 = vpop.f32.mrb[0].mxu0
        %2245 = vmatprep.mubr.bf16.mxu0 0
        %2246 = vmatmul.mubr.bf16.gmra.mrb[0].mxu0 %v2177
        %v2247 = vpop.f32.mrb[0].mxu0
        %v2248 = vadd.f32 %v2073, %v2247
        %v2249 = vpop.f32.mrb[0].mxu0
        %v2250 = vpop.f32.mrb[0].mxu0
        %v2251 = vadd.f32 %v2078, %v2250
        %v2252 = vpop.f32.mrb[0].mxu0
        %2253 = vmatprep.mubr.bf16.mxu0 0
        %2254 = vmatmul.mubr.bf16.gmra.mrb[0].mxu0 %v2180
        %v2255 = vpop.f32.mrb[0].mxu0
        %v2256 = vadd.f32 %v2083, %v2255
        %v2257 = vpop.f32.mrb[0].mxu0
        %v2258 = vpop.f32.mrb[0].mxu0
        %v2259 = vadd.f32 %v2088, %v2258
        %v2260 = vpop.f32.mrb[0].mxu0
        %2261 = vmatprep.mubr.bf16.mxu0 0
        %2262 = vmatmul.mubr.bf16.gmra.mrb[0].mxu0 %v2183
        %v2263 = vpop.f32.mrb[0].mxu0
        %v2264 = vadd.f32 %v2093, %v2263
        %v2265 = vpop.f32.mrb[0].mxu0
        %v2266 = vpop.f32.mrb[0].mxu0
        %v2267 = vadd.f32 %v2098, %v2266
        %v2268 = vpop.f32.mrb[0].mxu0
        %2269 = vmatprep.mubr.bf16.mxu0 0
        %2270 = vmatmul.mubr.bf16.gmra.mrb[0].mxu0 %v2186
        %v2271 = vpop.f32.mrb[0].mxu0
        %v2272 = vadd.f32 %v2103, %v2271
        %v2273 = vpop.f32.mrb[0].mxu0
        %v2274 = vpop.f32.mrb[0].mxu0
        %v2275 = vadd.f32 %v2108, %v2274
        %v2276 = vpop.f32.mrb[0].mxu0
        %2277 = vmatprep.mubr.bf16.mxu0 0
        %2278 = vmatmul.mubr.bf16.gmra.mrb[0].mxu0 %v2189
        %v2279 = vpop.f32.mrb[0].mxu0
        %v2280 = vadd.f32 %v2113, %v2279
        %v2281 = vpop.f32.mrb[0].mxu0
        %v2282 = vpop.f32.mrb[0].mxu0
        %v2283 = vadd.f32 %v2118, %v2282
        %v2284 = vpop.f32.mrb[0].mxu0
        %2285 = vmatprep.mubr.bf16.mxu0 0
        %2286 = vmatmul.mubr.bf16.gmra.mrb[0].mxu0 %v2192
        %v2287 = vpop.f32.mrb[0].mxu0
        %v2288 = vadd.f32 %v2123, %v2287
        %v2289 = vpop.f32.mrb[0].mxu0
        %v2290 = vpop.f32.mrb[0].mxu0
        %v2291 = vadd.f32 %v2128, %v2290
        %v2292 = vpop.f32.mrb[0].mxu0
        %2293 = vdwg.mxu0
        %v2294 = vmax.f32 %v2232, 0.0
        %v2295 = vmax.f32 %v2235, 0.0
        %v2296 = vmax.f32 %v2240, 0.0
        %v2297 = vmax.f32 %v2243, 0.0
        %v2298 = vmax.f32 %v2248, 0.0
        %v2299 = vmax.f32 %v2251, 0.0
        %v2300 = vmax.f32 %v2256, 0.0
        %v2301 = vmax.f32 %v2259, 0.0
        %v2302 = vmax.f32 %v2264, 0.0
        %v2303 = vmax.f32 %v2267, 0.0
        %v2304 = vmax.f32 %v2272, 0.0
        %v2305 = vmax.f32 %v2275, 0.0
        %v2306 = vmax.f32 %v2280, 0.0
        %v2307 = vmax.f32 %v2283, 0.0
        %v2308 = vmax.f32 %v2288, 0.0
        %v2309 = vmax.f32 %v2291, 0.0
        %v2310 = vld [vmem:[%s12] sm:$0xf]
        %v2311 = vld [vmem:[%s12 + $0x4] sm:$0xf]
        %v2312 = vld [vmem:[%s12 + $0x8] sm:$0xf]
        %v2313 = vld [vmem:[%s12 + $0xc] sm:$0xf]
        %v2314 = vld [vmem:[%s12 + $0x10] sm:$0xf]
        %v2315 = vld [vmem:[%s12 + $0x14] sm:$0xf]
        %v2316 = vld [vmem:[%s12 + $0x18] sm:$0xf]
        %v2317 = vld [vmem:[%s12 + $0x1c] sm:$0xf]
        %v2318 = vld [vmem:[%s12 + $0x20] sm:$0xf]
        %v2319 = vld [vmem:[%s12 + $0x24] sm:$0xf]
        %v2320 = vld [vmem:[%s12 + $0x28] sm:$0xf]
        %v2321 = vld [vmem:[%s12 + $0x2c] sm:$0xf]
        %v2322 = vld [vmem:[%s12 + $0x30] sm:$0xf]
        %v2323 = vld [vmem:[%s12 + $0x34] sm:$0xf]
        %v2324 = vld [vmem:[%s12 + $0x38] sm:$0xf]
        %v2325 = vld [vmem:[%s12 + $0x3c] sm:$0xf]
        %v2326 = vpack.c.bf16 %v2295, %v2294
        %v2327 = vpack.c.bf16 %v2297, %v2296
        %v2328 = vpack.c.bf16 %v2299, %v2298
        %v2329 = vpack.c.bf16 %v2301, %v2300
        %v2330 = vpack.c.bf16 %v2303, %v2302
        %v2331 = vpack.c.bf16 %v2305, %v2304
        %v2332 = vpack.c.bf16 %v2307, %v2306
        %v2333 = vpack.c.bf16 %v2309, %v2308
        %v2334 = vld [vmem:[%s13] sm:$0xff]
        %v2335 = vld [vmem:[%s13 + $0x8] sm:$0xff]
        %v2336 = vld [vmem:[%s13 + $0x10] sm:$0xff]
        %v2337 = vld [vmem:[%s13 + $0x18] sm:$0xff]
        %v2338 = vld [vmem:[%s13 + $0x20] sm:$0xff]
        %v2339 = vld [vmem:[%s13 + $0x28] sm:$0xff]
        %v2340 = vld [vmem:[%s13 + $0x30] sm:$0xff]
        %v2341 = vld [vmem:[%s13 + $0x38] sm:$0xff]
        %v2342 = vld [vmem:[%s13 + $0x40] sm:$0xff]
        %v2343 = vld [vmem:[%s13 + $0x48] sm:$0xff]
        %v2344 = vld [vmem:[%s13 + $0x50] sm:$0xff]
        %v2345 = vld [vmem:[%s13 + $0x58] sm:$0xff]
        %v2346 = vld [vmem:[%s13 + $0x60] sm:$0xff]
        %v2347 = vld [vmem:[%s13 + $0x68] sm:$0xff]
        %v2348 = vld [vmem:[%s13 + $0x70] sm:$0xff]
        %v2349 = vld [vmem:[%s13 + $0x78] sm:$0xff]
        %2351 = vset.pattern.permute.xlu0 0
        %2352 = vperm.xlu0 %2351, %v2334
        %v2353 = vpop.permute.xlu0 %2352
        %2356 = vset.pattern.permute.xlu0 0
        %2357 = vperm.xlu0 %2356, %v2335
        %v2358 = vpop.permute.xlu0 %2357
        %2361 = vset.pattern.permute.xlu0 0
        %2362 = vperm.xlu0 %2361, %v2336
        %v2363 = vpop.permute.xlu0 %2362
        %2366 = vset.pattern.permute.xlu0 0
        %2367 = vperm.xlu0 %2366, %v2337
        %v2368 = vpop.permute.xlu0 %2367
        %2371 = vset.pattern.permute.xlu0 0
        %2372 = vperm.xlu0 %2371, %v2338
        %v2373 = vpop.permute.xlu0 %2372
        %2376 = vset.pattern.permute.xlu0 0
        %2377 = vperm.xlu0 %2376, %v2339
        %v2378 = vpop.permute.xlu0 %2377
        %2381 = vset.pattern.permute.xlu0 0
        %2382 = vperm.xlu0 %2381, %v2340
        %v2383 = vpop.permute.xlu0 %2382
        %2386 = vset.pattern.permute.xlu0 0
        %2387 = vperm.xlu0 %2386, %v2341
        %v2388 = vpop.permute.xlu0 %2387
        %2391 = vset.pattern.permute.xlu0 0
        %2392 = vperm.xlu0 %2391, %v2342
        %v2393 = vpop.permute.xlu0 %2392
        %2396 = vset.pattern.permute.xlu0 0
        %2397 = vperm.xlu0 %2396, %v2343
        %v2398 = vpop.permute.xlu0 %2397
        %2401 = vset.pattern.permute.xlu0 0
        %2402 = vperm.xlu0 %2401, %v2344
        %v2403 = vpop.permute.xlu0 %2402
        %2406 = vset.pattern.permute.xlu0 0
        %2407 = vperm.xlu0 %2406, %v2345
        %v2408 = vpop.permute.xlu0 %2407
        %2411 = vset.pattern.permute.xlu0 0
        %2412 = vperm.xlu0 %2411, %v2346
        %v2413 = vpop.permute.xlu0 %2412
        %2416 = vset.pattern.permute.xlu0 0
        %2417 = vperm.xlu0 %2416, %v2347
        %v2418 = vpop.permute.xlu0 %2417
        %2421 = vset.pattern.permute.xlu0 0
        %2422 = vperm.xlu0 %2421, %v2348
        %v2423 = vpop.permute.xlu0 %2422
        %2426 = vset.pattern.permute.xlu0 0
        %2427 = vperm.xlu0 %2426, %v2349
        %v2428 = vpop.permute.xlu0 %2427
        %v2446 = vunpack.c.l.b16 %v2310
        %v2447 = vunpack.c.l.b16 %v2311
        %v2448 = vunpack.c.l.b16 %v2312
        %v2449 = vunpack.c.l.b16 %v2313
        %v2450 = vunpack.c.l.b16 %v2314
        %v2451 = vunpack.c.l.b16 %v2315
        %v2452 = vunpack.c.l.b16 %v2316
        %v2453 = vunpack.c.l.b16 %v2317
        %v2454 = vunpack.c.l.b16 %v2318
        %v2455 = vunpack.c.l.b16 %v2319
        %v2456 = vunpack.c.l.b16 %v2320
        %v2457 = vunpack.c.l.b16 %v2321
        %v2458 = vunpack.c.l.b16 %v2322
        %v2459 = vunpack.c.l.b16 %v2323
        %v2460 = vunpack.c.l.b16 %v2324
        %v2461 = vunpack.c.l.b16 %v2325
        %v2462 = vpack.c.b16 %v2447, %v2446
        %v2463 = vpack.c.b16 %v2449, %v2448
        %v2464 = vpack.c.b16 %v2451, %v2450
        %v2465 = vpack.c.b16 %v2453, %v2452
        %v2466 = vpack.c.b16 %v2455, %v2454
        %v2467 = vpack.c.b16 %v2457, %v2456
        %v2468 = vpack.c.b16 %v2459, %v2458
        %v2469 = vpack.c.b16 %v2461, %v2460
        %2478 = vmatprep.subr.bf16.mxu0 0
        %2479 = vmatpush1.bf16.msra.mxu0 %v2326
        %2480 = vmatprep.subr.bf16.mxu0 0
        %2481 = vmatpush1.bf16.msra.mxu0 %v2327
        %2482 = vmatprep.subr.bf16.mxu0 0
        %2483 = vmatpush1.bf16.msra.mxu0 %v2328
        %2484 = vmatprep.subr.bf16.mxu0 0
        %2485 = vmatpush1.bf16.msra.mxu0 %v2329
        %2486 = vmatprep.subr.bf16.mxu0 0
        %2487 = vmatpush1.bf16.msra.mxu0 %v2330
        %2488 = vmatprep.subr.bf16.mxu0 0
        %2489 = vmatpush1.bf16.msra.mxu0 %v2331
        %2490 = vmatprep.subr.bf16.mxu0 0
        %2491 = vmatpush1.bf16.msra.mxu0 %v2332
        %2492 = vmatprep.subr.bf16.mxu0 0
        %2493 = vmatpush1.bf16.msra.mxu0 %v2333
        %2494 = vmatprep.subr.bf16.mxu0 0
        %2495 = vmatpush1.bf16.msra.mxu0 0
        %2496 = vmatprep.subr.bf16.mxu0 0
        %2497 = vmatpush1.bf16.msra.mxu0 0
        %2498 = vmatprep.subr.bf16.mxu0 0
        %2499 = vmatpush1.bf16.msra.mxu0 0
        %2500 = vmatprep.subr.bf16.mxu0 0
        %2501 = vmatpush1.bf16.msra.mxu0 0
        %2502 = vmatprep.subr.bf16.mxu0 0
        %2503 = vmatpush1.bf16.msra.mxu0 0
        %2504 = vmatprep.subr.bf16.mxu0 0
        %2505 = vmatpush1.bf16.msra.mxu0 0
        %2506 = vmatprep.subr.bf16.mxu0 0
        %2507 = vmatpush1.bf16.msra.mxu0 0
        %2508 = vmatprep.subr.bf16.mxu0 0
        %2509 = vmatpush1.bf16.msra.mxu0 0
        %2510 = vmatprep.mubr.bf16.mxu0 0
        %2511 = vmatmul.mubr.bf16.gmra.mrb[0].mxu0 %v2462
        %v2512 = vpop.f32.mrb[0].mxu0
        %v2513 = vadd.f32 %v2353, %v2512
        %v2514 = vpop.f32.mrb[0].mxu0
        %v2515 = vpop.f32.mrb[0].mxu0
        %v2516 = vadd.f32 %v2358, %v2515
        %v2517 = vpop.f32.mrb[0].mxu0
        %2518 = vmatprep.mubr.bf16.mxu0 0
        %2519 = vmatmul.mubr.bf16.gmra.mrb[0].mxu0 %v2463
        %v2520 = vpop.f32.mrb[0].mxu0
        %v2521 = vadd.f32 %v2363, %v2520
        %v2522 = vpop.f32.mrb[0].mxu0
        %v2523 = vpop.f32.mrb[0].mxu0
        %v2524 = vadd.f32 %v2368, %v2523
        %v2525 = vpop.f32.mrb[0].mxu0
        %2526 = vmatprep.mubr.bf16.mxu0 0
        %2527 = vmatmul.mubr.bf16.gmra.mrb[0].mxu0 %v2464
        %v2528 = vpop.f32.mrb[0].mxu0
        %v2529 = vadd.f32 %v2373, %v2528
        %v2530 = vpop.f32.mrb[0].mxu0
        %v2531 = vpop.f32.mrb[0].mxu0
        %v2532 = vadd.f32 %v2378, %v2531
        %v2533 = vpop.f32.mrb[0].mxu0
        %2534 = vmatprep.mubr.bf16.mxu0 0
        %2535 = vmatmul.mubr.bf16.gmra.mrb[0].mxu0 %v2465
        %v2536 = vpop.f32.mrb[0].mxu0
        %v2537 = vadd.f32 %v2383, %v2536
        %v2538 = vpop.f32.mrb[0].mxu0
        %v2539 = vpop.f32.mrb[0].mxu0
        %v2540 = vadd.f32 %v2388, %v2539
        %v2541 = vpop.f32.mrb[0].mxu0
        %2542 = vmatprep.mubr.bf16.mxu0 0
        %2543 = vmatmul.mubr.bf16.gmra.mrb[0].mxu0 %v2466
        %v2544 = vpop.f32.mrb[0].mxu0
        %v2545 = vadd.f32 %v2393, %v2544
        %v2546 = vpop.f32.mrb[0].mxu0
        %v2547 = vpop.f32.mrb[0].mxu0
        %v2548 = vadd.f32 %v2398, %v2547
        %v2549 = vpop.f32.mrb[0].mxu0
        %2550 = vmatprep.mubr.bf16.mxu0 0
        %2551 = vmatmul.mubr.bf16.gmra.mrb[0].mxu0 %v2467
        %v2552 = vpop.f32.mrb[0].mxu0
        %v2553 = vadd.f32 %v2403, %v2552
        %v2554 = vpop.f32.mrb[0].mxu0
        %v2555 = vpop.f32.mrb[0].mxu0
        %v2556 = vadd.f32 %v2408, %v2555
        %v2557 = vpop.f32.mrb[0].mxu0
        %2558 = vmatprep.mubr.bf16.mxu0 0
        %2559 = vmatmul.mubr.bf16.gmra.mrb[0].mxu0 %v2468
        %v2560 = vpop.f32.mrb[0].mxu0
        %v2561 = vadd.f32 %v2413, %v2560
        %v2562 = vpop.f32.mrb[0].mxu0
        %v2563 = vpop.f32.mrb[0].mxu0
        %v2564 = vadd.f32 %v2418, %v2563
        %v2565 = vpop.f32.mrb[0].mxu0
        %2566 = vmatprep.mubr.bf16.mxu0 0
        %2567 = vmatmul.mubr.bf16.gmra.mrb[0].mxu0 %v2469
        %v2568 = vpop.f32.mrb[0].mxu0
        %v2569 = vadd.f32 %v2423, %v2568
        %v2570 = vpop.f32.mrb[0].mxu0
        %v2571 = vpop.f32.mrb[0].mxu0
        %v2572 = vadd.f32 %v2428, %v2571
        %v2573 = vpop.f32.mrb[0].mxu0
        %2574 = vdwg.mxu0
        %v2575 = vmax.f32 %v2513, 0.0
        %v2576 = vmax.f32 %v2516, 0.0
        %v2577 = vmax.f32 %v2521, 0.0
        %v2578 = vmax.f32 %v2524, 0.0
        %v2579 = vmax.f32 %v2529, 0.0
        %v2580 = vmax.f32 %v2532, 0.0
        %v2581 = vmax.f32 %v2537, 0.0
        %v2582 = vmax.f32 %v2540, 0.0
        %v2583 = vmax.f32 %v2545, 0.0
        %v2584 = vmax.f32 %v2548, 0.0
        %v2585 = vmax.f32 %v2553, 0.0
        %v2586 = vmax.f32 %v2556, 0.0
        %v2587 = vmax.f32 %v2561, 0.0
        %v2588 = vmax.f32 %v2564, 0.0
        %v2589 = vmax.f32 %v2569, 0.0
        %v2590 = vmax.f32 %v2572, 0.0
        %v2591 = vadd.f32 %v2294, %v2575
        %v2592 = vadd.f32 %v2295, %v2576
        %v2593 = vadd.f32 %v2296, %v2577
        %v2594 = vadd.f32 %v2297, %v2578
        %v2595 = vadd.f32 %v2298, %v2579
        %v2596 = vadd.f32 %v2299, %v2580
        %v2597 = vadd.f32 %v2300, %v2581
        %v2598 = vadd.f32 %v2301, %v2582
        %v2599 = vadd.f32 %v2302, %v2583
        %v2600 = vadd.f32 %v2303, %v2584
        %v2601 = vadd.f32 %v2304, %v2585
        %v2602 = vadd.f32 %v2305, %v2586
        %v2603 = vadd.f32 %v2306, %v2587
        %v2604 = vadd.f32 %v2307, %v2588
        %v2605 = vadd.f32 %v2308, %v2589
        %v2606 = vadd.f32 %v2309, %v2590
        %v2607 = vld [vmem:[%s14] sm:$0xf]
        %v2608 = vld [vmem:[%s14 + $0x4] sm:$0xf]
        %v2609 = vld [vmem:[%s14 + $0x8] sm:$0xf]
        %v2610 = vld [vmem:[%s14 + $0xc] sm:$0xf]
        %v2611 = vld [vmem:[%s14 + $0x10] sm:$0xf]
        %v2612 = vld [vmem:[%s14 + $0x14] sm:$0xf]
        %v2613 = vld [vmem:[%s14 + $0x18] sm:$0xf]
        %v2614 = vld [vmem:[%s14 + $0x1c] sm:$0xf]
        %v2615 = vld [vmem:[%s14 + $0x20] sm:$0xf]
        %v2616 = vld [vmem:[%s14 + $0x24] sm:$0xf]
        %v2617 = vld [vmem:[%s14 + $0x28] sm:$0xf]
        %v2618 = vld [vmem:[%s14 + $0x2c] sm:$0xf]
        %v2619 = vld [vmem:[%s14 + $0x30] sm:$0xf]
        %v2620 = vld [vmem:[%s14 + $0x34] sm:$0xf]
        %v2621 = vld [vmem:[%s14 + $0x38] sm:$0xf]
        %v2622 = vld [vmem:[%s14 + $0x3c] sm:$0xf]
        %v2623 = vpack.c.bf16 %v2592, %v2591
        %v2624 = vpack.c.bf16 %v2594, %v2593
        %v2625 = vpack.c.bf16 %v2596, %v2595
        %v2626 = vpack.c.bf16 %v2598, %v2597
        %v2627 = vpack.c.bf16 %v2600, %v2599
        %v2628 = vpack.c.bf16 %v2602, %v2601
        %v2629 = vpack.c.bf16 %v2604, %v2603
        %v2630 = vpack.c.bf16 %v2606, %v2605
        %v2631 = vld [vmem:[%s15] sm:$0xff]
        %v2632 = vld [vmem:[%s15 + $0x8] sm:$0xff]
        %v2633 = vld [vmem:[%s15 + $0x10] sm:$0xff]
        %v2634 = vld [vmem:[%s15 + $0x18] sm:$0xff]
        %v2635 = vld [vmem:[%s15 + $0x20] sm:$0xff]
        %v2636 = vld [vmem:[%s15 + $0x28] sm:$0xff]
        %v2637 = vld [vmem:[%s15 + $0x30] sm:$0xff]
        %v2638 = vld [vmem:[%s15 + $0x38] sm:$0xff]
        %v2639 = vld [vmem:[%s15 + $0x40] sm:$0xff]
        %v2640 = vld [vmem:[%s15 + $0x48] sm:$0xff]
        %v2641 = vld [vmem:[%s15 + $0x50] sm:$0xff]
        %v2642 = vld [vmem:[%s15 + $0x58] sm:$0xff]
        %v2643 = vld [vmem:[%s15 + $0x60] sm:$0xff]
        %v2644 = vld [vmem:[%s15 + $0x68] sm:$0xff]
        %v2645 = vld [vmem:[%s15 + $0x70] sm:$0xff]
        %v2646 = vld [vmem:[%s15 + $0x78] sm:$0xff]
        %2648 = vset.pattern.permute.xlu0 0
        %2649 = vperm.xlu0 %2648, %v2631
        %v2650 = vpop.permute.xlu0 %2649
        %2653 = vset.pattern.permute.xlu0 0
        %2654 = vperm.xlu0 %2653, %v2632
        %v2655 = vpop.permute.xlu0 %2654
        %2658 = vset.pattern.permute.xlu0 0
        %2659 = vperm.xlu0 %2658, %v2633
        %v2660 = vpop.permute.xlu0 %2659
        %2663 = vset.pattern.permute.xlu0 0
        %2664 = vperm.xlu0 %2663, %v2634
        %v2665 = vpop.permute.xlu0 %2664
        %2668 = vset.pattern.permute.xlu0 0
        %2669 = vperm.xlu0 %2668, %v2635
        %v2670 = vpop.permute.xlu0 %2669
        %2673 = vset.pattern.permute.xlu0 0
        %2674 = vperm.xlu0 %2673, %v2636
        %v2675 = vpop.permute.xlu0 %2674
        %2678 = vset.pattern.permute.xlu0 0
        %2679 = vperm.xlu0 %2678, %v2637
        %v2680 = vpop.permute.xlu0 %2679
        %2683 = vset.pattern.permute.xlu0 0
        %2684 = vperm.xlu0 %2683, %v2638
        %v2685 = vpop.permute.xlu0 %2684
        %2688 = vset.pattern.permute.xlu0 0
        %2689 = vperm.xlu0 %2688, %v2639
        %v2690 = vpop.permute.xlu0 %2689
        %2693 = vset.pattern.permute.xlu0 0
        %2694 = vperm.xlu0 %2693, %v2640
        %v2695 = vpop.permute.xlu0 %2694
        %2698 = vset.pattern.permute.xlu0 0
        %2699 = vperm.xlu0 %2698, %v2641
        %v2700 = vpop.permute.xlu0 %2699
        %2703 = vset.pattern.permute.xlu0 0
        %2704 = vperm.xlu0 %2703, %v2642
        %v2705 = vpop.permute.xlu0 %2704
        %2708 = vset.pattern.permute.xlu0 0
        %2709 = vperm.xlu0 %2708, %v2643
        %v2710 = vpop.permute.xlu0 %2709
        %2713 = vset.pattern.permute.xlu0 0
        %2714 = vperm.xlu0 %2713, %v2644
        %v2715 = vpop.permute.xlu0 %2714
        %2718 = vset.pattern.permute.xlu0 0
        %2719 = vperm.xlu0 %2718, %v2645
        %v2720 = vpop.permute.xlu0 %2719
        %2723 = vset.pattern.permute.xlu0 0
        %2724 = vperm.xlu0 %2723, %v2646
        %v2725 = vpop.permute.xlu0 %2724
        %v2743 = vunpack.c.l.b16 %v2607
        %v2744 = vunpack.c.l.b16 %v2608
        %v2745 = vunpack.c.l.b16 %v2609
        %v2746 = vunpack.c.l.b16 %v2610
        %v2747 = vunpack.c.l.b16 %v2611
        %v2748 = vunpack.c.l.b16 %v2612
        %v2749 = vunpack.c.l.b16 %v2613
        %v2750 = vunpack.c.l.b16 %v2614
        %v2751 = vunpack.c.l.b16 %v2615
        %v2752 = vunpack.c.l.b16 %v2616
        %v2753 = vunpack.c.l.b16 %v2617
        %v2754 = vunpack.c.l.b16 %v2618
        %v2755 = vunpack.c.l.b16 %v2619
        %v2756 = vunpack.c.l.b16 %v2620
        %v2757 = vunpack.c.l.b16 %v2621
        %v2758 = vunpack.c.l.b16 %v2622
        %v2759 = vpack.c.b16 %v2744, %v2743
        %v2760 = vpack.c.b16 %v2746, %v2745
        %v2761 = vpack.c.b16 %v2748, %v2747
        %v2762 = vpack.c.b16 %v2750, %v2749
        %v2763 = vpack.c.b16 %v2752, %v2751
        %v2764 = vpack.c.b16 %v2754, %v2753
        %v2765 = vpack.c.b16 %v2756, %v2755
        %v2766 = vpack.c.b16 %v2758, %v2757
        %2775 = vmatprep.subr.bf16.mxu0 0
        %2776 = vmatpush1.bf16.msra.mxu0 %v2623
        %2777 = vmatprep.subr.bf16.mxu0 0
        %2778 = vmatpush1.bf16.msra.mxu0 %v2624
        %2779 = vmatprep.subr.bf16.mxu0 0
        %2780 = vmatpush1.bf16.msra.mxu0 %v2625
        %2781 = vmatprep.subr.bf16.mxu0 0
        %2782 = vmatpush1.bf16.msra.mxu0 %v2626
        %2783 = vmatprep.subr.bf16.mxu0 0
        %2784 = vmatpush1.bf16.msra.mxu0 %v2627
        %2785 = vmatprep.subr.bf16.mxu0 0
        %2786 = vmatpush1.bf16.msra.mxu0 %v2628
        %2787 = vmatprep.subr.bf16.mxu0 0
        %2788 = vmatpush1.bf16.msra.mxu0 %v2629
        %2789 = vmatprep.subr.bf16.mxu0 0
        %2790 = vmatpush1.bf16.msra.mxu0 %v2630
        %2791 = vmatprep.subr.bf16.mxu0 0
        %2792 = vmatpush1.bf16.msra.mxu0 0
        %2793 = vmatprep.subr.bf16.mxu0 0
        %2794 = vmatpush1.bf16.msra.mxu0 0
        %2795 = vmatprep.subr.bf16.mxu0 0
        %2796 = vmatpush1.bf16.msra.mxu0 0
        %2797 = vmatprep.subr.bf16.mxu0 0
        %2798 = vmatpush1.bf16.msra.mxu0 0
        %2799 = vmatprep.subr.bf16.mxu0 0
        %2800 = vmatpush1.bf16.msra.mxu0 0
        %2801 = vmatprep.subr.bf16.mxu0 0
        %2802 = vmatpush1.bf16.msra.mxu0 0
        %2803 = vmatprep.subr.bf16.mxu0 0
        %2804 = vmatpush1.bf16.msra.mxu0 0
        %2805 = vmatprep.subr.bf16.mxu0 0
        %2806 = vmatpush1.bf16.msra.mxu0 0
        %2807 = vmatprep.mubr.bf16.mxu0 0
        %2808 = vmatmul.mubr.bf16.gmra.mrb[0].mxu0 %v2759
        %v2809 = vpop.f32.mrb[0].mxu0
        %v2810 = vadd.f32 %v2650, %v2809
        %v2811 = vpop.f32.mrb[0].mxu0
        %v2812 = vpop.f32.mrb[0].mxu0
        %v2813 = vadd.f32 %v2655, %v2812
        %v2814 = vpop.f32.mrb[0].mxu0
        %2815 = vmatprep.mubr.bf16.mxu0 0
        %2816 = vmatmul.mubr.bf16.gmra.mrb[0].mxu0 %v2760
        %v2817 = vpop.f32.mrb[0].mxu0
        %v2818 = vadd.f32 %v2660, %v2817
        %v2819 = vpop.f32.mrb[0].mxu0
        %v2820 = vpop.f32.mrb[0].mxu0
        %v2821 = vadd.f32 %v2665, %v2820
        %v2822 = vpop.f32.mrb[0].mxu0
        %2823 = vmatprep.mubr.bf16.mxu0 0
        %2824 = vmatmul.mubr.bf16.gmra.mrb[0].mxu0 %v2761
        %v2825 = vpop.f32.mrb[0].mxu0
        %v2826 = vadd.f32 %v2670, %v2825
        %v2827 = vpop.f32.mrb[0].mxu0
        %v2828 = vpop.f32.mrb[0].mxu0
        %v2829 = vadd.f32 %v2675, %v2828
        %v2830 = vpop.f32.mrb[0].mxu0
        %2831 = vmatprep.mubr.bf16.mxu0 0
        %2832 = vmatmul.mubr.bf16.gmra.mrb[0].mxu0 %v2762
        %v2833 = vpop.f32.mrb[0].mxu0
        %v2834 = vadd.f32 %v2680, %v2833
        %v2835 = vpop.f32.mrb[0].mxu0
        %v2836 = vpop.f32.mrb[0].mxu0
        %v2837 = vadd.f32 %v2685, %v2836
        %v2838 = vpop.f32.mrb[0].mxu0
        %2839 = vmatprep.mubr.bf16.mxu0 0
        %2840 = vmatmul.mubr.bf16.gmra.mrb[0].mxu0 %v2763
        %v2841 = vpop.f32.mrb[0].mxu0
        %v2842 = vadd.f32 %v2690, %v2841
        %v2843 = vpop.f32.mrb[0].mxu0
        %v2844 = vpop.f32.mrb[0].mxu0
        %v2845 = vadd.f32 %v2695, %v2844
        %v2846 = vpop.f32.mrb[0].mxu0
        %2847 = vmatprep.mubr.bf16.mxu0 0
        %2848 = vmatmul.mubr.bf16.gmra.mrb[0].mxu0 %v2764
        %v2849 = vpop.f32.mrb[0].mxu0
        %v2850 = vadd.f32 %v2700, %v2849
        %v2851 = vpop.f32.mrb[0].mxu0
        %v2852 = vpop.f32.mrb[0].mxu0
        %v2853 = vadd.f32 %v2705, %v2852
        %v2854 = vpop.f32.mrb[0].mxu0
        %2855 = vmatprep.mubr.bf16.mxu0 0
        %2856 = vmatmul.mubr.bf16.gmra.mrb[0].mxu0 %v2765
        %v2857 = vpop.f32.mrb[0].mxu0
        %v2858 = vadd.f32 %v2710, %v2857
        %v2859 = vpop.f32.mrb[0].mxu0
        %v2860 = vpop.f32.mrb[0].mxu0
        %v2861 = vadd.f32 %v2715, %v2860
        %v2862 = vpop.f32.mrb[0].mxu0
        %2863 = vmatprep.mubr.bf16.mxu0 0
        %2864 = vmatmul.mubr.bf16.gmra.mrb[0].mxu0 %v2766
        %v2865 = vpop.f32.mrb[0].mxu0
        %v2866 = vadd.f32 %v2720, %v2865
        %v2867 = vpop.f32.mrb[0].mxu0
        %v2868 = vpop.f32.mrb[0].mxu0
        %v2869 = vadd.f32 %v2725, %v2868
        %v2870 = vpop.f32.mrb[0].mxu0
        %2871 = vdwg.mxu0
        %v2872 = vmax.f32 %v2810, 0.0
        %v2873 = vmax.f32 %v2813, 0.0
        %v2874 = vmax.f32 %v2818, 0.0
        %v2875 = vmax.f32 %v2821, 0.0
        %v2876 = vmax.f32 %v2826, 0.0
        %v2877 = vmax.f32 %v2829, 0.0
        %v2878 = vmax.f32 %v2834, 0.0
        %v2879 = vmax.f32 %v2837, 0.0
        %v2880 = vmax.f32 %v2842, 0.0
        %v2881 = vmax.f32 %v2845, 0.0
        %v2882 = vmax.f32 %v2850, 0.0
        %v2883 = vmax.f32 %v2853, 0.0
        %v2884 = vmax.f32 %v2858, 0.0
        %v2885 = vmax.f32 %v2861, 0.0
        %v2886 = vmax.f32 %v2866, 0.0
        %v2887 = vmax.f32 %v2869, 0.0
        %v2888 = vadd.f32 %v2591, %v2872
        %v2889 = vadd.f32 %v2592, %v2873
        %v2890 = vadd.f32 %v2593, %v2874
        %v2891 = vadd.f32 %v2594, %v2875
        %v2892 = vadd.f32 %v2595, %v2876
        %v2893 = vadd.f32 %v2596, %v2877
        %v2894 = vadd.f32 %v2597, %v2878
        %v2895 = vadd.f32 %v2598, %v2879
        %v2896 = vadd.f32 %v2599, %v2880
        %v2897 = vadd.f32 %v2600, %v2881
        %v2898 = vadd.f32 %v2601, %v2882
        %v2899 = vadd.f32 %v2602, %v2883
        %v2900 = vadd.f32 %v2603, %v2884
        %v2901 = vadd.f32 %v2604, %v2885
        %v2902 = vadd.f32 %v2605, %v2886
        %v2903 = vadd.f32 %v2606, %v2887
        %v2904 = vld [vmem:[%s16] sm:$0xf]
        %v2905 = vld [vmem:[%s16 + $0x4] sm:$0xf]
        %v2906 = vld [vmem:[%s16 + $0x8] sm:$0xf]
        %v2907 = vld [vmem:[%s16 + $0xc] sm:$0xf]
        %v2908 = vld [vmem:[%s16 + $0x10] sm:$0xf]
        %v2909 = vld [vmem:[%s16 + $0x14] sm:$0xf]
        %v2910 = vld [vmem:[%s16 + $0x18] sm:$0xf]
        %v2911 = vld [vmem:[%s16 + $0x1c] sm:$0xf]
        %v2912 = vld [vmem:[%s16 + $0x20] sm:$0xf]
        %v2913 = vld [vmem:[%s16 + $0x24] sm:$0xf]
        %v2914 = vld [vmem:[%s16 + $0x28] sm:$0xf]
        %v2915 = vld [vmem:[%s16 + $0x2c] sm:$0xf]
        %v2916 = vld [vmem:[%s16 + $0x30] sm:$0xf]
        %v2917 = vld [vmem:[%s16 + $0x34] sm:$0xf]
        %v2918 = vpack.c.bf16 %v2889, %v2888
        %v2919 = vpack.c.bf16 %v2891, %v2890
        %v2920 = vpack.c.bf16 %v2893, %v2892
        %v2921 = vpack.c.bf16 %v2895, %v2894
        %v2922 = vpack.c.bf16 %v2897, %v2896
        %v2923 = vpack.c.bf16 %v2899, %v2898
        %v2924 = vpack.c.bf16 %v2901, %v2900
        %v2925 = vpack.c.bf16 %v2903, %v2902
        %v2926 = vld [vmem:[%s17] sm:$0xff]
        %v2927 = vld [vmem:[%s17 + $0x8] sm:$0xff]
        %v2928 = vld [vmem:[%s17 + $0x10] sm:$0xff]
        %v2929 = vld [vmem:[%s17 + $0x18] sm:$0xff]
        %v2930 = vld [vmem:[%s17 + $0x20] sm:$0xff]
        %v2931 = vld [vmem:[%s17 + $0x28] sm:$0xff]
        %v2932 = vld [vmem:[%s17 + $0x30] sm:$0xff]
        %v2933 = vld [vmem:[%s17 + $0x38] sm:$0xff]
        %v2934 = vld [vmem:[%s17 + $0x40] sm:$0xff]
        %v2935 = vld [vmem:[%s17 + $0x48] sm:$0xff]
        %v2936 = vld [vmem:[%s17 + $0x50] sm:$0xff]
        %v2937 = vld [vmem:[%s17 + $0x58] sm:$0xff]
        %v2938 = vld [vmem:[%s17 + $0x60] sm:$0xff]
        %v2939 = vld [vmem:[%s17 + $0x68] sm:$0xff]
        %2941 = vset.pattern.permute.xlu0 0
        %2942 = vperm.xlu0 %2941, %v2926
        %v2943 = vpop.permute.xlu0 %2942
        %2946 = vset.pattern.permute.xlu0 0
        %2947 = vperm.xlu0 %2946, %v2927
        %v2948 = vpop.permute.xlu0 %2947
        %2951 = vset.pattern.permute.xlu0 0
        %2952 = vperm.xlu0 %2951, %v2928
        %v2953 = vpop.permute.xlu0 %2952
        %2956 = vset.pattern.permute.xlu0 0
        %2957 = vperm.xlu0 %2956, %v2929
        %v2958 = vpop.permute.xlu0 %2957
        %2961 = vset.pattern.permute.xlu0 0
        %2962 = vperm.xlu0 %2961, %v2930
        %v2963 = vpop.permute.xlu0 %2962
        %2966 = vset.pattern.permute.xlu0 0
        %2967 = vperm.xlu0 %2966, %v2931
        %v2968 = vpop.permute.xlu0 %2967
        %2971 = vset.pattern.permute.xlu0 0
        %2972 = vperm.xlu0 %2971, %v2932
        %v2973 = vpop.permute.xlu0 %2972
        %2976 = vset.pattern.permute.xlu0 0
        %2977 = vperm.xlu0 %2976, %v2933
        %v2978 = vpop.permute.xlu0 %2977
        %2981 = vset.pattern.permute.xlu0 0
        %2982 = vperm.xlu0 %2981, %v2934
        %v2983 = vpop.permute.xlu0 %2982
        %2986 = vset.pattern.permute.xlu0 0
        %2987 = vperm.xlu0 %2986, %v2935
        %v2988 = vpop.permute.xlu0 %2987
        %2991 = vset.pattern.permute.xlu0 0
        %2992 = vperm.xlu0 %2991, %v2936
        %v2993 = vpop.permute.xlu0 %2992
        %2996 = vset.pattern.permute.xlu0 0
        %2997 = vperm.xlu0 %2996, %v2937
        %v2998 = vpop.permute.xlu0 %2997
        %3001 = vset.pattern.permute.xlu0 0
        %3002 = vperm.xlu0 %3001, %v2938
        %v3003 = vpop.permute.xlu0 %3002
        %3006 = vset.pattern.permute.xlu0 0
        %3007 = vperm.xlu0 %3006, %v2939
        %v3008 = vpop.permute.xlu0 %3007
        %v3024 = vunpack.c.l.b16 %v2904
        %v3025 = vunpack.c.l.b16 %v2905
        %v3026 = vunpack.c.l.b16 %v2906
        %v3027 = vunpack.c.l.b16 %v2907
        %v3028 = vunpack.c.l.b16 %v2908
        %v3029 = vunpack.c.l.b16 %v2909
        %v3030 = vunpack.c.l.b16 %v2910
        %v3031 = vunpack.c.l.b16 %v2911
        %v3032 = vunpack.c.l.b16 %v2912
        %v3033 = vunpack.c.l.b16 %v2913
        %v3034 = vunpack.c.l.b16 %v2914
        %v3035 = vunpack.c.l.b16 %v2915
        %v3036 = vunpack.c.l.b16 %v2916
        %v3037 = vunpack.c.l.b16 %v2917
        %v3038 = vpack.c.b16 %v3025, %v3024
        %v3039 = vpack.c.b16 %v3027, %v3026
        %v3040 = vpack.c.b16 %v3029, %v3028
        %v3041 = vpack.c.b16 %v3031, %v3030
        %v3042 = vpack.c.b16 %v3033, %v3032
        %v3043 = vpack.c.b16 %v3035, %v3034
        %v3044 = vpack.c.b16 %v3037, %v3036
        %3052 = vmatprep.subr.bf16.mxu0 0
        %3053 = vmatpush1.bf16.msra.mxu0 %v2918
        %3054 = vmatprep.subr.bf16.mxu0 0
        %3055 = vmatpush1.bf16.msra.mxu0 %v2919
        %3056 = vmatprep.subr.bf16.mxu0 0
        %3057 = vmatpush1.bf16.msra.mxu0 %v2920
        %3058 = vmatprep.subr.bf16.mxu0 0
        %3059 = vmatpush1.bf16.msra.mxu0 %v2921
        %3060 = vmatprep.subr.bf16.mxu0 0
        %3061 = vmatpush1.bf16.msra.mxu0 %v2922
        %3062 = vmatprep.subr.bf16.mxu0 0
        %3063 = vmatpush1.bf16.msra.mxu0 %v2923
        %3064 = vmatprep.subr.bf16.mxu0 0
        %3065 = vmatpush1.bf16.msra.mxu0 %v2924
        %3066 = vmatprep.subr.bf16.mxu0 0
        %3067 = vmatpush1.bf16.msra.mxu0 %v2925
        %3068 = vmatprep.subr.bf16.mxu0 0
        %3069 = vmatpush1.bf16.msra.mxu0 0
        %3070 = vmatprep.subr.bf16.mxu0 0
        %3071 = vmatpush1.bf16.msra.mxu0 0
        %3072 = vmatprep.subr.bf16.mxu0 0
        %3073 = vmatpush1.bf16.msra.mxu0 0
        %3074 = vmatprep.subr.bf16.mxu0 0
        %3075 = vmatpush1.bf16.msra.mxu0 0
        %3076 = vmatprep.subr.bf16.mxu0 0
        %3077 = vmatpush1.bf16.msra.mxu0 0
        %3078 = vmatprep.subr.bf16.mxu0 0
        %3079 = vmatpush1.bf16.msra.mxu0 0
        %3080 = vmatprep.subr.bf16.mxu0 0
        %3081 = vmatpush1.bf16.msra.mxu0 0
        %3082 = vmatprep.subr.bf16.mxu0 0
        %3083 = vmatpush1.bf16.msra.mxu0 0
        %3084 = vmatprep.mubr.bf16.mxu0 0
        %3085 = vmatmul.mubr.bf16.gmra.mrb[0].mxu0 %v3038
        %v3086 = vpop.f32.mrb[0].mxu0
        %v3087 = vadd.f32 %v2943, %v3086
        %v3088 = vpop.f32.mrb[0].mxu0
        %v3089 = vpop.f32.mrb[0].mxu0
        %v3090 = vadd.f32 %v2948, %v3089
        %v3091 = vpop.f32.mrb[0].mxu0
        %3092 = vmatprep.mubr.bf16.mxu0 0
        %3093 = vmatmul.mubr.bf16.gmra.mrb[0].mxu0 %v3039
        %v3094 = vpop.f32.mrb[0].mxu0
        %v3095 = vadd.f32 %v2953, %v3094
        %v3096 = vpop.f32.mrb[0].mxu0
        %v3097 = vpop.f32.mrb[0].mxu0
        %v3098 = vadd.f32 %v2958, %v3097
        %v3099 = vpop.f32.mrb[0].mxu0
        %3100 = vmatprep.mubr.bf16.mxu0 0
        %3101 = vmatmul.mubr.bf16.gmra.mrb[0].mxu0 %v3040
        %v3102 = vpop.f32.mrb[0].mxu0
        %v3103 = vadd.f32 %v2963, %v3102
        %v3104 = vpop.f32.mrb[0].mxu0
        %v3105 = vpop.f32.mrb[0].mxu0
        %v3106 = vadd.f32 %v2968, %v3105
        %v3107 = vpop.f32.mrb[0].mxu0
        %3108 = vmatprep.mubr.bf16.mxu0 0
        %3109 = vmatmul.mubr.bf16.gmra.mrb[0].mxu0 %v3041
        %v3110 = vpop.f32.mrb[0].mxu0
        %v3111 = vadd.f32 %v2973, %v3110
        %v3112 = vpop.f32.mrb[0].mxu0
        %v3113 = vpop.f32.mrb[0].mxu0
        %v3114 = vadd.f32 %v2978, %v3113
        %v3115 = vpop.f32.mrb[0].mxu0
        %3116 = vmatprep.mubr.bf16.mxu0 0
        %3117 = vmatmul.mubr.bf16.gmra.mrb[0].mxu0 %v3042
        %v3118 = vpop.f32.mrb[0].mxu0
        %v3119 = vadd.f32 %v2983, %v3118
        %v3120 = vpop.f32.mrb[0].mxu0
        %v3121 = vpop.f32.mrb[0].mxu0
        %v3122 = vadd.f32 %v2988, %v3121
        %v3123 = vpop.f32.mrb[0].mxu0
        %3124 = vmatprep.mubr.bf16.mxu0 0
        %3125 = vmatmul.mubr.bf16.gmra.mrb[0].mxu0 %v3043
        %v3126 = vpop.f32.mrb[0].mxu0
        %v3127 = vadd.f32 %v2993, %v3126
        %v3128 = vpop.f32.mrb[0].mxu0
        %v3129 = vpop.f32.mrb[0].mxu0
        %v3130 = vadd.f32 %v2998, %v3129
        %v3131 = vpop.f32.mrb[0].mxu0
        %3132 = vmatprep.mubr.bf16.mxu0 0
        %3133 = vmatmul.mubr.bf16.gmra.mrb[0].mxu0 %v3044
        %v3134 = vpop.f32.mrb[0].mxu0
        %v3135 = vadd.f32 %v3003, %v3134
        %v3136 = vpop.f32.mrb[0].mxu0
        %v3137 = vpop.f32.mrb[0].mxu0
        %v3138 = vadd.f32 %v3008, %v3137
        %v3139 = vpop.f32.mrb[0].mxu0
        %3140 = vdwg.mxu0
        %3141 = vst [vmem:[#allocation2] sm:$0xff] %v3087
        %3142 = vst [vmem:[#allocation2 + $0x8] sm:$0xff] %v3090
        %3143 = vst [vmem:[#allocation2 + $0x10] sm:$0xff] %v3095
        %3144 = vst [vmem:[#allocation2 + $0x18] sm:$0xff] %v3098
        %3145 = vst [vmem:[#allocation2 + $0x20] sm:$0xff] %v3103
        %3146 = vst [vmem:[#allocation2 + $0x28] sm:$0xff] %v3106
        %3147 = vst [vmem:[#allocation2 + $0x30] sm:$0xff] %v3111
        %3148 = vst [vmem:[#allocation2 + $0x38] sm:$0xff] %v3114
        %3149 = vst [vmem:[#allocation2 + $0x40] sm:$0xff] %v3119
        %3150 = vst [vmem:[#allocation2 + $0x48] sm:$0xff] %v3122
        %3151 = vst [vmem:[#allocation2 + $0x50] sm:$0xff] %v3127
        %3152 = vst [vmem:[#allocation2 + $0x58] sm:$0xff] %v3130
        %3153 = vst [vmem:[#allocation2 + $0x60] sm:$0xff] %v3135
        %3154 = vst [vmem:[#allocation2 + $0x68] sm:$0xff] %v3138
        %v3155 = vmax.f32 %v589, -3.0
        %v3156 = vmin.f32 %v3155, 3.0
        %v3157 = vld [vmem:[#allocation2] sm:$0xff]
        %v3158 = vld [vmem:[#allocation2 + $0x8] sm:$0xff]
        %v3159 = vmax.f32 %v3157, %v3158
        %v3160 = vld [vmem:[#allocation2 + $0x10] sm:$0xff]
        %v3161 = vmax.f32 %v3159, %v3160
        %v3162 = vld [vmem:[#allocation2 + $0x18] sm:$0xff]
        %v3163 = vmax.f32 %v3161, %v3162
        %v3164 = vld [vmem:[#allocation2 + $0x20] sm:$0xff]
        %v3165 = vmax.f32 %v3163, %v3164
        %v3166 = vsub.f32 %v3157, %v3165
        %v3167 = vmul.f32 %v3166, 1.442695
        %v3168 = vpow.pop %v3167
        %v3169 = vsub.f32 %v3158, %v3165
        %v3170 = vmul.f32 %v3169, 1.442695
        %v3171 = vpow.pop %v3170
        %v3172 = vsub.f32 %v3160, %v3165
        %v3173 = vmul.f32 %v3172, 1.442695
        %v3174 = vpow.pop %v3173
        %v3175 = vsub.f32 %v3162, %v3165
        %v3176 = vmul.f32 %v3175, 1.442695
        %v3177 = vpow.pop %v3176
        %v3178 = vsub.f32 %v3164, %v3165
        %v3179 = vmul.f32 %v3178, 1.442695
        %v3180 = vpow.pop %v3179
        %v3181 = vadd.f32 %v3168, %v3171
        %v3182 = vadd.f32 %v3181, %v3174
        %v3183 = vadd.f32 %v3182, %v3177
        %v3184 = vadd.f32 %v3183, %v3180
        %v3185 = vrcp.pop %v3184
        %v3186 = vmul.f32 6.0, %v3185
        %v3187 = vmul.f32 %v3168, %v3186
        %v3188 = vmul.f32 %v3187, 1.442695
        %v3189 = vpow.pop %v3188
        %v3190 = vmul.f32 %v3171, %v3186
        %v3191 = vmul.f32 %v3190, 1.442695
        %v3192 = vpow.pop %v3191
        %v3193 = vmul.f32 %v3174, %v3186
        %v3194 = vmul.f32 %v3193, 1.442695
        %v3195 = vpow.pop %v3194
        %v3196 = vmul.f32 %v3177, %v3186
        %v3197 = vmul.f32 %v3196, 1.442695
        %v3198 = vpow.pop %v3197
        %v3199 = vmul.f32 %v3180, %v3186
        %v3200 = vmul.f32 %v3199, 1.442695
        %v3201 = vpow.pop %v3200
        %v3202 = vadd.f32 %v3189, %v3192
        %v3203 = vadd.f32 %v3202, %v3195
        %v3204 = vadd.f32 %v3203, %v3198
        %v3205 = vadd.f32 %v3204, %v3201
        %v3206 = vrcp.pop %v3205
        %v3207 = vmul.f32 0.995, %v3206
        %v3208 = vmul.f32 %v3189, %v3207
        %v3209 = vadd.f32 %v3208, 0.001
        %v3210 = vmul.f32 %v3192, %v3207
        %v3211 = vadd.f32 %v3210, 0.001
        %v3212 = vmul.f32 %v3195, %v3207
        %v3213 = vadd.f32 %v3212, 0.001
        %v3214 = vmul.f32 %v3198, %v3207
        %v3215 = vadd.f32 %v3214, 0.001
        %v3216 = vld [vmem:[#allocation2 + $0x28] sm:$0xff]
        %v3217 = vld [vmem:[#allocation2 + $0x30] sm:$0xff]
        %v3218 = vmax.f32 %v3216, %v3217
        %v3219 = vld [vmem:[#allocation2 + $0x38] sm:$0xff]
        %v3220 = vmax.f32 %v3218, %v3219
        %v3221 = vld [vmem:[#allocation2 + $0x40] sm:$0xff]
        %v3222 = vmax.f32 %v3220, %v3221
        %v3223 = vld [vmem:[#allocation2 + $0x48] sm:$0xff]
        %v3224 = vmax.f32 %v3222, %v3223
        %v3225 = vsub.f32 %v3216, %v3224
        %v3226 = vmul.f32 %v3225, 1.442695
        %v3227 = vpow.pop %v3226
        %v3228 = vsub.f32 %v3217, %v3224
        %v3229 = vmul.f32 %v3228, 1.442695
        %v3230 = vpow.pop %v3229
        %v3231 = vsub.f32 %v3219, %v3224
        %v3232 = vmul.f32 %v3231, 1.442695
        %v3233 = vpow.pop %v3232
        %v3234 = vsub.f32 %v3221, %v3224
        %v3235 = vmul.f32 %v3234, 1.442695
        %v3236 = vpow.pop %v3235
        %v3237 = vsub.f32 %v3223, %v3224
        %v3238 = vmul.f32 %v3237, 1.442695
        %v3239 = vpow.pop %v3238
        %v3240 = vadd.f32 %v3227, %v3230
        %v3241 = vadd.f32 %v3240, %v3233
        %v3242 = vadd.f32 %v3241, %v3236
        %v3243 = vadd.f32 %v3242, %v3239
        %v3244 = vrcp.pop %v3243
        %v3245 = vmul.f32 6.0, %v3244
        %v3246 = vmul.f32 %v3227, %v3245
        %v3247 = vmul.f32 %v3246, 1.442695
        %v3248 = vpow.pop %v3247
        %v3249 = vmul.f32 %v3230, %v3245
        %v3250 = vmul.f32 %v3249, 1.442695
        %v3251 = vpow.pop %v3250
        %v3252 = vmul.f32 %v3233, %v3245
        %v3253 = vmul.f32 %v3252, 1.442695
        %v3254 = vpow.pop %v3253
        %v3255 = vmul.f32 %v3236, %v3245
        %v3256 = vmul.f32 %v3255, 1.442695
        %v3257 = vpow.pop %v3256
        %v3258 = vmul.f32 %v3239, %v3245
        %v3259 = vmul.f32 %v3258, 1.442695
        %v3260 = vpow.pop %v3259
        %v3261 = vadd.f32 %v3248, %v3251
        %v3262 = vadd.f32 %v3261, %v3254
        %v3263 = vadd.f32 %v3262, %v3257
        %v3264 = vadd.f32 %v3263, %v3260
        %v3265 = vrcp.pop %v3264
        %v3266 = vmul.f32 0.995, %v3265
        %v3267 = vmul.f32 %v3248, %v3266
        %v3268 = vadd.f32 %v3267, 0.001
        %v3269 = vmul.f32 %v3251, %v3266
        %v3270 = vadd.f32 %v3269, 0.001
        %v3271 = vmul.f32 %v3254, %v3266
        %v3272 = vadd.f32 %v3271, 0.001
        %v3273 = vmul.f32 %v3257, %v3266
        %v3274 = vadd.f32 %v3273, 0.001
        %v3275 = vmul.f32 %v3209, 6.0
        %v3276 = vmul.f32 %v3268, 6.0
        %v3277 = vld [vmem:[#allocation2 + $0x50] sm:$0xff]
        %v3278 = vmax.f32 %v3277, 0.0
        %v3279 = vand.u32 2147483647, %v3277
        %v3280 = vsub.f32 0.0, %v3279
        %v3281 = vmul.f32 %v3280, 1.442695
        %v3282 = vpow.pop %v3281
        %v3283 = vadd.f32 %v3282, 1.0
        %v3284 = vlog2.pop %v3283
        %v3285 = vmul.f32 %v3284, 0.6931472
        %v3286 = vadd.f32 %v3278, %v3285
        %v3287 = vmax.f32 %v3286, 0.0
        %v3288 = vand.u32 2147483647, %v3286
        %v3289 = vsub.f32 0.0, %v3288
        %v3290 = vmul.f32 %v3289, 1.442695
        %v3291 = vpow.pop %v3290
        %v3292 = vadd.f32 %v3291, 1.0
        %v3293 = vlog2.pop %v3292
        %v3294 = vmul.f32 %v3293, 0.6931472
        %v3295 = vadd.f32 %v3287, %v3294
        %v3296 = vadd.f32 %v3295, 0.001
        %v3297 = vadd.f32 %v3275, -3.0
        %v3298 = vadd.f32 %v3276, -3.0
        %v3299 = vmul.f32 %v3211, 6.0
        %v3300 = vmul.f32 %v3270, 6.0
        %v3301 = vld [vmem:[#allocation2 + $0x58] sm:$0xff]
        %v3302 = vmax.f32 %v3301, 0.0
        %v3303 = vand.u32 2147483647, %v3301
        %v3304 = vsub.f32 0.0, %v3303
        %v3305 = vmul.f32 %v3304, 1.442695
        %v3306 = vpow.pop %v3305
        %v3307 = vadd.f32 %v3306, 1.0
        %v3308 = vlog2.pop %v3307
        %v3309 = vmul.f32 %v3308, 0.6931472
        %v3310 = vadd.f32 %v3302, %v3309
        %v3311 = vmax.f32 %v3310, 0.0
        %v3312 = vand.u32 2147483647, %v3310
        %v3313 = vsub.f32 0.0, %v3312
        %v3314 = vmul.f32 %v3313, 1.442695
        %v3315 = vpow.pop %v3314
        %v3316 = vadd.f32 %v3315, 1.0
        %v3317 = vlog2.pop %v3316
        %v3318 = vmul.f32 %v3317, 0.6931472
        %v3319 = vadd.f32 %v3311, %v3318
        %v3320 = vadd.f32 %v3319, 0.001
        %vm3321 = vcmp.ge.f32.partialorder %v3156, %v3297
        %v3322 = vsel %vm3321, %v3297, -3.0
        %v3323 = vsel %vm3321, %v3298, -3.0
        %v3324 = vsel %vm3321, %v3299, %v3275
        %v3325 = vsel %vm3321, %v3300, %v3276
        %v3326 = vsel %vm3321, %v3296, 1.0
        %v3327 = vsel %vm3321, %v3320, %v3296
        %v3328 = vadd.f32 %v3297, %v3299
        %v3329 = vadd.f32 %v3298, %v3300
        %v3330 = vmul.f32 %v3213, 6.0
        %v3331 = vmul.f32 %v3272, 6.0
        %v3332 = vld [vmem:[#allocation2 + $0x60] sm:$0xff]
        %v3333 = vmax.f32 %v3332, 0.0
        %v3334 = vand.u32 2147483647, %v3332
        %v3335 = vsub.f32 0.0, %v3334
        %v3336 = vmul.f32 %v3335, 1.442695
        %v3337 = vpow.pop %v3336
        %v3338 = vadd.f32 %v3337, 1.0
        %v3339 = vlog2.pop %v3338
        %v3340 = vmul.f32 %v3339, 0.6931472
        %v3341 = vadd.f32 %v3333, %v3340
        %v3342 = vmax.f32 %v3341, 0.0
        %v3343 = vand.u32 2147483647, %v3341
        %v3344 = vsub.f32 0.0, %v3343
        %v3345 = vmul.f32 %v3344, 1.442695
        %v3346 = vpow.pop %v3345
        %v3347 = vadd.f32 %v3346, 1.0
        %v3348 = vlog2.pop %v3347
        %v3349 = vmul.f32 %v3348, 0.6931472
        %v3350 = vadd.f32 %v3342, %v3349
        %v3351 = vadd.f32 %v3350, 0.001
        %vm3352 = vcmp.ge.f32.partialorder %v3156, %v3328
        %v3353 = vsel %vm3352, %v3328, %v3322
        %v3354 = vsel %vm3352, %v3329, %v3323
        %v3355 = vsel %vm3352, %v3330, %v3324
        %v3356 = vsel %vm3352, %v3331, %v3325
        %v3357 = vsel %vm3352, %v3320, %v3326
        %v3358 = vsel %vm3352, %v3351, %v3327
        %v3359 = vadd.f32 %v3328, %v3330
        %v3360 = vadd.f32 %v3329, %v3331
        %v3361 = vmul.f32 %v3215, 6.0
        %v3362 = vmul.f32 %v3274, 6.0
        %v3363 = vld [vmem:[#allocation2 + $0x68] sm:$0xff]
        %v3364 = vmax.f32 %v3363, 0.0
        %v3365 = vand.u32 2147483647, %v3363
        %v3366 = vsub.f32 0.0, %v3365
        %v3367 = vmul.f32 %v3366, 1.442695
        %v3368 = vpow.pop %v3367
        %v3369 = vadd.f32 %v3368, 1.0
        %v3370 = vlog2.pop %v3369
        %v3371 = vmul.f32 %v3370, 0.6931472
        %v3372 = vadd.f32 %v3364, %v3371
        %v3373 = vmax.f32 %v3372, 0.0
        %v3374 = vand.u32 2147483647, %v3372
        %v3375 = vsub.f32 0.0, %v3374
        %v3376 = vmul.f32 %v3375, 1.442695
        %v3377 = vpow.pop %v3376
        %v3378 = vadd.f32 %v3377, 1.0
        %v3379 = vlog2.pop %v3378
        %v3380 = vmul.f32 %v3379, 0.6931472
        %v3381 = vadd.f32 %v3373, %v3380
        %v3382 = vadd.f32 %v3381, 0.001
        %vm3383 = vcmp.ge.f32.partialorder %v3156, %v3359
        %v3384 = vsel %vm3383, %v3359, %v3353
        %v3385 = vsel %vm3383, %v3360, %v3354
        %v3386 = vsel %vm3383, %v3361, %v3355
        %v3387 = vsel %vm3383, %v3362, %v3356
        %v3388 = vsel %vm3383, %v3351, %v3357
        %v3389 = vsel %vm3383, %v3382, %v3358
        %v3390 = vadd.f32 %v3359, %v3361
        %v3391 = vadd.f32 %v3360, %v3362
        %v3392 = vsub.f32 3.0, %v3390
        %v3393 = vsub.f32 3.0, %v3391
        %vm3394 = vcmp.ge.f32.partialorder %v3156, %v3390
        %v3395 = vsel %vm3394, %v3390, %v3384
        %v3396 = vsel %vm3394, %v3391, %v3385
        %v3397 = vsel %vm3394, %v3392, %v3386
        %v3398 = vsel %vm3394, %v3393, %v3387
        %v3399 = vsel %vm3394, %v3382, %v3388
        %v3400 = vsel %vm3394, 1.0, %v3389
        %v3401 = vsub.f32 %v3156, %v3395
        %v3402 = vrcp.pop %v3397
        %v3403 = vmul.f32 %v3401, %v3402
        %v3404 = vmax.f32 %v3403, 0.0
        %v3405 = vmin.f32 %v3404, 1.0
        %v3406 = vmul.f32 %v3398, %v3402
        %v3407 = vsub.f32 1.0, %v3405
        %v3408 = vmul.f32 %v3405, %v3407
        %v3409 = vmul.f32 %v3405, %v3405
        %v3410 = vmul.f32 %v3406, %v3409
        %v3411 = vmul.f32 %v3399, %v3408
        %v3412 = vadd.f32 %v3410, %v3411
        %v3413 = vmul.f32 %v3398, %v3412
        %v3414 = vadd.f32 %v3399, %v3400
        %v3415 = vmul.f32 %v3406, 2.0
        %v3416 = vsub.f32 %v3414, %v3415
        %v3417 = vmul.f32 %v3416, %v3408
        %v3418 = vadd.f32 %v3406, %v3417
        %v3419 = vrcp.pop %v3418
        %v3420 = vmul.f32 %v3413, %v3419
        %v3421 = vadd.f32 %v3396, %v3420
        %v3422 = vmul.f32 %v3406, %v3406
        %v3423 = vmul.f32 %v3400, %v3409
        %v3424 = vmul.f32 %v3415, %v3408
        %v3425 = vadd.f32 %v3423, %v3424
        %v3426 = vmul.f32 %v3399, %v3407
        %v3427 = vmul.f32 %v3426, %v3407
        %v3428 = vadd.f32 %v3425, %v3427
        %v3429 = vmul.f32 %v3422, %v3428
        %v3430 = vlog2.pop %v3429
        %v3431 = vmul.f32 %v3430, 0.6931472
        %v3432 = vlog2.pop %v3418
        %v3433 = vmul.f32 %v3432, 0.6931472
        %v3434 = vmul.f32 %v3433, 2.0
        %v3435 = vsub.f32 %v3431, %v3434
        %vm3436 = vcmp.ge.f32.partialorder %v589, -3.0
        %vm3437 = vcmp.le.f32.partialorder %v589, 3.0
        %vm3438 = vmand %vm3436, %vm3437
        %v3439 = vsel %vm3438, %v3421, %v589
        %v3440 = vsel %vm3438, %v3435, 0.0
        %3441 = vst [vmem:[%s579] sm:$0xff] %v2015
        %3442 = vst [vmem:[%s579 + $0x8] sm:$0xff] %v3439
        %v3443 = vsel %vm769, %v2016, 0.0
        %v3444 = vrot.slane %v3443, 4
        %v3445 = vadd.f32 %v3443, %v3444
        %v3446 = vrot.slane %v3445, 2
        %v3447 = vadd.f32 %v3445, %v3446
        %v3448 = vrot.slane %v3447, 1
        %v3449 = vadd.f32 %v3447, %v3448
        %v3450 = vsel %vm769, %v3440, 0.0
        %v3451 = vrot.slane %v3450, 4
        %v3452 = vadd.f32 %v3450, %v3451
        %v3453 = vrot.slane %v3452, 2
        %v3454 = vadd.f32 %v3452, %v3453
        %v3455 = vrot.slane %v3454, 1
        %v3456 = vadd.f32 %v3454, %v3455
        %v3457 = vadd.f32 %v3449, %v3456
        %3458 = vst [vmem:[%s579 + $0x10] sm:$0x1] %v3457
        %v3460 = vrot.slane %v2016, 4
        %v3462 = vsel %vm769, %v3460, 0.0
        %v3463 = vrot.slane %v3462, 4
        %v3464 = vadd.f32 %v3462, %v3463
        %v3465 = vrot.slane %v3464, 2
        %v3466 = vadd.f32 %v3464, %v3465
        %v3467 = vrot.slane %v3466, 1
        %v3468 = vadd.f32 %v3466, %v3467
        %v3470 = vrot.slane %v3440, 4
        %v3472 = vsel %vm769, %v3470, 0.0
        %v3473 = vrot.slane %v3472, 4
        %v3474 = vadd.f32 %v3472, %v3473
        %v3475 = vrot.slane %v3474, 2
        %v3476 = vadd.f32 %v3474, %v3475
        %v3477 = vrot.slane %v3476, 1
        %v3478 = vadd.f32 %v3476, %v3477
        %v3479 = vadd.f32 %v3468, %v3478
        %3480 = vst [vmem:[%s579 + $0x11] sm:$0x1] %v3479
        %s3481 = sand.u32 %s428, 1
        %s3482 = scalar_lea.sflag [#allocation4], %s3481
        %s3483 = sand.u32 %s428, 1
        %s3484 = smul.addr %s3483, 24
        %s3485 = scalar_lea.vmem [#allocation3], %s3484
        // Predicated region
        $region93: #{tpu_custom_call.1} parent=91 // pred_check
          %p3486 = pneg %p438
        $region94: #{tpu_custom_call.1} parent=91 // pred_check_branch
          %3488 = sbr.rel (%p3486) target = $region96
        $region95: #{tpu_custom_call.1} parent=91 // pred_region
          %s3490 = ssub.s32 384, 384
          %3491 = vsyncadd %s3482, %s3490
          %s3492 = smul.addr %s32, 128
          %s3493 = scalar_lea.hbm %s18, %s3492
          %s3494 = sshll.u32 %s3485, 4
          %s3495 = int_to_ptr.vmem [resolvable:$true] %s3494
          %3500 = dma.vmem_to_hbm [thread:$0]  %s3495, 384, %s3493, %s3482, 128, 256, 8
        $region96: #{tpu_custom_call.1} parent=91 // pred_fallthru
          _
      $region92: #{tpu_custom_call.1} parent=5 // pred_fallthru
        _
      %p3501 = scmp.le.s32.totalorder 2, %s27
      // Predicated region
      $region97: #{tpu_custom_call.1} parent=5 // pred_check
        %p3502 = pneg %p3501
      $region98: #{tpu_custom_call.1} parent=5 // pred_check_branch
        %3504 = sbr.rel (%p3502) target = $region100
      $region99: #{tpu_custom_call.1} parent=5 // pred_region
        %s3505 = ssub.s32 %s27, 2
        // Predicated region
        $region101: #{tpu_custom_call.1} parent=99 // pred_check
          %p3506 = pneg %p444
        $region102: #{tpu_custom_call.1} parent=99 // pred_check_branch
          %3508 = sbr.rel (%p3506) target = $region104
        $region103: #{tpu_custom_call.1} parent=99 // pred_region
          %s3509 = sand.u32 %s429, 1
          %s3510 = scalar_lea.sflag [#allocation4], %s3509
          %s3511 = sand.u32 %s429, 1
          %s3512 = smul.addr %s3511, 24
          %s3513 = scalar_lea.vmem [#allocation3], %s3512
          %3514 = dma.done %s3510, 384
        $region104: #{tpu_custom_call.1} parent=99 // pred_fallthru
          _
      $region100: #{tpu_custom_call.1} parent=5 // pred_fallthru
        _
    $region6: #{tpu_custom_call.1} parent=1 // loop_footer
      %s31 = sadd.s32 1, %s27
    $region7: #{tpu_custom_call.1} parent=1 // loop_footer_branch
      %26 = sbr.rel target = $region3
    $region8: #{tpu_custom_call.1} parent=1 // loop_exit
      _
    %3515 = vsyncpa [#allocation4], 1
    %s3516 = scalar_lea.sflag [#allocation4], 1
    %3517 = vsyncpa %s3516, 1

</llo_original>
